<compile_context>
chip_gen: v7x
topology: tpu7x:2x2x1
jax: 0.10.0
libtpu: 0.0.40
codegen_flags: <defaults>
</compile_context>

<pallas_src>
import functools

import jax
import jax.numpy as jnp
from jax import lax
from jax.experimental import pallas as pl
from jax.experimental.pallas import tpu as pltpu


# ----------------------------------------------------------------------------
# helpers
# ----------------------------------------------------------------------------
def _round_up(x, m):
    return -(-x // m) * m


def _tile(dim, pref, align):
    """Pick (tile, padded_dim) with tile <= pref, tile % align == 0."""
    p = _round_up(dim, align)
    if p <= pref:
        return p, p
    return pref, _round_up(dim, pref)


def _pad2(a, rows, cols):
    r, c = a.shape
    if (r, c) == (rows, cols):
        return a
    return jnp.pad(a, ((0, rows - r), (0, cols - c)))


def _compiler_params(dimension_semantics, allow_input_fusion=None):
    """CompilerParams with an optional allow_input_fusion (guarded for safety)."""
    if allow_input_fusion is not None:
        try:
            return pltpu.CompilerParams(
                dimension_semantics=dimension_semantics,
                allow_input_fusion=list(allow_input_fusion))
        except TypeError:       # field not available in this jax build
            pass
    return pltpu.CompilerParams(dimension_semantics=dimension_semantics)


# ----------------------------------------------------------------------------
# Fused tiled matmul kernel:  out = epilogue( prologue(X) @ W )
#   prologue: optional ReLU on the loaded X tile
#   epilogue: + bias, optional + residual, optional ReLU, cast to out dtype
# ----------------------------------------------------------------------------
def _mm_kernel(*refs, relu, prologue_relu, has_res, nk):
    if nk > 1:
        refs, acc_ref = refs[:-1], refs[-1]
    else:
        acc_ref = None
    if has_res:
        x_ref, w_ref, b_ref, r_ref, o_ref = refs
    else:
        x_ref, w_ref, b_ref, o_ref = refs
        r_ref = None

    a = x_ref[...]
    if prologue_relu:
        a = jnp.maximum(a, 0)
    prod = jnp.dot(a, w_ref[...], preferred_element_type=jnp.float32)

    def epilogue(y):
        y = y + b_ref[...]
        if has_res:
            y = y + r_ref[...].astype(jnp.float32)
        if relu:
            y = jnp.maximum(y, 0.0)
        o_ref[...] = y.astype(o_ref.dtype)

    if nk == 1:
        # single K step: no accumulator, no zero-init, write output directly
        epilogue(prod)
    else:
        k = pl.program_id(2)

        @pl.when(k == 0)
        def _():
            acc_ref[...] = prod          # assign instead of zero-init + add

        @pl.when(k > 0)
        def _():
            acc_ref[...] += prod

        @pl.when(k == nk - 1)
        def _():
            epilogue(acc_ref[...])


def pallas_matmul(x, w, b=None, *, relu=False, prologue_relu=False,
                  residual=None, out_dtype=jnp.bfloat16):
    """(M,K) @ (K,N) with fused bias / ReLU / residual-add epilogue.

    Inputs are cast to bf16 for the MXU; accumulation is f32. Dims are padded
    (M->16, N/K->128) so stores are unmasked and bf16 tiles are full.
    """
    M, K = x.shape
    Kw, N = w.shape
    assert K == Kw

    tm, Mp = _tile(M, 512, 16)      # 16-row alignment for bf16 sublane packing
    tn, Np = _tile(N, 256, 128)
    tk, Kp = _tile(K, 512, 128)
    nk = Kp // tk

    xp = _pad2(x.astype(jnp.bfloat16), Mp, Kp)
    wp = _pad2(w.astype(jnp.bfloat16), Kp, Np)
    if b is None:
        bp = jnp.zeros((1, Np), jnp.float32)
    else:
        bp = _pad2(b.reshape(1, N).astype(jnp.float32), 1, Np)

    inputs = [xp, wp, bp]
    in_specs = [
        pl.BlockSpec((tm, tk), lambda i, j, k: (i, k)),
        pl.BlockSpec((tk, tn), lambda i, j, k: (k, j)),
        pl.BlockSpec((1, tn), lambda i, j, k: (0, j)),
    ]
    has_res = residual is not None
    if has_res:
        inputs.append(_pad2(residual.astype(jnp.bfloat16), Mp, Np))
        in_specs.append(pl.BlockSpec((tm, tn), lambda i, j, k: (i, j)))

    scratch = [] if nk == 1 else [pltpu.VMEM((tm, tn), jnp.float32)]

    out = pl.pallas_call(
        functools.partial(_mm_kernel, relu=relu, prologue_relu=prologue_relu,
                          has_res=has_res, nk=nk),
        out_shape=jax.ShapeDtypeStruct((Mp, Np), out_dtype),
        grid_spec=pltpu.PrefetchScalarGridSpec(
            num_scalar_prefetch=0,
            grid=(Mp // tm, Np // tn, nk),
            in_specs=in_specs,
            out_specs=pl.BlockSpec((tm, tn), lambda i, j, k: (i, j)),
            scratch_shapes=scratch),
        compiler_params=_compiler_params(
            ("parallel", "parallel", "arbitrary"),
            # let XLA fuse the im2col producer into the x operand instead of
            # materializing it in HBM
            allow_input_fusion=[True] + [False] * (len(inputs) - 1)),
    )(*inputs)

    if (Mp, Np) != (M, N):
        out = out[:M, :N]
    return out


# ----------------------------------------------------------------------------
# Vector-quantization kernel, tiled over M ('parallel'), codebook resident once
# ----------------------------------------------------------------------------
def _vq_kernel(z_ref, e_ref, esq_ref, zq_ref, zqb_ref, cnt_ref, sq_ref, *,
               m_real, k_real):
    pid = pl.program_id(0)

    z = z_ref[...]                                         # (tm, Dp) f32
    tm = z.shape[0]
    kp = e_ref.shape[0]
    e = e_ref[...]                                         # (Kp, Dp) bf16

    # d[m,k] = ||z_m||^2 + ||e_k||^2 - 2 <z_m, e_k>  (combine / argmin in f32;
    # the inner product runs on bf16 MXU operands with f32 accumulation and
    # reuses the single (Kp,Dp) codebook copy via a transposed contraction).
    z_sq = jnp.sum(z * z, axis=1, keepdims=True)           # (tm, 1) exact f32
    ze = lax.dot_general(z.astype(jnp.bfloat16), e,
                         (((1,), (1,)), ((), ())),
                         preferred_element_type=jnp.float32)  # (tm, Kp)
    d = z_sq + esq_ref[...] - 2.0 * ze

    iota_k = lax.broadcasted_iota(jnp.int32, d.shape, 1)
    d = jnp.where(iota_k < k_real, d, 1e30)                # mask padded codes

    # argmin with first-match tie-break (matches torch.argmin)
    dmin = jnp.min(d, axis=1, keepdims=True)
    idx = jnp.min(jnp.where(d <= dmin, iota_k, kp), axis=1, keepdims=True)
    onehot = (iota_k == idx).astype(jnp.float32)           # (tm, Kp) exact

    # codebook gather as one-hot matmul (bf16 MXU operands, f32 accumulation)
    zq = jnp.dot(onehot.astype(jnp.bfloat16), e,
                 preferred_element_type=jnp.float32)       # (tm, Dp)
    zq_ref[...] = zq
    zqb_ref[...] = zq.astype(jnp.bfloat16)                 # decoder-path copy

    # per-tile partial sums (padded M rows masked); reduced outside in JAX so
    # the M grid axis can stay 'parallel' (megacore-safe).
    rows = lax.broadcasted_iota(jnp.int32, (tm, 1), 0) + pid * tm
    valid = (rows < m_real).astype(jnp.float32)            # (tm, 1)
    diff = zq - z
    sqv = jnp.sum(diff * diff, axis=1, keepdims=True) * valid   # (tm, 1)
    sq_tile = jnp.sum(sqv, axis=0, keepdims=True)                # (1, 1)
    cnt_tile = jnp.sum(onehot * valid, axis=0, keepdims=True)    # (1, Kp)

    cnt_ref[...] = cnt_tile.reshape(1, 1, kp)
    sq_ref[...] = jnp.broadcast_to(sq_tile.reshape(1, 1, 1), (1, 1, 128))


def pallas_vq(z_flat, codebook, beta):
    """z_flat (M,D) f32, codebook (K,D) f32 -> (z_q f32, z_q bf16, loss, perp)."""
    M, D = z_flat.shape
    K = codebook.shape[0]

    tm, Mp = _tile(M, 512, 8)
    Dp = _round_up(D, 128)
    Kp = _round_up(K, 128)
    nm = Mp // tm

    zp = _pad2(z_flat, Mp, Dp)                        # f32 (exact norms in-kernel)
    ep = _pad2(codebook, Kp, Dp)                      # f32 (Kp, Dp)
    eb = ep.astype(jnp.bfloat16)                      # single bf16 codebook copy
    esq = jnp.sum(ep * ep, axis=1).reshape(1, Kp)     # ||e||^2 exact f32

    zq, zqb, cnt_p, sq_p = pl.pallas_call(
        functools.partial(_vq_kernel, m_real=M, k_real=K),
        out_shape=(jax.ShapeDtypeStruct((Mp, Dp), jnp.float32),
                   jax.ShapeDtypeStruct((Mp, Dp), jnp.bfloat16),
                   jax.ShapeDtypeStruct((nm, 1, Kp), jnp.float32),
                   jax.ShapeDtypeStruct((nm, 1, 128), jnp.float32)),
        grid_spec=pltpu.PrefetchScalarGridSpec(
            num_scalar_prefetch=0,
            grid=(nm,),
            in_specs=[pl.BlockSpec((tm, Dp), lambda i: (i, 0)),
                      pl.BlockSpec((Kp, Dp), lambda i: (0, 0)),
                      pl.BlockSpec((1, Kp), lambda i: (0, 0))],
            out_specs=(pl.BlockSpec((tm, Dp), lambda i: (i, 0)),
                       pl.BlockSpec((tm, Dp), lambda i: (i, 0)),
                       pl.BlockSpec((1, 1, Kp), lambda i: (i, 0, 0)),
                       pl.BlockSpec((1, 1, 128), lambda i: (i, 0, 0)))),
        compiler_params=_compiler_params(("parallel",)),
    )(zp, eb, esq)

    # tiny final reduction in JAX (keeps the kernel grid race-free + parallel)
    cnt = jnp.sum(cnt_p[:, 0, :K], axis=0)            # (K,)
    sq = jnp.sum(sq_p[:, 0, 0])
    # forward value of mean((zq.detach()-z)^2) + beta*mean((zq-z.detach())^2)
    loss = (1.0 + float(beta)) * sq / (M * D)
    e_mean = cnt / M
    perplexity = jnp.exp(-jnp.sum(e_mean * jnp.log(e_mean + 1e-10)))
    return zq[:M, :D], zqb[:M, :D], loss, perplexity


# ----------------------------------------------------------------------------
# Conv glue (im2col in JAX, fusable into the Pallas call; matmul in Pallas)
# ----------------------------------------------------------------------------
def conv2d(x, w, b, stride, pad, *, relu=False, prologue_relu=False,
           residual=None, out_dtype=jnp.bfloat16):
    """x: (B,H,W,Cin) NHWC.  w: (kh,kw,Cin,Cout).  Matches nn.Conv2d."""
    kh, kw, cin, cout = w.shape
    if pad:
        x = jnp.pad(x, ((0, 0), (pad, pad), (pad, pad), (0, 0)))
    B, H, W, _ = x.shape
    Ho = (H - kh) // stride + 1
    Wo = (W - kw) // stride + 1
    if kh == 1 and kw == 1 and stride == 1:
        xm = x.reshape(B * Ho * Wo, cin)
    else:
        # TODO(synk): stream these taps with manual async_copy inside the
        #             kernel; here we rely on allow_input_fusion so XLA can
        #             fuse this gather into the pallas_call operand.
        cols = [x[:, i:i + stride * Ho:stride, j:j + stride * Wo:stride, :]
                for i in range(kh) for j in range(kw)]
        xm = jnp.concatenate(cols, axis=-1).reshape(B * Ho * Wo, kh * kw * cin)
    wm = w.reshape(kh * kw * cin, cout)
    rm = None if residual is None else residual.reshape(B * Ho * Wo, cout)
    y = pallas_matmul(xm, wm, b, relu=relu, prologue_relu=prologue_relu,
                      residual=rm, out_dtype=out_dtype)
    return y.reshape(B, Ho, Wo, cout)


def conv_transpose2d(x, w_pt, b, stride, pad, *, relu=False,
                     out_dtype=jnp.bfloat16):
    """x: NHWC.  w_pt: (Cin,Cout,kh,kw) PyTorch ConvTranspose2d layout."""
    cin, cout, kh, kw = w_pt.shape
    # equivalent regular-conv weight: spatial flip, layout (kh,kw,Cin,Cout)
    w_eq = jnp.transpose(w_pt[:, :, ::-1, ::-1], (2, 3, 0, 1))

    if stride == 1:
        return conv2d(x, w_eq, b, stride=1, pad=kh - 1 - pad, relu=relu,
                      out_dtype=out_dtype)

    # stride-2, k=4, p=1 up-sampling: the 4 sub-pixel phases are FUSED into a
    # single 3x3 stride-1 conv with N = 4*Cout (one lane-dense launch sharing
    # one im2col), followed by one pixel shuffle.
    # TODO(synk): general stride/kernel/output_padding not implemented.
    assert stride == 2 and kh == 4 and kw == 4 and pad == 1
    B, H, W, _ = x.shape
    xp = jnp.pad(x, ((0, 0), (1, 1), (1, 1), (0, 0)))        # (B, H+2, W+2, Cin)

    # phase (r,s): out[2h+r, 2w+s] = sum_{di,dj} xp[h+r+di, w+s+dj] * w_eq[2*(r+di)-r, ...]
    # -> embed each 2x2 sub-filter into a 3x3 filter at taps (r+di, s+dj).
    w3 = jnp.zeros((3, 3, cin, 4, cout), w_eq.dtype)
    for r in range(2):
        for s in range(2):
            p = r * 2 + s
            sub = w_eq[r::2, s::2]                           # (2,2,Cin,Cout)
            w3 = w3.at[r:r + 2, s:s + 2, :, p, :].set(sub)
    w3 = w3.reshape(3, 3, cin, 4 * cout)
    b4 = None if b is None else jnp.tile(b, 4)

    y = conv2d(xp, w3, b4, stride=1, pad=0, relu=relu, out_dtype=out_dtype)
    # pixel shuffle: (B,H,W,[r,s,c]) -> (B,2H,2W,c)
    y = y.reshape(B, H, W, 2, 2, cout)
    y = jnp.transpose(y, (0, 1, 3, 2, 4, 5))                 # (B,H,2,W,2,Cout)
    return y.reshape(B, 2 * H, 2 * W, cout)


# ----------------------------------------------------------------------------
# Model blocks (canonical VQ-VAE encoder / decoder / residual stack)
# ----------------------------------------------------------------------------
def residual_stack(x, layers):
    # ResidualLayer: x + Conv1x1(ReLU(Conv3x3(ReLU(x)))), both convs bias-free.
    # The per-layer inner ReLU(x) stays a prologue (the un-ReLU'd x also feeds
    # the residual add, so it cannot move into the producer's epilogue).
    # The stack's FINAL ReLU is applied in the LAST 1x1 conv's f32 epilogue
    # (after the residual add), so downstream convs need no prologue ReLU.
    if not layers:
        return jnp.maximum(x, 0)
    n = len(layers)
    for idx, (w3, w1) in enumerate(layers):
        t = conv2d(x, w3, None, stride=1, pad=1, relu=True, prologue_relu=True)
        x = conv2d(t, w1, None, stride=1, pad=0, residual=x,
                   relu=(idx == n - 1))
    return x


def encoder_fwd(x, p):
    x = conv2d(x, p["w1"], p["b1"], stride=2, pad=1, relu=True)
    x = conv2d(x, p["w2"], p["b2"], stride=2, pad=1, relu=True)
    x = conv2d(x, p["w3"], p["b3"], stride=1, pad=1)
    return residual_stack(x, p["res"])          # already ReLU'd at the output


def decoder_fwd(z, p):
    x = conv_transpose2d(z, p["wt1"], p["bt1"], stride=1, pad=1)
    x = residual_stack(x, p["res"])             # already ReLU'd at the output
    x = conv_transpose2d(x, p["wt2"], p["bt2"], stride=2, pad=1, relu=True)
    x = conv_transpose2d(x, p["wt3"], p["bt3"], stride=2, pad=1,
                         out_dtype=jnp.float32)
    return x


def vqvae_forward(params, x_nchw, beta):
    x = jnp.transpose(x_nchw, (0, 2, 3, 1)).astype(jnp.bfloat16)  # NCHW->NHWC
    z = encoder_fwd(x, params["enc"])
    # pre-quantization 1x1 conv (stack output is already ReLU'd)
    z_e = conv2d(z, params["pre_w"], params["pre_b"], stride=1, pad=0,
                 out_dtype=jnp.float32)
    B, H, W, D = z_e.shape
    z_flat = z_e.reshape(B * H * W, D)            # == permute+view in torch
    zq_f32, zq_bf16, loss, perp = pallas_vq(z_flat, params["codebook"], beta)
    z_q = zq_f32.reshape(B, H, W, D)              # straight-through value
    x_hat = decoder_fwd(zq_bf16.reshape(B, H, W, D), params["dec"])
    return (loss,
            jnp.transpose(x_hat, (0, 3, 1, 2)),   # back to NCHW
            perp,
            jnp.transpose(z_q, (0, 3, 1, 2)))


# ----------------------------------------------------------------------------
# Deterministic parameter init (synthetic; shapes follow the module __init__)
# ----------------------------------------------------------------------------
def _init_conv(key, kh, kw, cin, cout, bias=True):
    s = 1.0 / (kh * kw * cin) ** 0.5
    k1, k2 = jax.random.split(key)
    w = jax.random.uniform(k1, (kh, kw, cin, cout), jnp.float32, -s, s)
    b = jax.random.uniform(k2, (cout,), jnp.float32, -s, s) if bias else None
    return w, b


def _init_convT(key, cin, cout, kh, kw):
    s = 1.0 / (cin * kh * kw) ** 0.5
    k1, k2 = jax.random.split(key)
    w = jax.random.uniform(k1, (cin, cout, kh, kw), jnp.float32, -s, s)
    b = jax.random.uniform(k2, (cout,), jnp.float32, -s, s)
    return w, b


def make_params(key, in_chan, h_dim, res_h_dim, n_res_layers, n_embeddings,
                embedding_dim):
    keys = iter(jax.random.split(key, 64))

    def res_layers(dim):
        layers = []
        for _ in range(n_res_layers):
            w3, _ = _init_conv(next(keys), 3, 3, dim, res_h_dim, bias=False)
            w1, _ = _init_conv(next(keys), 1, 1, res_h_dim, dim, bias=False)
            layers.append((w3, w1))
        return layers

    enc = {}
    enc["w1"], enc["b1"] = _init_conv(next(keys), 4, 4, in_chan, h_dim // 2)
    enc["w2"], enc["b2"] = _init_conv(next(keys), 4, 4, h_dim // 2, h_dim)
    enc["w3"], enc["b3"] = _init_conv(next(keys), 3, 3, h_dim, h_dim)
    enc["res"] = res_layers(h_dim)

    dec = {}
    dec["wt1"], dec["bt1"] = _init_convT(next(keys), embedding_dim, h_dim, 3, 3)
    dec["res"] = res_layers(h_dim)
    dec["wt2"], dec["bt2"] = _init_convT(next(keys), h_dim, h_dim // 2, 4, 4)
    dec["wt3"], dec["bt3"] = _init_convT(next(keys), h_dim // 2, in_chan, 4, 4)

    pre_w, pre_b = _init_conv(next(keys), 1, 1, h_dim, embedding_dim)
    codebook = jax.random.uniform(next(keys), (n_embeddings, embedding_dim),
                                  jnp.float32,
                                  -1.0 / n_embeddings, 1.0 / n_embeddings)

    return {"enc": enc, "dec": dec, "pre_w": pre_w, "pre_b": pre_b,
            "codebook": codebook}


# ----------------------------------------------------------------------------
if __name__ == "__main__":
    # small config consistent with the module (in_chan=3; scaled-down widths)
    in_chan, h_dim, res_h_dim = 3, 32, 8
    n_res_layers, n_embeddings, embedding_dim, beta = 2, 64, 16, 0.25
    B, S = 2, 16

    key = jax.random.PRNGKey(0)
    kparam, kx = jax.random.split(key)
    params = make_params(kparam, in_chan, h_dim, res_h_dim, n_res_layers,
                         n_embeddings, embedding_dim)
    x = jax.random.normal(kx, (B, in_chan, S, S), jnp.float32)  # NCHW like PyTorch

    fwd = jax.jit(functools.partial(vqvae_forward, beta=beta))
    embedding_loss, x_hat, perplexity, z_q = fwd(params, x)
    jax.block_until_ready((embedding_loss, x_hat, perplexity, z_q))

    assert x_hat.shape == (B, in_chan, S, S)
    assert z_q.shape == (B, embedding_dim, S // 4, S // 4)
    assert embedding_loss.shape == () and perplexity.shape == ()
    assert bool(jnp.isfinite(embedding_loss)) and bool(jnp.isfinite(perplexity))
    print("KERNEL_OK")
</pallas_src>

<mosaic_0001>
module attributes {stable_mosaic.version = 11 : i64} {
  func.func @_mm_kernel(%arg0: i32, %arg1: i32, %arg2: i32, %arg3: memref<128x128xbf16, #tpu.memory_space<vmem>>, %arg4: memref<128x128xbf16, #tpu.memory_space<vmem>>, %arg5: memref<1x128xf32, #tpu.memory_space<vmem>>, %arg6: memref<128x128xbf16, #tpu.memory_space<vmem>>) attributes {dimension_semantics = [#tpu.dimension_semantics<parallel>, #tpu.dimension_semantics<parallel>, #tpu.dimension_semantics<arbitrary>], iteration_bounds = array<i64: 1, 1, 1>, scalar_prefetch = 0 : i64, scratch_operands = 0 : i64, tpu.core_type = #tpu.core_type<tc>, window_params = [{transform_indices = @transform_0, window_bounds = array<i64: 128, 128>}, {transform_indices = @transform_1, window_bounds = array<i64: 128, 128>}, {transform_indices = @transform_2, window_bounds = array<i64: 1, 128>}, {transform_indices = @transform_3, window_bounds = array<i64: 128, 128>}]} {
    %c0 = arith.constant 0 : index
    %c0_0 = arith.constant 0 : index
    %0 = vector.load %arg3[%c0, %c0_0] : memref<128x128xbf16, #tpu.memory_space<vmem>>, vector<128x128xbf16>
    %c0_1 = arith.constant 0 : index
    %c0_2 = arith.constant 0 : index
    %1 = vector.load %arg4[%c0_1, %c0_2] : memref<128x128xbf16, #tpu.memory_space<vmem>>, vector<128x128xbf16>
    %cst = arith.constant dense<0.000000e+00> : vector<128x128xf32>
    %2 = tpu.matmul %0, %1, %cst {dimension_numbers = #tpu.dot_dimension_numbers<[1], [0], [0], [1], [0, 0, 1, 1], [], []>} : vector<128x128xbf16>, vector<128x128xbf16>, vector<128x128xf32> -> vector<128x128xf32>
    %c0_3 = arith.constant 0 : index
    %c0_4 = arith.constant 0 : index
    %3 = vector.load %arg5[%c0_3, %c0_4] : memref<1x128xf32, #tpu.memory_space<vmem>>, vector<1x128xf32>
    %4 = vector.broadcast %3 : vector<1x128xf32> to vector<128x128xf32>
    %5 = arith.addf %2, %4 : vector<128x128xf32>
    %cst_5 = arith.constant 0.000000e+00 : f32
    %6 = vector.broadcast %cst_5 : f32 to vector<128x128xf32>
    %7 = arith.maximumf %5, %6 : vector<128x128xf32>
    %8 = arith.truncf %7 : vector<128x128xf32> to vector<128x128xbf16>
    %c0_6 = arith.constant 0 : index
    %c0_7 = arith.constant 0 : index
    %9 = vector.load %arg6[%c0_6, %c0_7] : memref<128x128xbf16, #tpu.memory_space<vmem>>, vector<128x128xbf16>
    tpu.vector_store %arg6[%c0_6, %c0_7], %8 {strides = array<i32>} : memref<128x128xbf16, #tpu.memory_space<vmem>>, vector<128x128xbf16>,
    return
  }
  func.func @transform_0(%arg0: i32, %arg1: i32, %arg2: i32) -> (i32, i32) {
    %c0_i32 = arith.constant 0 : i32
    return %arg0, %arg2 : i32, i32
  }
  func.func @transform_1(%arg0: i32, %arg1: i32, %arg2: i32) -> (i32, i32) {
    %c0_i32 = arith.constant 0 : i32
    return %arg2, %arg1 : i32, i32
  }
  func.func @transform_2(%arg0: i32, %arg1: i32, %arg2: i32) -> (i32, i32) {
    %c0_i32 = arith.constant 0 : i32
    %c0_i32_0 = arith.constant 0 : i32
    return %c0_i32, %arg1 : i32, i32
  }
  func.func @transform_3(%arg0: i32, %arg1: i32, %arg2: i32) -> (i32, i32) {
    %c0_i32 = arith.constant 0 : i32
    return %arg0, %arg1 : i32, i32
  }
}

module attributes {stable_mosaic.version = 11 : i64} {
  func.func @_mm_kernel(%arg0: i32, %arg1: i32, %arg2: i32, %arg3: memref<32x256xbf16, #tpu.memory_space<vmem>>, %arg4: memref<256x128xbf16, #tpu.memory_space<vmem>>, %arg5: memref<1x128xf32, #tpu.memory_space<vmem>>, %arg6: memref<32x128xbf16, #tpu.memory_space<vmem>>) attributes {dimension_semantics = [#tpu.dimension_semantics<parallel>, #tpu.dimension_semantics<parallel>, #tpu.dimension_semantics<arbitrary>], iteration_bounds = array<i64: 1, 1, 1>, scalar_prefetch = 0 : i64, scratch_operands = 0 : i64, tpu.core_type = #tpu.core_type<tc>, window_params = [{transform_indices = @transform_0, window_bounds = array<i64: 32, 256>}, {transform_indices = @transform_1, window_bounds = array<i64: 256, 128>}, {transform_indices = @transform_2, window_bounds = array<i64: 1, 128>}, {transform_indices = @transform_3, window_bounds = array<i64: 32, 128>}]} {
    %c0 = arith.constant 0 : index
    %c0_0 = arith.constant 0 : index
    %0 = vector.load %arg3[%c0, %c0_0] : memref<32x256xbf16, #tpu.memory_space<vmem>>, vector<32x256xbf16>
    %c0_1 = arith.constant 0 : index
    %c0_2 = arith.constant 0 : index
    %1 = vector.load %arg4[%c0_1, %c0_2] : memref<256x128xbf16, #tpu.memory_space<vmem>>, vector<256x128xbf16>
    %cst = arith.constant dense<0.000000e+00> : vector<32x128xf32>
    %2 = tpu.matmul %0, %1, %cst {dimension_numbers = #tpu.dot_dimension_numbers<[1], [0], [0], [1], [0, 0, 1, 1], [], []>} : vector<32x256xbf16>, vector<256x128xbf16>, vector<32x128xf32> -> vector<32x128xf32>
    %c0_3 = arith.constant 0 : index
    %c0_4 = arith.constant 0 : index
    %3 = vector.load %arg5[%c0_3, %c0_4] : memref<1x128xf32, #tpu.memory_space<vmem>>, vector<1x128xf32>
    %4 = vector.broadcast %3 : vector<1x128xf32> to vector<32x128xf32>
    %5 = arith.addf %2, %4 : vector<32x128xf32>
    %cst_5 = arith.constant 0.000000e+00 : f32
    %6 = vector.broadcast %cst_5 : f32 to vector<32x128xf32>
    %7 = arith.maximumf %5, %6 : vector<32x128xf32>
    %8 = arith.truncf %7 : vector<32x128xf32> to vector<32x128xbf16>
    %c0_6 = arith.constant 0 : index
    %c0_7 = arith.constant 0 : index
    %9 = vector.load %arg6[%c0_6, %c0_7] : memref<32x128xbf16, #tpu.memory_space<vmem>>, vector<32x128xbf16>
    tpu.vector_store %arg6[%c0_6, %c0_7], %8 {strides = array<i32>} : memref<32x128xbf16, #tpu.memory_space<vmem>>, vector<32x128xbf16>,
    return
  }
  func.func @transform_0(%arg0: i32, %arg1: i32, %arg2: i32) -> (i32, i32) {
    %c0_i32 = arith.constant 0 : i32
    return %arg0, %arg2 : i32, i32
  }
  func.func @transform_1(%arg0: i32, %arg1: i32, %arg2: i32) -> (i32, i32) {
    %c0_i32 = arith.constant 0 : i32
    return %arg2, %arg1 : i32, i32
  }
  func.func @transform_2(%arg0: i32, %arg1: i32, %arg2: i32) -> (i32, i32) {
    %c0_i32 = arith.constant 0 : i32
    %c0_i32_0 = arith.constant 0 : i32
    return %c0_i32, %arg1 : i32, i32
  }
  func.func @transform_3(%arg0: i32, %arg1: i32, %arg2: i32) -> (i32, i32) {
    %c0_i32 = arith.constant 0 : i32
    return %arg0, %arg1 : i32, i32
  }
}

module attributes {stable_mosaic.version = 11 : i64} {
  func.func @_mm_kernel(%arg0: i32, %arg1: i32, %arg2: i32, %arg3: memref<32x384xbf16, #tpu.memory_space<vmem>>, %arg4: memref<384x128xbf16, #tpu.memory_space<vmem>>, %arg5: memref<1x128xf32, #tpu.memory_space<vmem>>, %arg6: memref<32x128xbf16, #tpu.memory_space<vmem>>) attributes {dimension_semantics = [#tpu.dimension_semantics<parallel>, #tpu.dimension_semantics<parallel>, #tpu.dimension_semantics<arbitrary>], iteration_bounds = array<i64: 1, 1, 1>, scalar_prefetch = 0 : i64, scratch_operands = 0 : i64, tpu.core_type = #tpu.core_type<tc>, window_params = [{transform_indices = @transform_0, window_bounds = array<i64: 32, 384>}, {transform_indices = @transform_1, window_bounds = array<i64: 384, 128>}, {transform_indices = @transform_2, window_bounds = array<i64: 1, 128>}, {transform_indices = @transform_3, window_bounds = array<i64: 32, 128>}]} {
    %c0 = arith.constant 0 : index
    %c0_0 = arith.constant 0 : index
    %0 = vector.load %arg3[%c0, %c0_0] : memref<32x384xbf16, #tpu.memory_space<vmem>>, vector<32x384xbf16>
    %c0_1 = arith.constant 0 : index
    %c0_2 = arith.constant 0 : index
    %1 = vector.load %arg4[%c0_1, %c0_2] : memref<384x128xbf16, #tpu.memory_space<vmem>>, vector<384x128xbf16>
    %cst = arith.constant dense<0.000000e+00> : vector<32x128xf32>
    %2 = tpu.matmul %0, %1, %cst {dimension_numbers = #tpu.dot_dimension_numbers<[1], [0], [0], [1], [0, 0, 1, 1], [], []>} : vector<32x384xbf16>, vector<384x128xbf16>, vector<32x128xf32> -> vector<32x128xf32>
    %c0_3 = arith.constant 0 : index
    %c0_4 = arith.constant 0 : index
    %3 = vector.load %arg5[%c0_3, %c0_4] : memref<1x128xf32, #tpu.memory_space<vmem>>, vector<1x128xf32>
    %4 = vector.broadcast %3 : vector<1x128xf32> to vector<32x128xf32>
    %5 = arith.addf %2, %4 : vector<32x128xf32>
    %6 = arith.truncf %5 : vector<32x128xf32> to vector<32x128xbf16>
    %c0_5 = arith.constant 0 : index
    %c0_6 = arith.constant 0 : index
    %7 = vector.load %arg6[%c0_5, %c0_6] : memref<32x128xbf16, #tpu.memory_space<vmem>>, vector<32x128xbf16>
    tpu.vector_store %arg6[%c0_5, %c0_6], %6 {strides = array<i32>} : memref<32x128xbf16, #tpu.memory_space<vmem>>, vector<32x128xbf16>,
    return
  }
  func.func @transform_0(%arg0: i32, %arg1: i32, %arg2: i32) -> (i32, i32) {
    %c0_i32 = arith.constant 0 : i32
    return %arg0, %arg2 : i32, i32
  }
  func.func @transform_1(%arg0: i32, %arg1: i32, %arg2: i32) -> (i32, i32) {
    %c0_i32 = arith.constant 0 : i32
    return %arg2, %arg1 : i32, i32
  }
  func.func @transform_2(%arg0: i32, %arg1: i32, %arg2: i32) -> (i32, i32) {
    %c0_i32 = arith.constant 0 : i32
    %c0_i32_0 = arith.constant 0 : i32
    return %c0_i32, %arg1 : i32, i32
  }
  func.func @transform_3(%arg0: i32, %arg1: i32, %arg2: i32) -> (i32, i32) {
    %c0_i32 = arith.constant 0 : i32
    return %arg0, %arg1 : i32, i32
  }
}

module attributes {stable_mosaic.version = 11 : i64} {
  func.func @_mm_kernel(%arg0: i32, %arg1: i32, %arg2: i32, %arg3: memref<32x384xbf16, #tpu.memory_space<vmem>>, %arg4: memref<384x128xbf16, #tpu.memory_space<vmem>>, %arg5: memref<1x128xf32, #tpu.memory_space<vmem>>, %arg6: memref<32x128xbf16, #tpu.memory_space<vmem>>) attributes {dimension_semantics = [#tpu.dimension_semantics<parallel>, #tpu.dimension_semantics<parallel>, #tpu.dimension_semantics<arbitrary>], iteration_bounds = array<i64: 1, 1, 1>, scalar_prefetch = 0 : i64, scratch_operands = 0 : i64, tpu.core_type = #tpu.core_type<tc>, window_params = [{transform_indices = @transform_0, window_bounds = array<i64: 32, 384>}, {transform_indices = @transform_1, window_bounds = array<i64: 384, 128>}, {transform_indices = @transform_2, window_bounds = array<i64: 1, 128>}, {transform_indices = @transform_3, window_bounds = array<i64: 32, 128>}]} {
    %c0 = arith.constant 0 : index
    %c0_0 = arith.constant 0 : index
    %0 = vector.load %arg3[%c0, %c0_0] : memref<32x384xbf16, #tpu.memory_space<vmem>>, vector<32x384xbf16>
    %cst = arith.constant 0.000000e+00 : bf16
    %1 = vector.broadcast %cst : bf16 to vector<32x384xbf16>
    %2 = arith.maximumf %0, %1 : vector<32x384xbf16>
    %c0_1 = arith.constant 0 : index
    %c0_2 = arith.constant 0 : index
    %3 = vector.load %arg4[%c0_1, %c0_2] : memref<384x128xbf16, #tpu.memory_space<vmem>>, vector<384x128xbf16>
    %cst_3 = arith.constant dense<0.000000e+00> : vector<32x128xf32>
    %4 = tpu.matmul %2, %3, %cst_3 {dimension_numbers = #tpu.dot_dimension_numbers<[1], [0], [0], [1], [0, 0, 1, 1], [], []>} : vector<32x384xbf16>, vector<384x128xbf16>, vector<32x128xf32> -> vector<32x128xf32>
    %c0_4 = arith.constant 0 : index
    %c0_5 = arith.constant 0 : index
    %5 = vector.load %arg5[%c0_4, %c0_5] : memref<1x128xf32, #tpu.memory_space<vmem>>, vector<1x128xf32>
    %6 = vector.broadcast %5 : vector<1x128xf32> to vector<32x128xf32>
    %7 = arith.addf %4, %6 : vector<32x128xf32>
    %cst_6 = arith.constant 0.000000e+00 : f32
    %8 = vector.broadcast %cst_6 : f32 to vector<32x128xf32>
    %9 = arith.maximumf %7, %8 : vector<32x128xf32>
    %10 = arith.truncf %9 : vector<32x128xf32> to vector<32x128xbf16>
    %c0_7 = arith.constant 0 : index
    %c0_8 = arith.constant 0 : index
    %11 = vector.load %arg6[%c0_7, %c0_8] : memref<32x128xbf16, #tpu.memory_space<vmem>>, vector<32x128xbf16>
    tpu.vector_store %arg6[%c0_7, %c0_8], %10 {strides = array<i32>} : memref<32x128xbf16, #tpu.memory_space<vmem>>, vector<32x128xbf16>,
    return
  }
  func.func @transform_0(%arg0: i32, %arg1: i32, %arg2: i32) -> (i32, i32) {
    %c0_i32 = arith.constant 0 : i32
    return %arg0, %arg2 : i32, i32
  }
  func.func @transform_1(%arg0: i32, %arg1: i32, %arg2: i32) -> (i32, i32) {
    %c0_i32 = arith.constant 0 : i32
    return %arg2, %arg1 : i32, i32
  }
  func.func @transform_2(%arg0: i32, %arg1: i32, %arg2: i32) -> (i32, i32) {
    %c0_i32 = arith.constant 0 : i32
    %c0_i32_0 = arith.constant 0 : i32
    return %c0_i32, %arg1 : i32, i32
  }
  func.func @transform_3(%arg0: i32, %arg1: i32, %arg2: i32) -> (i32, i32) {
    %c0_i32 = arith.constant 0 : i32
    return %arg0, %arg1 : i32, i32
  }
}

module attributes {stable_mosaic.version = 11 : i64} {
  func.func @_mm_kernel(%arg0: i32, %arg1: i32, %arg2: i32, %arg3: memref<32x128xbf16, #tpu.memory_space<vmem>>, %arg4: memref<128x128xbf16, #tpu.memory_space<vmem>>, %arg5: memref<1x128xf32, #tpu.memory_space<vmem>>, %arg6: memref<32x128xbf16, #tpu.memory_space<vmem>>, %arg7: memref<32x128xbf16, #tpu.memory_space<vmem>>) attributes {dimension_semantics = [#tpu.dimension_semantics<parallel>, #tpu.dimension_semantics<parallel>, #tpu.dimension_semantics<arbitrary>], iteration_bounds = array<i64: 1, 1, 1>, scalar_prefetch = 0 : i64, scratch_operands = 0 : i64, tpu.core_type = #tpu.core_type<tc>, window_params = [{transform_indices = @transform_0, window_bounds = array<i64: 32, 128>}, {transform_indices = @transform_1, window_bounds = array<i64: 128, 128>}, {transform_indices = @transform_2, window_bounds = array<i64: 1, 128>}, {transform_indices = @transform_3, window_bounds = array<i64: 32, 128>}, {transform_indices = @transform_4, window_bounds = array<i64: 32, 128>}]} {
    %c0 = arith.constant 0 : index
    %c0_0 = arith.constant 0 : index
    %0 = vector.load %arg3[%c0, %c0_0] : memref<32x128xbf16, #tpu.memory_space<vmem>>, vector<32x128xbf16>
    %c0_1 = arith.constant 0 : index
    %c0_2 = arith.constant 0 : index
    %1 = vector.load %arg4[%c0_1, %c0_2] : memref<128x128xbf16, #tpu.memory_space<vmem>>, vector<128x128xbf16>
    %cst = arith.constant dense<0.000000e+00> : vector<32x128xf32>
    %2 = tpu.matmul %0, %1, %cst {dimension_numbers = #tpu.dot_dimension_numbers<[1], [0], [0], [1], [0, 0, 1, 1], [], []>} : vector<32x128xbf16>, vector<128x128xbf16>, vector<32x128xf32> -> vector<32x128xf32>
    %c0_3 = arith.constant 0 : index
    %c0_4 = arith.constant 0 : index
    %3 = vector.load %arg5[%c0_3, %c0_4] : memref<1x128xf32, #tpu.memory_space<vmem>>, vector<1x128xf32>
    %4 = vector.broadcast %3 : vector<1x128xf32> to vector<32x128xf32>
    %5 = arith.addf %2, %4 : vector<32x128xf32>
    %c0_5 = arith.constant 0 : index
    %c0_6 = arith.constant 0 : index
    %6 = vector.load %arg6[%c0_5, %c0_6] : memref<32x128xbf16, #tpu.memory_space<vmem>>, vector<32x128xbf16>
    %7 = arith.extf %6 : vector<32x128xbf16> to vector<32x128xf32>
    %8 = arith.addf %5, %7 : vector<32x128xf32>
    %cst_7 = arith.constant 0.000000e+00 : f32
    %9 = vector.broadcast %cst_7 : f32 to vector<32x128xf32>
    %10 = arith.maximumf %8, %9 : vector<32x128xf32>
    %11 = arith.truncf %10 : vector<32x128xf32> to vector<32x128xbf16>
    %c0_8 = arith.constant 0 : index
    %c0_9 = arith.constant 0 : index
    %12 = vector.load %arg7[%c0_8, %c0_9] : memref<32x128xbf16, #tpu.memory_space<vmem>>, vector<32x128xbf16>
    tpu.vector_store %arg7[%c0_8, %c0_9], %11 {strides = array<i32>} : memref<32x128xbf16, #tpu.memory_space<vmem>>, vector<32x128xbf16>,
    return
  }
  func.func @transform_0(%arg0: i32, %arg1: i32, %arg2: i32) -> (i32, i32) {
    %c0_i32 = arith.constant 0 : i32
    return %arg0, %arg2 : i32, i32
  }
  func.func @transform_1(%arg0: i32, %arg1: i32, %arg2: i32) -> (i32, i32) {
    %c0_i32 = arith.constant 0 : i32
    return %arg2, %arg1 : i32, i32
  }
  func.func @transform_2(%arg0: i32, %arg1: i32, %arg2: i32) -> (i32, i32) {
    %c0_i32 = arith.constant 0 : i32
    %c0_i32_0 = arith.constant 0 : i32
    return %c0_i32, %arg1 : i32, i32
  }
  func.func @transform_3(%arg0: i32, %arg1: i32, %arg2: i32) -> (i32, i32) {
    %c0_i32 = arith.constant 0 : i32
    return %arg0, %arg1 : i32, i32
  }
  func.func @transform_4(%arg0: i32, %arg1: i32, %arg2: i32) -> (i32, i32) {
    %c0_i32 = arith.constant 0 : i32
    return %arg0, %arg1 : i32, i32
  }
}

module attributes {stable_mosaic.version = 11 : i64} {
  func.func @_mm_kernel(%arg0: i32, %arg1: i32, %arg2: i32, %arg3: memref<32x128xbf16, #tpu.memory_space<vmem>>, %arg4: memref<128x128xbf16, #tpu.memory_space<vmem>>, %arg5: memref<1x128xf32, #tpu.memory_space<vmem>>, %arg6: memref<32x128xbf16, #tpu.memory_space<vmem>>, %arg7: memref<32x128xbf16, #tpu.memory_space<vmem>>) attributes {dimension_semantics = [#tpu.dimension_semantics<parallel>, #tpu.dimension_semantics<parallel>, #tpu.dimension_semantics<arbitrary>], iteration_bounds = array<i64: 1, 1, 1>, scalar_prefetch = 0 : i64, scratch_operands = 0 : i64, tpu.core_type = #tpu.core_type<tc>, window_params = [{transform_indices = @transform_0, window_bounds = array<i64: 32, 128>}, {transform_indices = @transform_1, window_bounds = array<i64: 128, 128>}, {transform_indices = @transform_2, window_bounds = array<i64: 1, 128>}, {transform_indices = @transform_3, window_bounds = array<i64: 32, 128>}, {transform_indices = @transform_4, window_bounds = array<i64: 32, 128>}]} {
    %c0 = arith.constant 0 : index
    %c0_0 = arith.constant 0 : index
    %0 = vector.load %arg3[%c0, %c0_0] : memref<32x128xbf16, #tpu.memory_space<vmem>>, vector<32x128xbf16>
    %c0_1 = arith.constant 0 : index
    %c0_2 = arith.constant 0 : index
    %1 = vector.load %arg4[%c0_1, %c0_2] : memref<128x128xbf16, #tpu.memory_space<vmem>>, vector<128x128xbf16>
    %cst = arith.constant dense<0.000000e+00> : vector<32x128xf32>
    %2 = tpu.matmul %0, %1, %cst {dimension_numbers = #tpu.dot_dimension_numbers<[1], [0], [0], [1], [0, 0, 1, 1], [], []>} : vector<32x128xbf16>, vector<128x128xbf16>, vector<32x128xf32> -> vector<32x128xf32>
    %c0_3 = arith.constant 0 : index
    %c0_4 = arith.constant 0 : index
    %3 = vector.load %arg5[%c0_3, %c0_4] : memref<1x128xf32, #tpu.memory_space<vmem>>, vector<1x128xf32>
    %4 = vector.broadcast %3 : vector<1x128xf32> to vector<32x128xf32>
    %5 = arith.addf %2, %4 : vector<32x128xf32>
    %c0_5 = arith.constant 0 : index
    %c0_6 = arith.constant 0 : index
    %6 = vector.load %arg6[%c0_5, %c0_6] : memref<32x128xbf16, #tpu.memory_space<vmem>>, vector<32x128xbf16>
    %7 = arith.extf %6 : vector<32x128xbf16> to vector<32x128xf32>
    %8 = arith.addf %5, %7 : vector<32x128xf32>
    %9 = arith.truncf %8 : vector<32x128xf32> to vector<32x128xbf16>
    %c0_7 = arith.constant 0 : index
    %c0_8 = arith.constant 0 : index
    %10 = vector.load %arg7[%c0_7, %c0_8] : memref<32x128xbf16, #tpu.memory_space<vmem>>, vector<32x128xbf16>
    tpu.vector_store %arg7[%c0_7, %c0_8], %9 {strides = array<i32>} : memref<32x128xbf16, #tpu.memory_space<vmem>>, vector<32x128xbf16>,
    return
  }
  func.func @transform_0(%arg0: i32, %arg1: i32, %arg2: i32) -> (i32, i32) {
    %c0_i32 = arith.constant 0 : i32
    return %arg0, %arg2 : i32, i32
  }
  func.func @transform_1(%arg0: i32, %arg1: i32, %arg2: i32) -> (i32, i32) {
    %c0_i32 = arith.constant 0 : i32
    return %arg2, %arg1 : i32, i32
  }
  func.func @transform_2(%arg0: i32, %arg1: i32, %arg2: i32) -> (i32, i32) {
    %c0_i32 = arith.constant 0 : i32
    %c0_i32_0 = arith.constant 0 : i32
    return %c0_i32, %arg1 : i32, i32
  }
  func.func @transform_3(%arg0: i32, %arg1: i32, %arg2: i32) -> (i32, i32) {
    %c0_i32 = arith.constant 0 : i32
    return %arg0, %arg1 : i32, i32
  }
  func.func @transform_4(%arg0: i32, %arg1: i32, %arg2: i32) -> (i32, i32) {
    %c0_i32 = arith.constant 0 : i32
    return %arg0, %arg1 : i32, i32
  }
}

module attributes {stable_mosaic.version = 11 : i64} {
  func.func @_mm_kernel(%arg0: i32, %arg1: i32, %arg2: i32, %arg3: memref<32x128xbf16, #tpu.memory_space<vmem>>, %arg4: memref<128x128xbf16, #tpu.memory_space<vmem>>, %arg5: memref<1x128xf32, #tpu.memory_space<vmem>>, %arg6: memref<32x128xf32, #tpu.memory_space<vmem>>) attributes {dimension_semantics = [#tpu.dimension_semantics<parallel>, #tpu.dimension_semantics<parallel>, #tpu.dimension_semantics<arbitrary>], iteration_bounds = array<i64: 1, 1, 1>, scalar_prefetch = 0 : i64, scratch_operands = 0 : i64, tpu.core_type = #tpu.core_type<tc>, window_params = [{transform_indices = @transform_0, window_bounds = array<i64: 32, 128>}, {transform_indices = @transform_1, window_bounds = array<i64: 128, 128>}, {transform_indices = @transform_2, window_bounds = array<i64: 1, 128>}, {transform_indices = @transform_3, window_bounds = array<i64: 32, 128>}]} {
    %c0 = arith.constant 0 : index
    %c0_0 = arith.constant 0 : index
    %0 = vector.load %arg3[%c0, %c0_0] : memref<32x128xbf16, #tpu.memory_space<vmem>>, vector<32x128xbf16>
    %c0_1 = arith.constant 0 : index
    %c0_2 = arith.constant 0 : index
    %1 = vector.load %arg4[%c0_1, %c0_2] : memref<128x128xbf16, #tpu.memory_space<vmem>>, vector<128x128xbf16>
    %cst = arith.constant dense<0.000000e+00> : vector<32x128xf32>
    %2 = tpu.matmul %0, %1, %cst {dimension_numbers = #tpu.dot_dimension_numbers<[1], [0], [0], [1], [0, 0, 1, 1], [], []>} : vector<32x128xbf16>, vector<128x128xbf16>, vector<32x128xf32> -> vector<32x128xf32>
    %c0_3 = arith.constant 0 : index
    %c0_4 = arith.constant 0 : index
    %3 = vector.load %arg5[%c0_3, %c0_4] : memref<1x128xf32, #tpu.memory_space<vmem>>, vector<1x128xf32>
    %4 = vector.broadcast %3 : vector<1x128xf32> to vector<32x128xf32>
    %5 = arith.addf %2, %4 : vector<32x128xf32>
    %c0_5 = arith.constant 0 : index
    %c0_6 = arith.constant 0 : index
    %6 = vector.load %arg6[%c0_5, %c0_6] : memref<32x128xf32, #tpu.memory_space<vmem>>, vector<32x128xf32>
    tpu.vector_store %arg6[%c0_5, %c0_6], %5 {strides = array<i32>} : memref<32x128xf32, #tpu.memory_space<vmem>>, vector<32x128xf32>,
    return
  }
  func.func @transform_0(%arg0: i32, %arg1: i32, %arg2: i32) -> (i32, i32) {
    %c0_i32 = arith.constant 0 : i32
    return %arg0, %arg2 : i32, i32
  }
  func.func @transform_1(%arg0: i32, %arg1: i32, %arg2: i32) -> (i32, i32) {
    %c0_i32 = arith.constant 0 : i32
    return %arg2, %arg1 : i32, i32
  }
  func.func @transform_2(%arg0: i32, %arg1: i32, %arg2: i32) -> (i32, i32) {
    %c0_i32 = arith.constant 0 : i32
    %c0_i32_0 = arith.constant 0 : i32
    return %c0_i32, %arg1 : i32, i32
  }
  func.func @transform_3(%arg0: i32, %arg1: i32, %arg2: i32) -> (i32, i32) {
    %c0_i32 = arith.constant 0 : i32
    return %arg0, %arg1 : i32, i32
  }
}

module attributes {stable_mosaic.version = 11 : i64} {
  func.func @_vq_kernel(%arg0: i32, %arg1: memref<32x128xf32, #tpu.memory_space<vmem>>, %arg2: memref<128x128xbf16, #tpu.memory_space<vmem>>, %arg3: memref<1x128xf32, #tpu.memory_space<vmem>>, %arg4: memref<32x128xf32, #tpu.memory_space<vmem>>, %arg5: memref<32x128xbf16, #tpu.memory_space<vmem>>, %arg6: memref<1x1x128xf32, #tpu.memory_space<vmem>>, %arg7: memref<1x1x128xf32, #tpu.memory_space<vmem>>) attributes {dimension_semantics = [#tpu.dimension_semantics<parallel>], iteration_bounds = array<i64: 1>, scalar_prefetch = 0 : i64, scratch_operands = 0 : i64, tpu.core_type = #tpu.core_type<tc>, window_params = [{transform_indices = @transform_0, window_bounds = array<i64: 32, 128>}, {pipeline_mode = #tpu.pipeline_mode<synchronous>, transform_indices = @transform_1, window_bounds = array<i64: 128, 128>}, {pipeline_mode = #tpu.pipeline_mode<synchronous>, transform_indices = @transform_2, window_bounds = array<i64: 1, 128>}, {transform_indices = @transform_3, window_bounds = array<i64: 32, 128>}, {transform_indices = @transform_4, window_bounds = array<i64: 32, 128>}, {transform_indices = @transform_5, window_bounds = array<i64: 1, 1, 128>}, {transform_indices = @transform_6, window_bounds = array<i64: 1, 1, 128>}]} {
    %c0 = arith.constant 0 : index
    %c0_0 = arith.constant 0 : index
    %0 = vector.load %arg1[%c0, %c0_0] : memref<32x128xf32, #tpu.memory_space<vmem>>, vector<32x128xf32>
    %c0_1 = arith.constant 0 : index
    %c0_2 = arith.constant 0 : index
    %1 = vector.load %arg2[%c0_1, %c0_2] : memref<128x128xbf16, #tpu.memory_space<vmem>>, vector<128x128xbf16>
    %2 = arith.mulf %0, %0 : vector<32x128xf32>
    %cst = arith.constant dense<0.000000e+00> : vector<32xf32>
    %3 = vector.multi_reduction <add>, %2, %cst [1] : vector<32x128xf32> to vector<32xf32>
    %4 = vector.shape_cast %3 : vector<32xf32> to vector<32x1xf32>
    %5 = arith.truncf %0 : vector<32x128xf32> to vector<32x128xbf16>
    %cst_3 = arith.constant dense<0.000000e+00> : vector<32x128xf32>
    %6 = tpu.matmul %5, %1, %cst_3 {dimension_numbers = #tpu.dot_dimension_numbers<[1], [1], [0], [0], [0, 0, 1, 0], [], []>} : vector<32x128xbf16>, vector<128x128xbf16>, vector<32x128xf32> -> vector<32x128xf32>
    %c0_4 = arith.constant 0 : index
    %c0_5 = arith.constant 0 : index
    %7 = vector.load %arg3[%c0_4, %c0_5] : memref<1x128xf32, #tpu.memory_space<vmem>>, vector<1x128xf32>
    %8 = vector.broadcast %4 : vector<32x1xf32> to vector<32x128xf32>
    %9 = vector.broadcast %7 : vector<1x128xf32> to vector<32x128xf32>
    %10 = arith.addf %8, %9 : vector<32x128xf32>
    %cst_6 = arith.constant 2.000000e+00 : f32
    %11 = vector.broadcast %cst_6 : f32 to vector<32x128xf32>
    %12 = arith.mulf %11, %6 : vector<32x128xf32>
    %13 = arith.subf %10, %12 : vector<32x128xf32>
    %14 = tpu.iota {dimensions = array<i32: 1>} : vector<32x128xi32>
    %c64_i32 = arith.constant 64 : i32
    %15 = vector.broadcast %c64_i32 : i32 to vector<32x128xi32>
    %16 = arith.cmpi slt, %14, %15 : vector<32x128xi32>
    %cst_7 = arith.constant 1.000000e+30 : f32
    %17 = vector.broadcast %cst_7 : f32 to vector<32x128xf32>
    %18 = arith.select %16, %13, %17 : vector<32x128xi1>, vector<32x128xf32>
    %cst_8 = arith.constant dense<0x7F800000> : vector<32xf32>
    %19 = vector.multi_reduction <minimumf>, %18, %cst_8 [1] : vector<32x128xf32> to vector<32xf32>
    %20 = vector.shape_cast %19 : vector<32xf32> to vector<32x1xf32>
    %21 = vector.broadcast %20 : vector<32x1xf32> to vector<32x128xf32>
    %22 = arith.cmpf ole, %18, %21 : vector<32x128xf32>
    %c128_i32 = arith.constant 128 : i32
    %23 = vector.broadcast %c128_i32 : i32 to vector<32x128xi32>
    %24 = arith.select %22, %14, %23 : vector<32x128xi1>, vector<32x128xi32>
    %cst_9 = arith.constant dense<2147483647> : vector<32xi32>
    %25 = vector.multi_reduction <minsi>, %24, %cst_9 [1] : vector<32x128xi32> to vector<32xi32>
    %26 = vector.shape_cast %25 : vector<32xi32> to vector<32x1xi32>
    %27 = vector.broadcast %26 : vector<32x1xi32> to vector<32x128xi32>
    %28 = arith.cmpi eq, %14, %27 : vector<32x128xi32>
    %29 = arith.extui %28 : vector<32x128xi1> to vector<32x128xi32>
    %30 = arith.sitofp %29 : vector<32x128xi32> to vector<32x128xf32>
    %31 = arith.truncf %30 : vector<32x128xf32> to vector<32x128xbf16>
    %cst_10 = arith.constant dense<0.000000e+00> : vector<32x128xf32>
    %32 = tpu.matmul %31, %1, %cst_10 {dimension_numbers = #tpu.dot_dimension_numbers<[1], [0], [0], [1], [0, 0, 1, 1], [], []>} : vector<32x128xbf16>, vector<128x128xbf16>, vector<32x128xf32> -> vector<32x128xf32>
    %c0_11 = arith.constant 0 : index
    %c0_12 = arith.constant 0 : index
    %33 = vector.load %arg4[%c0_11, %c0_12] : memref<32x128xf32, #tpu.memory_space<vmem>>, vector<32x128xf32>
    tpu.vector_store %arg4[%c0_11, %c0_12], %32 {strides = array<i32>} : memref<32x128xf32, #tpu.memory_space<vmem>>, vector<32x128xf32>,
    %34 = arith.truncf %32 : vector<32x128xf32> to vector<32x128xbf16>
    %c0_13 = arith.constant 0 : index
    %c0_14 = arith.constant 0 : index
    %35 = vector.load %arg5[%c0_13, %c0_14] : memref<32x128xbf16, #tpu.memory_space<vmem>>, vector<32x128xbf16>
    tpu.vector_store %arg5[%c0_13, %c0_14], %34 {strides = array<i32>} : memref<32x128xbf16, #tpu.memory_space<vmem>>, vector<32x128xbf16>,
    %36 = tpu.iota {dimensions = array<i32: 0>} : vector<32x1xi32>
    %c32_i32 = arith.constant 32 : i32
    %37 = arith.muli %arg0, %c32_i32 : i32
    %38 = vector.broadcast %37 : i32 to vector<32x1xi32>
    %39 = arith.addi %36, %38 : vector<32x1xi32>
    %c32_i32_15 = arith.constant 32 : i32
    %40 = vector.broadcast %c32_i32_15 : i32 to vector<32x1xi32>
    %41 = arith.cmpi slt, %39, %40 : vector<32x1xi32>
    %42 = arith.extui %41 : vector<32x1xi1> to vector<32x1xi32>
    %43 = arith.sitofp %42 : vector<32x1xi32> to vector<32x1xf32>
    %44 = arith.subf %32, %0 : vector<32x128xf32>
    %45 = arith.mulf %44, %44 : vector<32x128xf32>
    %cst_16 = arith.constant dense<0.000000e+00> : vector<32xf32>
    %46 = vector.multi_reduction <add>, %45, %cst_16 [1] : vector<32x128xf32> to vector<32xf32>
    %47 = vector.shape_cast %46 : vector<32xf32> to vector<32x1xf32>
    %48 = arith.mulf %47, %43 : vector<32x1xf32>
    %cst_17 = arith.constant dense<0.000000e+00> : vector<1xf32>
    %49 = vector.multi_reduction <add>, %48, %cst_17 [0] : vector<32x1xf32> to vector<1xf32>
    %50 = vector.shape_cast %49 : vector<1xf32> to vector<1x1xf32>
    %51 = vector.broadcast %43 : vector<32x1xf32> to vector<32x128xf32>
    %52 = arith.mulf %30, %51 : vector<32x128xf32>
    %cst_18 = arith.constant dense<0.000000e+00> : vector<128xf32>
    %53 = vector.multi_reduction <add>, %52, %cst_18 [0] : vector<32x128xf32> to vector<128xf32>
    %54 = vector.shape_cast %53 : vector<128xf32> to vector<1x128xf32>
    %55 = vector.shape_cast %54 : vector<1x128xf32> to vector<1x1x128xf32>
    %c0_19 = arith.constant 0 : index
    %c0_20 = arith.constant 0 : index
    %c0_21 = arith.constant 0 : index
    %56 = vector.load %arg6[%c0_19, %c0_20, %c0_21] : memref<1x1x128xf32, #tpu.memory_space<vmem>>, vector<1x1x128xf32>
    tpu.vector_store %arg6[%c0_19, %c0_20, %c0_21], %55 {strides = array<i32>} : memref<1x1x128xf32, #tpu.memory_space<vmem>>, vector<1x1x128xf32>,
    %57 = vector.shape_cast %50 : vector<1x1xf32> to vector<1x1x1xf32>
    %58 = vector.shape_cast %57 : vector<1x1x1xf32> to vector<1x1x1xf32>
    %59 = vector.broadcast %58 : vector<1x1x1xf32> to vector<1x1x128xf32>
    %c0_22 = arith.constant 0 : index
    %c0_23 = arith.constant 0 : index
    %c0_24 = arith.constant 0 : index
    %60 = vector.load %arg7[%c0_22, %c0_23, %c0_24] : memref<1x1x128xf32, #tpu.memory_space<vmem>>, vector<1x1x128xf32>
    tpu.vector_store %arg7[%c0_22, %c0_23, %c0_24], %59 {strides = array<i32>} : memref<1x1x128xf32, #tpu.memory_space<vmem>>, vector<1x1x128xf32>,
    return
  }
  func.func @transform_0(%arg0: i32) -> (i32, i32) {
    %c0_i32 = arith.constant 0 : i32
    %c0_i32_0 = arith.constant 0 : i32
    return %arg0, %c0_i32 : i32, i32
  }
  func.func @transform_1(%arg0: i32) -> (i32, i32) {
    %c0_i32 = arith.constant 0 : i32
    %c0_i32_0 = arith.constant 0 : i32
    %c0_i32_1 = arith.constant 0 : i32
    return %c0_i32, %c0_i32_0 : i32, i32
  }
  func.func @transform_2(%arg0: i32) -> (i32, i32) {
    %c0_i32 = arith.constant 0 : i32
    %c0_i32_0 = arith.constant 0 : i32
    %c0_i32_1 = arith.constant 0 : i32
    return %c0_i32, %c0_i32_0 : i32, i32
  }
  func.func @transform_3(%arg0: i32) -> (i32, i32) {
    %c0_i32 = arith.constant 0 : i32
    %c0_i32_0 = arith.constant 0 : i32
    return %arg0, %c0_i32 : i32, i32
  }
  func.func @transform_4(%arg0: i32) -> (i32, i32) {
    %c0_i32 = arith.constant 0 : i32
    %c0_i32_0 = arith.constant 0 : i32
    return %arg0, %c0_i32 : i32, i32
  }
  func.func @transform_5(%arg0: i32) -> (i32, i32, i32) {
    %c0_i32 = arith.constant 0 : i32
    %c0_i32_0 = arith.constant 0 : i32
    %c0_i32_1 = arith.constant 0 : i32
    return %arg0, %c0_i32, %c0_i32_0 : i32, i32, i32
  }
  func.func @transform_6(%arg0: i32) -> (i32, i32, i32) {
    %c0_i32 = arith.constant 0 : i32
    %c0_i32_0 = arith.constant 0 : i32
    %c0_i32_1 = arith.constant 0 : i32
    return %arg0, %c0_i32, %c0_i32_0 : i32, i32, i32
  }
}

module attributes {stable_mosaic.version = 11 : i64} {
  func.func @_mm_kernel(%arg0: i32, %arg1: i32, %arg2: i32, %arg3: memref<32x256xbf16, #tpu.memory_space<vmem>>, %arg4: memref<256x128xbf16, #tpu.memory_space<vmem>>, %arg5: memref<1x128xf32, #tpu.memory_space<vmem>>, %arg6: memref<32x128xbf16, #tpu.memory_space<vmem>>) attributes {dimension_semantics = [#tpu.dimension_semantics<parallel>, #tpu.dimension_semantics<parallel>, #tpu.dimension_semantics<arbitrary>], iteration_bounds = array<i64: 1, 1, 1>, scalar_prefetch = 0 : i64, scratch_operands = 0 : i64, tpu.core_type = #tpu.core_type<tc>, window_params = [{transform_indices = @transform_0, window_bounds = array<i64: 32, 256>}, {transform_indices = @transform_1, window_bounds = array<i64: 256, 128>}, {transform_indices = @transform_2, window_bounds = array<i64: 1, 128>}, {transform_indices = @transform_3, window_bounds = array<i64: 32, 128>}]} {
    %c0 = arith.constant 0 : index
    %c0_0 = arith.constant 0 : index
    %0 = vector.load %arg3[%c0, %c0_0] : memref<32x256xbf16, #tpu.memory_space<vmem>>, vector<32x256xbf16>
    %c0_1 = arith.constant 0 : index
    %c0_2 = arith.constant 0 : index
    %1 = vector.load %arg4[%c0_1, %c0_2] : memref<256x128xbf16, #tpu.memory_space<vmem>>, vector<256x128xbf16>
    %cst = arith.constant dense<0.000000e+00> : vector<32x128xf32>
    %2 = tpu.matmul %0, %1, %cst {dimension_numbers = #tpu.dot_dimension_numbers<[1], [0], [0], [1], [0, 0, 1, 1], [], []>} : vector<32x256xbf16>, vector<256x128xbf16>, vector<32x128xf32> -> vector<32x128xf32>
    %c0_3 = arith.constant 0 : index
    %c0_4 = arith.constant 0 : index
    %3 = vector.load %arg5[%c0_3, %c0_4] : memref<1x128xf32, #tpu.memory_space<vmem>>, vector<1x128xf32>
    %4 = vector.broadcast %3 : vector<1x128xf32> to vector<32x128xf32>
    %5 = arith.addf %2, %4 : vector<32x128xf32>
    %6 = arith.truncf %5 : vector<32x128xf32> to vector<32x128xbf16>
    %c0_5 = arith.constant 0 : index
    %c0_6 = arith.constant 0 : index
    %7 = vector.load %arg6[%c0_5, %c0_6] : memref<32x128xbf16, #tpu.memory_space<vmem>>, vector<32x128xbf16>
    tpu.vector_store %arg6[%c0_5, %c0_6], %6 {strides = array<i32>} : memref<32x128xbf16, #tpu.memory_space<vmem>>, vector<32x128xbf16>,
    return
  }
  func.func @transform_0(%arg0: i32, %arg1: i32, %arg2: i32) -> (i32, i32) {
    %c0_i32 = arith.constant 0 : i32
    return %arg0, %arg2 : i32, i32
  }
  func.func @transform_1(%arg0: i32, %arg1: i32, %arg2: i32) -> (i32, i32) {
    %c0_i32 = arith.constant 0 : i32
    return %arg2, %arg1 : i32, i32
  }
  func.func @transform_2(%arg0: i32, %arg1: i32, %arg2: i32) -> (i32, i32) {
    %c0_i32 = arith.constant 0 : i32
    %c0_i32_0 = arith.constant 0 : i32
    return %c0_i32, %arg1 : i32, i32
  }
  func.func @transform_3(%arg0: i32, %arg1: i32, %arg2: i32) -> (i32, i32) {
    %c0_i32 = arith.constant 0 : i32
    return %arg0, %arg1 : i32, i32
  }
}

module attributes {stable_mosaic.version = 11 : i64} {
  func.func @_mm_kernel(%arg0: i32, %arg1: i32, %arg2: i32, %arg3: memref<32x384xbf16, #tpu.memory_space<vmem>>, %arg4: memref<384x128xbf16, #tpu.memory_space<vmem>>, %arg5: memref<1x128xf32, #tpu.memory_space<vmem>>, %arg6: memref<32x128xbf16, #tpu.memory_space<vmem>>) attributes {dimension_semantics = [#tpu.dimension_semantics<parallel>, #tpu.dimension_semantics<parallel>, #tpu.dimension_semantics<arbitrary>], iteration_bounds = array<i64: 1, 1, 1>, scalar_prefetch = 0 : i64, scratch_operands = 0 : i64, tpu.core_type = #tpu.core_type<tc>, window_params = [{transform_indices = @transform_0, window_bounds = array<i64: 32, 384>}, {transform_indices = @transform_1, window_bounds = array<i64: 384, 128>}, {transform_indices = @transform_2, window_bounds = array<i64: 1, 128>}, {transform_indices = @transform_3, window_bounds = array<i64: 32, 128>}]} {
    %c0 = arith.constant 0 : index
    %c0_0 = arith.constant 0 : index
    %0 = vector.load %arg3[%c0, %c0_0] : memref<32x384xbf16, #tpu.memory_space<vmem>>, vector<32x384xbf16>
    %c0_1 = arith.constant 0 : index
    %c0_2 = arith.constant 0 : index
    %1 = vector.load %arg4[%c0_1, %c0_2] : memref<384x128xbf16, #tpu.memory_space<vmem>>, vector<384x128xbf16>
    %cst = arith.constant dense<0.000000e+00> : vector<32x128xf32>
    %2 = tpu.matmul %0, %1, %cst {dimension_numbers = #tpu.dot_dimension_numbers<[1], [0], [0], [1], [0, 0, 1, 1], [], []>} : vector<32x384xbf16>, vector<384x128xbf16>, vector<32x128xf32> -> vector<32x128xf32>
    %c0_3 = arith.constant 0 : index
    %c0_4 = arith.constant 0 : index
    %3 = vector.load %arg5[%c0_3, %c0_4] : memref<1x128xf32, #tpu.memory_space<vmem>>, vector<1x128xf32>
    %4 = vector.broadcast %3 : vector<1x128xf32> to vector<32x128xf32>
    %5 = arith.addf %2, %4 : vector<32x128xf32>
    %cst_5 = arith.constant 0.000000e+00 : f32
    %6 = vector.broadcast %cst_5 : f32 to vector<32x128xf32>
    %7 = arith.maximumf %5, %6 : vector<32x128xf32>
    %8 = arith.truncf %7 : vector<32x128xf32> to vector<32x128xbf16>
    %c0_6 = arith.constant 0 : index
    %c0_7 = arith.constant 0 : index
    %9 = vector.load %arg6[%c0_6, %c0_7] : memref<32x128xbf16, #tpu.memory_space<vmem>>, vector<32x128xbf16>
    tpu.vector_store %arg6[%c0_6, %c0_7], %8 {strides = array<i32>} : memref<32x128xbf16, #tpu.memory_space<vmem>>, vector<32x128xbf16>,
    return
  }
  func.func @transform_0(%arg0: i32, %arg1: i32, %arg2: i32) -> (i32, i32) {
    %c0_i32 = arith.constant 0 : i32
    return %arg0, %arg2 : i32, i32
  }
  func.func @transform_1(%arg0: i32, %arg1: i32, %arg2: i32) -> (i32, i32) {
    %c0_i32 = arith.constant 0 : i32
    return %arg2, %arg1 : i32, i32
  }
  func.func @transform_2(%arg0: i32, %arg1: i32, %arg2: i32) -> (i32, i32) {
    %c0_i32 = arith.constant 0 : i32
    %c0_i32_0 = arith.constant 0 : i32
    return %c0_i32, %arg1 : i32, i32
  }
  func.func @transform_3(%arg0: i32, %arg1: i32, %arg2: i32) -> (i32, i32) {
    %c0_i32 = arith.constant 0 : i32
    return %arg0, %arg1 : i32, i32
  }
}

module attributes {stable_mosaic.version = 11 : i64} {
  func.func @_mm_kernel(%arg0: i32, %arg1: i32, %arg2: i32, %arg3: memref<128x256xbf16, #tpu.memory_space<vmem>>, %arg4: memref<256x128xbf16, #tpu.memory_space<vmem>>, %arg5: memref<1x128xf32, #tpu.memory_space<vmem>>, %arg6: memref<128x128xf32, #tpu.memory_space<vmem>>) attributes {dimension_semantics = [#tpu.dimension_semantics<parallel>, #tpu.dimension_semantics<parallel>, #tpu.dimension_semantics<arbitrary>], iteration_bounds = array<i64: 1, 1, 1>, scalar_prefetch = 0 : i64, scratch_operands = 0 : i64, tpu.core_type = #tpu.core_type<tc>, window_params = [{transform_indices = @transform_0, window_bounds = array<i64: 128, 256>}, {transform_indices = @transform_1, window_bounds = array<i64: 256, 128>}, {transform_indices = @transform_2, window_bounds = array<i64: 1, 128>}, {transform_indices = @transform_3, window_bounds = array<i64: 128, 128>}]} {
    %c0 = arith.constant 0 : index
    %c0_0 = arith.constant 0 : index
    %0 = vector.load %arg3[%c0, %c0_0] : memref<128x256xbf16, #tpu.memory_space<vmem>>, vector<128x256xbf16>
    %c0_1 = arith.constant 0 : index
    %c0_2 = arith.constant 0 : index
    %1 = vector.load %arg4[%c0_1, %c0_2] : memref<256x128xbf16, #tpu.memory_space<vmem>>, vector<256x128xbf16>
    %cst = arith.constant dense<0.000000e+00> : vector<128x128xf32>
    %2 = tpu.matmul %0, %1, %cst {dimension_numbers = #tpu.dot_dimension_numbers<[1], [0], [0], [1], [0, 0, 1, 1], [], []>} : vector<128x256xbf16>, vector<256x128xbf16>, vector<128x128xf32> -> vector<128x128xf32>
    %c0_3 = arith.constant 0 : index
    %c0_4 = arith.constant 0 : index
    %3 = vector.load %arg5[%c0_3, %c0_4] : memref<1x128xf32, #tpu.memory_space<vmem>>, vector<1x128xf32>
    %4 = vector.broadcast %3 : vector<1x128xf32> to vector<128x128xf32>
    %5 = arith.addf %2, %4 : vector<128x128xf32>
    %c0_5 = arith.constant 0 : index
    %c0_6 = arith.constant 0 : index
    %6 = vector.load %arg6[%c0_5, %c0_6] : memref<128x128xf32, #tpu.memory_space<vmem>>, vector<128x128xf32>
    tpu.vector_store %arg6[%c0_5, %c0_6], %5 {strides = array<i32>} : memref<128x128xf32, #tpu.memory_space<vmem>>, vector<128x128xf32>,
    return
  }
  func.func @transform_0(%arg0: i32, %arg1: i32, %arg2: i32) -> (i32, i32) {
    %c0_i32 = arith.constant 0 : i32
    return %arg0, %arg2 : i32, i32
  }
  func.func @transform_1(%arg0: i32, %arg1: i32, %arg2: i32) -> (i32, i32) {
    %c0_i32 = arith.constant 0 : i32
    return %arg2, %arg1 : i32, i32
  }
  func.func @transform_2(%arg0: i32, %arg1: i32, %arg2: i32) -> (i32, i32) {
    %c0_i32 = arith.constant 0 : i32
    %c0_i32_0 = arith.constant 0 : i32
    return %c0_i32, %arg1 : i32, i32
  }
  func.func @transform_3(%arg0: i32, %arg1: i32, %arg2: i32) -> (i32, i32) {
    %c0_i32 = arith.constant 0 : i32
    return %arg0, %arg1 : i32, i32
  }
}

</mosaic_0001>

<llo_original>
// kernel: vqvae_forward.33
$region0: #{vqvae_forward.33}
  #allocation0 [shape = 'u32[]', space=smem, size = 0x4, offset = 0x4, fixed_abs, tag = 'smem constant byte address 0x4 - core index']
  #allocation1 [shape = 'u32[144,128]{1,0:T(1,128)}', space=vmem, size = 0x12000, scoped, tag = 'internal scratch']
  #allocation2 [shape = 'u32[2048]{0}', space=vmem, size = 0x2000, scoped, tag = 'scoped memory for vqvae_forward.33']
  #allocation3 [shape = 'u32[2048]{0}', space=vmem, size = 0x2000, scoped, tag = 'scoped memory for vqvae_forward.33']
  #allocation4 [shape = 'u32[2048]{0}', space=vmem, size = 0x2000, scoped, tag = 'scoped memory for vqvae_forward.33']
  #allocation5 [shape = 'u32[2048]{0}', space=vmem, size = 0x2000, scoped, tag = 'scoped memory for vqvae_forward.33']
  #allocation6 [shape = 'u32[2048]{0}', space=vmem, size = 0x2000, scoped, tag = 'scoped memory for vqvae_forward.33']
  %s0 = inlined_call_operand.vmem [shape: bf16[128,128], index: 0, kind: input, shape index: {}]
  %s1 = inlined_call_operand.vmem [shape: f32[1,128], index: 1, kind: input, shape index: {}]
  %s2 = inlined_call_operand.vmem [shape: bf16[128,48], index: 2, kind: input, shape index: {}]
  %s3 = inlined_call_operand.<no memory space> [shape: bf16[], index: 3, kind: input, shape index: {}]
  %s4 = inlined_call_operand.vmem [shape: bf16[128,128], index: 4, kind: output, shape index: {}]
  %s5 = sld [smem:[#allocation0]]
  $region22: #{vqvae_forward.33} parent=0
    _
  %s7 = ssub.s32 1, %s5
  %s8 = scalar_select 0, %s7, %s5
  %v9 = vstv %s3
  %v10 = vunpack.i.l.bf16 %v9
  %v12 = vunpack.i.h.bf16 %v9
  $region1: #{vqvae_forward.33} parent=0
    #allocation7 [shape = 'u8[32768]{0}', space=vmem, size = 0x8000, dematerialized = true, scoped, tag = 'FusionAdapter Buffer %fusion.4 = bf16[128,128]{1,0:T(8,128)(2,1)} fusion(%param_2.3, %param_3.1), kind=kLoop, calls=%fused_computation.71.clone, metadata={op_name="jit(vqvae_forward)/jit(_pad)/pad" stack_frame_id=30}']
    // Predicated region
    $region2: #{vqvae_forward.33} parent=1 // pred_check
      _
    $region3: #{vqvae_forward.33} parent=1 // pred_check_branch
      %15 = sbr.rel (0) target = $region5
    $region4: #{vqvae_forward.33} parent=1 // pred_region
      _
    $region5: #{vqvae_forward.33} parent=1 // pred_fallthru
      _
    // Predicated region
    $region6: #{vqvae_forward.33} parent=1 // pred_check
      _
    $region7: #{vqvae_forward.33} parent=1 // pred_check_branch
      %17 = sbr.rel (0) target = $region9
    $region8: #{vqvae_forward.33} parent=1 // pred_region
      _
    $region9: #{vqvae_forward.33} parent=1 // pred_fallthru
      _
    // Predicated region
    $region10: #{vqvae_forward.33} parent=1 // pred_check
      _
    $region11: #{vqvae_forward.33} parent=1 // pred_check_branch
      %19 = sbr.rel (0) target = $region13
    $region12: #{vqvae_forward.33} parent=1 // pred_region
      _
    $region13: #{vqvae_forward.33} parent=1 // pred_fallthru
      _
    %s21 = sor.u32 255, 127
    %s22 = sand.u32 %s21, 85
    %s23 = sshrl.u32 %s22, 1
    %s24 = sor.u32 %s22, %s23
    %s25 = sand.u32 51, %s24
    %s26 = sshrl.u32 %s25, 2
    %s27 = sor.u32 %s25, %s26
    %s28 = sand.u32 15, %s27
    %v29 = vld [vmem:[%s2] sm:%s28]
    %v30 = vunpack.c.l.bf16 %v29
    %v31 = vunpack.c.h.bf16 %v29
    %v32 = vlaneseq
    %v33 = vand.u32 %v32, 127
    %vm35 = vcmp.lt.s32.totalorder %v33, 48
    %v36 = vsel %vm35, %v30, %v10
    %v37 = vpack.c.bf16 0.0, %v36
    %39 = vst [vmem:[#allocation7] sm:$0xf] %v37
    %s40 = scalar_lea.vmem %s2, 4
    %s42 = sor.u32 255, 127
    %s43 = sand.u32 %s42, 85
    %s44 = sshrl.u32 %s43, 1
    %s45 = sor.u32 %s43, %s44
    %s46 = sand.u32 51, %s45
    %s47 = sshrl.u32 %s46, 2
    %s48 = sor.u32 %s46, %s47
    %s49 = sand.u32 15, %s48
    %v50 = vld [vmem:[%s40] sm:%s49]
    %v51 = vunpack.c.l.bf16 %v50
    %v52 = vunpack.c.h.bf16 %v50
    %v53 = vlaneseq
    %v54 = vand.u32 %v53, 127
    %vm56 = vcmp.lt.s32.totalorder %v54, 48
    %v57 = vsel %vm56, %v51, %v10
    %s58 = scalar_lea.vmem [#allocation7], 4
    %v59 = vpack.c.bf16 0.0, %v57
    %61 = vst [vmem:[%s58] sm:$0xf] %v59
    %s62 = scalar_lea.vmem %s2, 8
    %s64 = sor.u32 255, 127
    %s65 = sand.u32 %s64, 85
    %s66 = sshrl.u32 %s65, 1
    %s67 = sor.u32 %s65, %s66
    %s68 = sand.u32 51, %s67
    %s69 = sshrl.u32 %s68, 2
    %s70 = sor.u32 %s68, %s69
    %s71 = sand.u32 15, %s70
    %v72 = vld [vmem:[%s62] sm:%s71]
    %v73 = vunpack.c.l.bf16 %v72
    %v74 = vunpack.c.h.bf16 %v72
    %v75 = vlaneseq
    %v76 = vand.u32 %v75, 127
    %vm78 = vcmp.lt.s32.totalorder %v76, 48
    %v79 = vsel %vm78, %v73, %v10
    %s80 = scalar_lea.vmem [#allocation7], 8
    %v81 = vpack.c.bf16 0.0, %v79
    %83 = vst [vmem:[%s80] sm:$0xf] %v81
    %s84 = scalar_lea.vmem %s2, 12
    %s86 = sor.u32 255, 127
    %s87 = sand.u32 %s86, 85
    %s88 = sshrl.u32 %s87, 1
    %s89 = sor.u32 %s87, %s88
    %s90 = sand.u32 51, %s89
    %s91 = sshrl.u32 %s90, 2
    %s92 = sor.u32 %s90, %s91
    %s93 = sand.u32 15, %s92
    %v94 = vld [vmem:[%s84] sm:%s93]
    %v95 = vunpack.c.l.bf16 %v94
    %v96 = vunpack.c.h.bf16 %v94
    %v97 = vlaneseq
    %v98 = vand.u32 %v97, 127
    %vm100 = vcmp.lt.s32.totalorder %v98, 48
    %v101 = vsel %vm100, %v95, %v10
    %s102 = scalar_lea.vmem [#allocation7], 12
    %v103 = vpack.c.bf16 0.0, %v101
    %105 = vst [vmem:[%s102] sm:$0xf] %v103
    %s106 = scalar_lea.vmem %s2, 16
    %s108 = sor.u32 255, 127
    %s109 = sand.u32 %s108, 85
    %s110 = sshrl.u32 %s109, 1
    %s111 = sor.u32 %s109, %s110
    %s112 = sand.u32 51, %s111
    %s113 = sshrl.u32 %s112, 2
    %s114 = sor.u32 %s112, %s113
    %s115 = sand.u32 15, %s114
    %v116 = vld [vmem:[%s106] sm:%s115]
    %v117 = vunpack.c.l.bf16 %v116
    %v118 = vunpack.c.h.bf16 %v116
    %v119 = vlaneseq
    %v120 = vand.u32 %v119, 127
    %vm122 = vcmp.lt.s32.totalorder %v120, 48
    %v123 = vsel %vm122, %v117, %v10
    %s124 = scalar_lea.vmem [#allocation7], 16
    %v125 = vpack.c.bf16 0.0, %v123
    %127 = vst [vmem:[%s124] sm:$0xf] %v125
    %s128 = scalar_lea.vmem %s2, 20
    %s130 = sor.u32 255, 127
    %s131 = sand.u32 %s130, 85
    %s132 = sshrl.u32 %s131, 1
    %s133 = sor.u32 %s131, %s132
    %s134 = sand.u32 51, %s133
    %s135 = sshrl.u32 %s134, 2
    %s136 = sor.u32 %s134, %s135
    %s137 = sand.u32 15, %s136
    %v138 = vld [vmem:[%s128] sm:%s137]
    %v139 = vunpack.c.l.bf16 %v138
    %v140 = vunpack.c.h.bf16 %v138
    %v141 = vlaneseq
    %v142 = vand.u32 %v141, 127
    %vm144 = vcmp.lt.s32.totalorder %v142, 48
    %v145 = vsel %vm144, %v139, %v10
    %s146 = scalar_lea.vmem [#allocation7], 20
    %v147 = vpack.c.bf16 0.0, %v145
    %149 = vst [vmem:[%s146] sm:$0xf] %v147
    %s150 = scalar_lea.vmem %s2, 24
    %s152 = sor.u32 255, 127
    %s153 = sand.u32 %s152, 85
    %s154 = sshrl.u32 %s153, 1
    %s155 = sor.u32 %s153, %s154
    %s156 = sand.u32 51, %s155
    %s157 = sshrl.u32 %s156, 2
    %s158 = sor.u32 %s156, %s157
    %s159 = sand.u32 15, %s158
    %v160 = vld [vmem:[%s150] sm:%s159]
    %v161 = vunpack.c.l.bf16 %v160
    %v162 = vunpack.c.h.bf16 %v160
    %v163 = vlaneseq
    %v164 = vand.u32 %v163, 127
    %vm166 = vcmp.lt.s32.totalorder %v164, 48
    %v167 = vsel %vm166, %v161, %v10
    %s168 = scalar_lea.vmem [#allocation7], 24
    %v169 = vpack.c.bf16 0.0, %v167
    %171 = vst [vmem:[%s168] sm:$0xf] %v169
    %s172 = scalar_lea.vmem %s2, 28
    %s174 = sor.u32 255, 127
    %s175 = sand.u32 %s174, 85
    %s176 = sshrl.u32 %s175, 1
    %s177 = sor.u32 %s175, %s176
    %s178 = sand.u32 51, %s177
    %s179 = sshrl.u32 %s178, 2
    %s180 = sor.u32 %s178, %s179
    %s181 = sand.u32 15, %s180
    %v182 = vld [vmem:[%s172] sm:%s181]
    %v183 = vunpack.c.l.bf16 %v182
    %v184 = vunpack.c.h.bf16 %v182
    %v185 = vlaneseq
    %v186 = vand.u32 %v185, 127
    %vm188 = vcmp.lt.s32.totalorder %v186, 48
    %v189 = vsel %vm188, %v183, %v10
    %s190 = scalar_lea.vmem [#allocation7], 28
    %v191 = vpack.c.bf16 0.0, %v189
    %193 = vst [vmem:[%s190] sm:$0xf] %v191
    %s194 = scalar_lea.vmem %s2, 32
    %s196 = sor.u32 255, 127
    %s197 = sand.u32 %s196, 85
    %s198 = sshrl.u32 %s197, 1
    %s199 = sor.u32 %s197, %s198
    %s200 = sand.u32 51, %s199
    %s201 = sshrl.u32 %s200, 2
    %s202 = sor.u32 %s200, %s201
    %s203 = sand.u32 15, %s202
    %v204 = vld [vmem:[%s194] sm:%s203]
    %v205 = vunpack.c.l.bf16 %v204
    %v206 = vunpack.c.h.bf16 %v204
    %v207 = vlaneseq
    %v208 = vand.u32 %v207, 127
    %vm210 = vcmp.lt.s32.totalorder %v208, 48
    %v211 = vsel %vm210, %v205, %v10
    %s212 = scalar_lea.vmem [#allocation7], 32
    %v213 = vpack.c.bf16 0.0, %v211
    %215 = vst [vmem:[%s212] sm:$0xf] %v213
    %s216 = scalar_lea.vmem %s2, 36
    %s218 = sor.u32 255, 127
    %s219 = sand.u32 %s218, 85
    %s220 = sshrl.u32 %s219, 1
    %s221 = sor.u32 %s219, %s220
    %s222 = sand.u32 51, %s221
    %s223 = sshrl.u32 %s222, 2
    %s224 = sor.u32 %s222, %s223
    %s225 = sand.u32 15, %s224
    %v226 = vld [vmem:[%s216] sm:%s225]
    %v227 = vunpack.c.l.bf16 %v226
    %v228 = vunpack.c.h.bf16 %v226
    %v229 = vlaneseq
    %v230 = vand.u32 %v229, 127
    %vm232 = vcmp.lt.s32.totalorder %v230, 48
    %v233 = vsel %vm232, %v227, %v10
    %s234 = scalar_lea.vmem [#allocation7], 36
    %v235 = vpack.c.bf16 0.0, %v233
    %237 = vst [vmem:[%s234] sm:$0xf] %v235
    %s238 = scalar_lea.vmem %s2, 40
    %s240 = sor.u32 255, 127
    %s241 = sand.u32 %s240, 85
    %s242 = sshrl.u32 %s241, 1
    %s243 = sor.u32 %s241, %s242
    %s244 = sand.u32 51, %s243
    %s245 = sshrl.u32 %s244, 2
    %s246 = sor.u32 %s244, %s245
    %s247 = sand.u32 15, %s246
    %v248 = vld [vmem:[%s238] sm:%s247]
    %v249 = vunpack.c.l.bf16 %v248
    %v250 = vunpack.c.h.bf16 %v248
    %v251 = vlaneseq
    %v252 = vand.u32 %v251, 127
    %vm254 = vcmp.lt.s32.totalorder %v252, 48
    %v255 = vsel %vm254, %v249, %v10
    %s256 = scalar_lea.vmem [#allocation7], 40
    %v257 = vpack.c.bf16 0.0, %v255
    %259 = vst [vmem:[%s256] sm:$0xf] %v257
    %s260 = scalar_lea.vmem %s2, 44
    %s262 = sor.u32 255, 127
    %s263 = sand.u32 %s262, 85
    %s264 = sshrl.u32 %s263, 1
    %s265 = sor.u32 %s263, %s264
    %s266 = sand.u32 51, %s265
    %s267 = sshrl.u32 %s266, 2
    %s268 = sor.u32 %s266, %s267
    %s269 = sand.u32 15, %s268
    %v270 = vld [vmem:[%s260] sm:%s269]
    %v271 = vunpack.c.l.bf16 %v270
    %v272 = vunpack.c.h.bf16 %v270
    %v273 = vlaneseq
    %v274 = vand.u32 %v273, 127
    %vm276 = vcmp.lt.s32.totalorder %v274, 48
    %v277 = vsel %vm276, %v271, %v10
    %s278 = scalar_lea.vmem [#allocation7], 44
    %v279 = vpack.c.bf16 0.0, %v277
    %281 = vst [vmem:[%s278] sm:$0xf] %v279
    %s282 = scalar_lea.vmem %s2, 48
    %s284 = sor.u32 255, 127
    %s285 = sand.u32 %s284, 85
    %s286 = sshrl.u32 %s285, 1
    %s287 = sor.u32 %s285, %s286
    %s288 = sand.u32 51, %s287
    %s289 = sshrl.u32 %s288, 2
    %s290 = sor.u32 %s288, %s289
    %s291 = sand.u32 15, %s290
    %v292 = vld [vmem:[%s282] sm:%s291]
    %v293 = vunpack.c.l.bf16 %v292
    %v294 = vunpack.c.h.bf16 %v292
    %v295 = vlaneseq
    %v296 = vand.u32 %v295, 127
    %vm298 = vcmp.lt.s32.totalorder %v296, 48
    %v299 = vsel %vm298, %v293, %v10
    %s300 = scalar_lea.vmem [#allocation7], 48
    %v301 = vpack.c.bf16 0.0, %v299
    %303 = vst [vmem:[%s300] sm:$0xf] %v301
    %s304 = scalar_lea.vmem %s2, 52
    %s306 = sor.u32 255, 127
    %s307 = sand.u32 %s306, 85
    %s308 = sshrl.u32 %s307, 1
    %s309 = sor.u32 %s307, %s308
    %s310 = sand.u32 51, %s309
    %s311 = sshrl.u32 %s310, 2
    %s312 = sor.u32 %s310, %s311
    %s313 = sand.u32 15, %s312
    %v314 = vld [vmem:[%s304] sm:%s313]
    %v315 = vunpack.c.l.bf16 %v314
    %v316 = vunpack.c.h.bf16 %v314
    %v317 = vlaneseq
    %v318 = vand.u32 %v317, 127
    %vm320 = vcmp.lt.s32.totalorder %v318, 48
    %v321 = vsel %vm320, %v315, %v10
    %s322 = scalar_lea.vmem [#allocation7], 52
    %v323 = vpack.c.bf16 0.0, %v321
    %325 = vst [vmem:[%s322] sm:$0xf] %v323
    %s326 = scalar_lea.vmem %s2, 56
    %s328 = sor.u32 255, 127
    %s329 = sand.u32 %s328, 85
    %s330 = sshrl.u32 %s329, 1
    %s331 = sor.u32 %s329, %s330
    %s332 = sand.u32 51, %s331
    %s333 = sshrl.u32 %s332, 2
    %s334 = sor.u32 %s332, %s333
    %s335 = sand.u32 15, %s334
    %v336 = vld [vmem:[%s326] sm:%s335]
    %v337 = vunpack.c.l.bf16 %v336
    %v338 = vunpack.c.h.bf16 %v336
    %v339 = vlaneseq
    %v340 = vand.u32 %v339, 127
    %vm342 = vcmp.lt.s32.totalorder %v340, 48
    %v343 = vsel %vm342, %v337, %v10
    %s344 = scalar_lea.vmem [#allocation7], 56
    %v345 = vpack.c.bf16 0.0, %v343
    %347 = vst [vmem:[%s344] sm:$0xf] %v345
    %s348 = scalar_lea.vmem %s2, 60
    %s350 = sor.u32 255, 127
    %s351 = sand.u32 %s350, 85
    %s352 = sshrl.u32 %s351, 1
    %s353 = sor.u32 %s351, %s352
    %s354 = sand.u32 51, %s353
    %s355 = sshrl.u32 %s354, 2
    %s356 = sor.u32 %s354, %s355
    %s357 = sand.u32 15, %s356
    %v358 = vld [vmem:[%s348] sm:%s357]
    %v359 = vunpack.c.l.bf16 %v358
    %v360 = vunpack.c.h.bf16 %v358
    %v361 = vlaneseq
    %v362 = vand.u32 %v361, 127
    %vm364 = vcmp.lt.s32.totalorder %v362, 48
    %v365 = vsel %vm364, %v359, %v10
    %s366 = scalar_lea.vmem [#allocation7], 60
    %v367 = vpack.c.bf16 0.0, %v365
    %369 = vst [vmem:[%s366] sm:$0xf] %v367
    %v371 = vld [vmem:[#allocation7] sm:$0xf]
    %v372 = vld [vmem:[#allocation7 + $0x4] sm:$0xf]
    %v373 = vld [vmem:[#allocation7 + $0x8] sm:$0xf]
    %v374 = vld [vmem:[#allocation7 + $0xc] sm:$0xf]
    %v375 = vld [vmem:[#allocation7 + $0x10] sm:$0xf]
    %v376 = vld [vmem:[#allocation7 + $0x14] sm:$0xf]
    %v377 = vld [vmem:[#allocation7 + $0x18] sm:$0xf]
    %v378 = vld [vmem:[#allocation7 + $0x1c] sm:$0xf]
    %v379 = vld [vmem:[#allocation7 + $0x20] sm:$0xf]
    %v380 = vld [vmem:[#allocation7 + $0x24] sm:$0xf]
    %v381 = vld [vmem:[#allocation7 + $0x28] sm:$0xf]
    %v382 = vld [vmem:[#allocation7 + $0x2c] sm:$0xf]
    %v383 = vld [vmem:[#allocation7 + $0x30] sm:$0xf]
    %v384 = vld [vmem:[#allocation7 + $0x34] sm:$0xf]
    %v385 = vld [vmem:[#allocation7 + $0x38] sm:$0xf]
    %v386 = vld [vmem:[#allocation7 + $0x3c] sm:$0xf]
    %v387 = vld [vmem:[%s0] sm:$0xf]
    %v388 = vld [vmem:[%s0 + $0x4] sm:$0xf]
    %v389 = vld [vmem:[%s0 + $0x8] sm:$0xf]
    %v390 = vld [vmem:[%s0 + $0xc] sm:$0xf]
    %v391 = vld [vmem:[%s0 + $0x10] sm:$0xf]
    %v392 = vld [vmem:[%s0 + $0x14] sm:$0xf]
    %v393 = vld [vmem:[%s0 + $0x18] sm:$0xf]
    %v394 = vld [vmem:[%s0 + $0x1c] sm:$0xf]
    %v395 = vld [vmem:[%s0 + $0x20] sm:$0xf]
    %v396 = vld [vmem:[%s0 + $0x24] sm:$0xf]
    %v397 = vld [vmem:[%s0 + $0x28] sm:$0xf]
    %v398 = vld [vmem:[%s0 + $0x2c] sm:$0xf]
    %v399 = vld [vmem:[%s0 + $0x30] sm:$0xf]
    %v400 = vld [vmem:[%s0 + $0x34] sm:$0xf]
    %v401 = vld [vmem:[%s0 + $0x38] sm:$0xf]
    %v402 = vld [vmem:[%s0 + $0x3c] sm:$0xf]
    %v403 = vld [vmem:[%s1] sm:$0x1]
    %v405 = vlaneseq
    %v406 = vshrl.u32 %v405, 7
    %v407 = vsub.s32 0, %v406
    %v408 = vrot.slane %v403, %v407
    %v426 = vunpack.c.l.b16 %v371
    %v427 = vunpack.c.l.b16 %v372
    %v428 = vunpack.c.l.b16 %v373
    %v429 = vunpack.c.l.b16 %v374
    %v430 = vunpack.c.l.b16 %v375
    %v431 = vunpack.c.l.b16 %v376
    %v432 = vunpack.c.l.b16 %v377
    %v433 = vunpack.c.l.b16 %v378
    %v434 = vunpack.c.l.b16 %v379
    %v435 = vunpack.c.l.b16 %v380
    %v436 = vunpack.c.l.b16 %v381
    %v437 = vunpack.c.l.b16 %v382
    %v438 = vunpack.c.l.b16 %v383
    %v439 = vunpack.c.l.b16 %v384
    %v440 = vunpack.c.l.b16 %v385
    %v441 = vunpack.c.l.b16 %v386
    %v442 = vpack.c.b16 %v427, %v426
    %v443 = vpack.c.b16 %v429, %v428
    %v444 = vpack.c.b16 %v431, %v430
    %v445 = vpack.c.b16 %v433, %v432
    %v446 = vpack.c.b16 %v435, %v434
    %v447 = vpack.c.b16 %v437, %v436
    %v448 = vpack.c.b16 %v439, %v438
    %v449 = vpack.c.b16 %v441, %v440
    %v474 = vunpack.c.l.b16 %v387
    %v475 = vunpack.c.l.b16 %v388
    %v476 = vunpack.c.l.b16 %v389
    %v477 = vunpack.c.l.b16 %v390
    %v478 = vunpack.c.l.b16 %v391
    %v479 = vunpack.c.l.b16 %v392
    %v480 = vunpack.c.l.b16 %v393
    %v481 = vunpack.c.l.b16 %v394
    %v482 = vunpack.c.l.b16 %v395
    %v483 = vunpack.c.l.b16 %v396
    %v484 = vunpack.c.l.b16 %v397
    %v485 = vunpack.c.l.b16 %v398
    %v486 = vunpack.c.l.b16 %v399
    %v487 = vunpack.c.l.b16 %v400
    %v488 = vunpack.c.l.b16 %v401
    %v489 = vunpack.c.l.b16 %v402
    %v490 = vpack.c.b16 %v475, %v474
    %v491 = vpack.c.b16 %v477, %v476
    %v492 = vpack.c.b16 %v479, %v478
    %v493 = vpack.c.b16 %v481, %v480
    %v494 = vpack.c.b16 %v483, %v482
    %v495 = vpack.c.b16 %v485, %v484
    %v496 = vpack.c.b16 %v487, %v486
    %v497 = vpack.c.b16 %v489, %v488
    %506 = vmatprep.subr.bf16.mxu0 0
    %507 = vmatpush1.bf16.msra.mxu0 %v490
    %508 = vmatprep.subr.bf16.mxu0 0
    %509 = vmatpush1.bf16.msra.mxu0 %v491
    %510 = vmatprep.subr.bf16.mxu0 0
    %511 = vmatpush1.bf16.msra.mxu0 %v492
    %512 = vmatprep.subr.bf16.mxu0 0
    %513 = vmatpush1.bf16.msra.mxu0 %v493
    %514 = vmatprep.subr.bf16.mxu0 0
    %515 = vmatpush1.bf16.msra.mxu0 %v494
    %516 = vmatprep.subr.bf16.mxu0 0
    %517 = vmatpush1.bf16.msra.mxu0 %v495
    %518 = vmatprep.subr.bf16.mxu0 0
    %519 = vmatpush1.bf16.msra.mxu0 %v496
    %520 = vmatprep.subr.bf16.mxu0 0
    %521 = vmatpush1.bf16.msra.mxu0 %v497
    %522 = vmatprep.subr.bf16.mxu0 0
    %523 = vmatpush1.bf16.msra.mxu0 0
    %524 = vmatprep.subr.bf16.mxu0 0
    %525 = vmatpush1.bf16.msra.mxu0 0
    %526 = vmatprep.subr.bf16.mxu0 0
    %527 = vmatpush1.bf16.msra.mxu0 0
    %528 = vmatprep.subr.bf16.mxu0 0
    %529 = vmatpush1.bf16.msra.mxu0 0
    %530 = vmatprep.subr.bf16.mxu0 0
    %531 = vmatpush1.bf16.msra.mxu0 0
    %532 = vmatprep.subr.bf16.mxu0 0
    %533 = vmatpush1.bf16.msra.mxu0 0
    %534 = vmatprep.subr.bf16.mxu0 0
    %535 = vmatpush1.bf16.msra.mxu0 0
    %536 = vmatprep.subr.bf16.mxu0 0
    %537 = vmatpush1.bf16.msra.mxu0 0
    %538 = vmatprep.mubr.bf16.mxu0 0
    %539 = vmatmul.mubr.bf16.gmra.mrb[0].mxu0 %v442
    %v540 = vpop.f32.mrb[0].mxu0
    %v541 = vadd.f32 %v408, %v540
    %v542 = vpop.f32.mrb[0].mxu0
    %v543 = vpop.f32.mrb[0].mxu0
    %v544 = vadd.f32 %v408, %v543
    %v545 = vpop.f32.mrb[0].mxu0
    %546 = vmatprep.mubr.bf16.mxu0 0
    %547 = vmatmul.mubr.bf16.gmra.mrb[0].mxu0 %v443
    %v548 = vpop.f32.mrb[0].mxu0
    %v549 = vadd.f32 %v408, %v548
    %v550 = vpop.f32.mrb[0].mxu0
    %v551 = vpop.f32.mrb[0].mxu0
    %v552 = vadd.f32 %v408, %v551
    %v553 = vpop.f32.mrb[0].mxu0
    %554 = vmatprep.mubr.bf16.mxu0 0
    %555 = vmatmul.mubr.bf16.gmra.mrb[0].mxu0 %v444
    %v556 = vpop.f32.mrb[0].mxu0
    %v557 = vadd.f32 %v408, %v556
    %v558 = vpop.f32.mrb[0].mxu0
    %v559 = vpop.f32.mrb[0].mxu0
    %v560 = vadd.f32 %v408, %v559
    %v561 = vpop.f32.mrb[0].mxu0
    %562 = vmatprep.mubr.bf16.mxu0 0
    %563 = vmatmul.mubr.bf16.gmra.mrb[0].mxu0 %v445
    %v564 = vpop.f32.mrb[0].mxu0
    %v565 = vadd.f32 %v408, %v564
    %v566 = vpop.f32.mrb[0].mxu0
    %v567 = vpop.f32.mrb[0].mxu0
    %v568 = vadd.f32 %v408, %v567
    %v569 = vpop.f32.mrb[0].mxu0
    %570 = vmatprep.mubr.bf16.mxu0 0
    %571 = vmatmul.mubr.bf16.gmra.mrb[0].mxu0 %v446
    %v572 = vpop.f32.mrb[0].mxu0
    %v573 = vadd.f32 %v408, %v572
    %v574 = vpop.f32.mrb[0].mxu0
    %v575 = vpop.f32.mrb[0].mxu0
    %v576 = vadd.f32 %v408, %v575
    %v577 = vpop.f32.mrb[0].mxu0
    %578 = vmatprep.mubr.bf16.mxu0 0
    %579 = vmatmul.mubr.bf16.gmra.mrb[0].mxu0 %v447
    %v580 = vpop.f32.mrb[0].mxu0
    %v581 = vadd.f32 %v408, %v580
    %v582 = vpop.f32.mrb[0].mxu0
    %v583 = vpop.f32.mrb[0].mxu0
    %v584 = vadd.f32 %v408, %v583
    %v585 = vpop.f32.mrb[0].mxu0
    %586 = vmatprep.mubr.bf16.mxu0 0
    %587 = vmatmul.mubr.bf16.gmra.mrb[0].mxu0 %v448
    %v588 = vpop.f32.mrb[0].mxu0
    %v589 = vadd.f32 %v408, %v588
    %v590 = vpop.f32.mrb[0].mxu0
    %v591 = vpop.f32.mrb[0].mxu0
    %v592 = vadd.f32 %v408, %v591
    %v593 = vpop.f32.mrb[0].mxu0
    %594 = vmatprep.mubr.bf16.mxu0 0
    %595 = vmatmul.mubr.bf16.gmra.mrb[0].mxu0 %v449
    %v596 = vpop.f32.mrb[0].mxu0
    %v597 = vadd.f32 %v408, %v596
    %v598 = vpop.f32.mrb[0].mxu0
    %v599 = vpop.f32.mrb[0].mxu0
    %v600 = vadd.f32 %v408, %v599
    %v601 = vpop.f32.mrb[0].mxu0
    %602 = vdwg.mxu0
    %v603 = vmax.f32 %v541, 0.0
    %v604 = vmax.f32 %v544, 0.0
    %v605 = vmax.f32 %v549, 0.0
    %v606 = vmax.f32 %v552, 0.0
    %v607 = vmax.f32 %v557, 0.0
    %v608 = vmax.f32 %v560, 0.0
    %v609 = vmax.f32 %v565, 0.0
    %v610 = vmax.f32 %v568, 0.0
    %v611 = vmax.f32 %v573, 0.0
    %v612 = vmax.f32 %v576, 0.0
    %v613 = vmax.f32 %v581, 0.0
    %v614 = vmax.f32 %v584, 0.0
    %v615 = vmax.f32 %v589, 0.0
    %v616 = vmax.f32 %v592, 0.0
    %v617 = vmax.f32 %v597, 0.0
    %v618 = vmax.f32 %v600, 0.0
    %v619 = vpack.c.bf16 %v604, %v603
    %v620 = vpack.c.bf16 %v606, %v605
    %v621 = vpack.c.bf16 %v608, %v607
    %v622 = vpack.c.bf16 %v610, %v609
    %v623 = vpack.c.bf16 %v612, %v611
    %v624 = vpack.c.bf16 %v614, %v613
    %v625 = vpack.c.bf16 %v616, %v615
    %v626 = vpack.c.bf16 %v618, %v617
    %v635 = vunpack.c.l.b16 %v619
    %v636 = vunpack.c.h.b16 %v619
    %v637 = vunpack.c.l.b16 %v620
    %v638 = vunpack.c.h.b16 %v620
    %v639 = vunpack.c.l.b16 %v621
    %v640 = vunpack.c.h.b16 %v621
    %v641 = vunpack.c.l.b16 %v622
    %v642 = vunpack.c.h.b16 %v622
    %v643 = vunpack.c.l.b16 %v623
    %v644 = vunpack.c.h.b16 %v623
    %v645 = vunpack.c.l.b16 %v624
    %v646 = vunpack.c.h.b16 %v624
    %v647 = vunpack.c.l.b16 %v625
    %v648 = vunpack.c.h.b16 %v625
    %v649 = vunpack.c.l.b16 %v626
    %v650 = vunpack.c.h.b16 %v626
    %v651 = vpack.c.b16 %v635, %v635
    %v652 = vpack.c.b16 %v636, %v636
    %v653 = vpack.c.b16 %v637, %v637
    %v654 = vpack.c.b16 %v638, %v638
    %v655 = vpack.c.b16 %v639, %v639
    %v656 = vpack.c.b16 %v640, %v640
    %v657 = vpack.c.b16 %v641, %v641
    %v658 = vpack.c.b16 %v642, %v642
    %v659 = vpack.c.b16 %v643, %v643
    %v660 = vpack.c.b16 %v644, %v644
    %v661 = vpack.c.b16 %v645, %v645
    %v662 = vpack.c.b16 %v646, %v646
    %v663 = vpack.c.b16 %v647, %v647
    %v664 = vpack.c.b16 %v648, %v648
    %v665 = vpack.c.b16 %v649, %v649
    %v666 = vpack.c.b16 %v650, %v650
    %683 = vst [vmem:[%s4] sm:$0xf] %v651
    %684 = vst [vmem:[%s4 + $0x4] sm:$0xf] %v652
    %685 = vst [vmem:[%s4 + $0x8] sm:$0xf] %v653
    %686 = vst [vmem:[%s4 + $0xc] sm:$0xf] %v654
    %687 = vst [vmem:[%s4 + $0x10] sm:$0xf] %v655
    %688 = vst [vmem:[%s4 + $0x14] sm:$0xf] %v656
    %689 = vst [vmem:[%s4 + $0x18] sm:$0xf] %v657
    %690 = vst [vmem:[%s4 + $0x1c] sm:$0xf] %v658
    %691 = vst [vmem:[%s4 + $0x20] sm:$0xf] %v659
    %692 = vst [vmem:[%s4 + $0x24] sm:$0xf] %v660
    %693 = vst [vmem:[%s4 + $0x28] sm:$0xf] %v661
    %694 = vst [vmem:[%s4 + $0x2c] sm:$0xf] %v662
    %695 = vst [vmem:[%s4 + $0x30] sm:$0xf] %v663
    %696 = vst [vmem:[%s4 + $0x34] sm:$0xf] %v664
    %697 = vst [vmem:[%s4 + $0x38] sm:$0xf] %v665
    %698 = vst [vmem:[%s4 + $0x3c] sm:$0xf] %v666
    // Predicated region
    $region14: #{vqvae_forward.33} parent=1 // pred_check
      _
    $region15: #{vqvae_forward.33} parent=1 // pred_check_branch
      %700 = sbr.rel (0) target = $region17
    $region16: #{vqvae_forward.33} parent=1 // pred_region
      _
    $region17: #{vqvae_forward.33} parent=1 // pred_fallthru
      _
    // Predicated region
    $region18: #{vqvae_forward.33} parent=1 // pred_check
      _
    $region19: #{vqvae_forward.33} parent=1 // pred_check_branch
      %702 = sbr.rel (0) target = $region21
    $region20: #{vqvae_forward.33} parent=1 // pred_region
      _
    $region21: #{vqvae_forward.33} parent=1 // pred_fallthru
      _

// kernel: vqvae_forward.30
$region0: #{vqvae_forward.30}
  #allocation0 [shape = 'u32[]', space=smem, size = 0x4, offset = 0x4, fixed_abs, tag = 'smem constant byte address 0x4 - core index']
  #allocation1 [shape = 'u32[144,128]{1,0:T(1,128)}', space=vmem, size = 0x12000, scoped, tag = 'internal scratch']
  %s0 = inlined_call_operand.vmem [shape: bf16[32,256], index: 0, kind: input, shape index: {}]
  %s1 = inlined_call_operand.vmem [shape: bf16[256,128], index: 1, kind: input, shape index: {}]
  %s2 = inlined_call_operand.vmem [shape: f32[1,128], index: 2, kind: input, shape index: {}]
  %s3 = inlined_call_operand.vmem [shape: bf16[32,128], index: 3, kind: output, shape index: {}]
  %s4 = sld [smem:[#allocation0]]
  $region22: #{vqvae_forward.30} parent=0
    _
  %s6 = ssub.s32 1, %s4
  %s7 = scalar_select 0, %s6, %s4
  // Predicated region
  $region2: #{vqvae_forward.30} parent=0 // pred_check
    _
  $region3: #{vqvae_forward.30} parent=0 // pred_check_branch
    %9 = sbr.rel (0) target = $region5
  $region4: #{vqvae_forward.30} parent=0 // pred_region
    _
  $region5: #{vqvae_forward.30} parent=0 // pred_fallthru
    _
  // Predicated region
  $region6: #{vqvae_forward.30} parent=0 // pred_check
    _
  $region7: #{vqvae_forward.30} parent=0 // pred_check_branch
    %11 = sbr.rel (0) target = $region9
  $region8: #{vqvae_forward.30} parent=0 // pred_region
    _
  $region9: #{vqvae_forward.30} parent=0 // pred_fallthru
    _
  // Predicated region
  $region10: #{vqvae_forward.30} parent=0 // pred_check
    _
  $region11: #{vqvae_forward.30} parent=0 // pred_check_branch
    %13 = sbr.rel (0) target = $region13
  $region12: #{vqvae_forward.30} parent=0 // pred_region
    _
  $region13: #{vqvae_forward.30} parent=0 // pred_fallthru
    _
  %v15 = vld [vmem:[%s0] sm:$0xff]
  %v16 = vld [vmem:[%s0 + $0x8] sm:$0xff]
  %v17 = vld [vmem:[%s0 + $0x10] sm:$0xff]
  %v18 = vld [vmem:[%s0 + $0x18] sm:$0xff]
  %v19 = vld [vmem:[%s1] sm:$0xf]
  %v20 = vld [vmem:[%s1 + $0x4] sm:$0xf]
  %v21 = vld [vmem:[%s1 + $0x8] sm:$0xf]
  %v22 = vld [vmem:[%s1 + $0xc] sm:$0xf]
  %v23 = vld [vmem:[%s1 + $0x10] sm:$0xf]
  %v24 = vld [vmem:[%s1 + $0x14] sm:$0xf]
  %v25 = vld [vmem:[%s1 + $0x18] sm:$0xf]
  %v26 = vld [vmem:[%s1 + $0x1c] sm:$0xf]
  %v27 = vld [vmem:[%s1 + $0x20] sm:$0xf]
  %v28 = vld [vmem:[%s1 + $0x24] sm:$0xf]
  %v29 = vld [vmem:[%s1 + $0x28] sm:$0xf]
  %v30 = vld [vmem:[%s1 + $0x2c] sm:$0xf]
  %v31 = vld [vmem:[%s1 + $0x30] sm:$0xf]
  %v32 = vld [vmem:[%s1 + $0x34] sm:$0xf]
  %v33 = vld [vmem:[%s1 + $0x38] sm:$0xf]
  %v34 = vld [vmem:[%s1 + $0x3c] sm:$0xf]
  %v35 = vld [vmem:[%s1 + $0x40] sm:$0xf]
  %v36 = vld [vmem:[%s1 + $0x44] sm:$0xf]
  %v37 = vld [vmem:[%s1 + $0x48] sm:$0xf]
  %v38 = vld [vmem:[%s1 + $0x4c] sm:$0xf]
  %v39 = vld [vmem:[%s1 + $0x50] sm:$0xf]
  %v40 = vld [vmem:[%s1 + $0x54] sm:$0xf]
  %v41 = vld [vmem:[%s1 + $0x58] sm:$0xf]
  %v42 = vld [vmem:[%s1 + $0x5c] sm:$0xf]
  %v43 = vld [vmem:[%s1 + $0x60] sm:$0xf]
  %v44 = vld [vmem:[%s1 + $0x64] sm:$0xf]
  %v45 = vld [vmem:[%s1 + $0x68] sm:$0xf]
  %v46 = vld [vmem:[%s1 + $0x6c] sm:$0xf]
  %v47 = vld [vmem:[%s1 + $0x70] sm:$0xf]
  %v48 = vld [vmem:[%s1 + $0x74] sm:$0xf]
  %v49 = vld [vmem:[%s1 + $0x78] sm:$0xf]
  %v50 = vld [vmem:[%s1 + $0x7c] sm:$0xf]
  %v51 = vld [vmem:[%s2] sm:$0x1]
  %v53 = vlaneseq
  %v54 = vshrl.u32 %v53, 7
  %v55 = vsub.s32 0, %v54
  %v56 = vrot.slane %v51, %v55
  %v62 = vunpack.c.l.b16 %v15
  %v63 = vunpack.c.h.b16 %v15
  %v64 = vunpack.c.l.b16 %v16
  %v65 = vunpack.c.h.b16 %v16
  %v66 = vunpack.c.l.b16 %v17
  %v67 = vunpack.c.h.b16 %v17
  %v68 = vunpack.c.l.b16 %v18
  %v69 = vunpack.c.h.b16 %v18
  %v70 = vpack.c.b16 %v64, %v62
  %v71 = vpack.c.b16 %v65, %v63
  %v72 = vpack.c.b16 %v68, %v66
  %v73 = vpack.c.b16 %v69, %v67
  %v110 = vunpack.c.l.b16 %v19
  %v111 = vunpack.c.l.b16 %v20
  %v112 = vunpack.c.l.b16 %v21
  %v113 = vunpack.c.l.b16 %v22
  %v114 = vunpack.c.l.b16 %v23
  %v115 = vunpack.c.l.b16 %v24
  %v116 = vunpack.c.l.b16 %v25
  %v117 = vunpack.c.l.b16 %v26
  %v118 = vunpack.c.l.b16 %v27
  %v119 = vunpack.c.l.b16 %v28
  %v120 = vunpack.c.l.b16 %v29
  %v121 = vunpack.c.l.b16 %v30
  %v122 = vunpack.c.l.b16 %v31
  %v123 = vunpack.c.l.b16 %v32
  %v124 = vunpack.c.l.b16 %v33
  %v125 = vunpack.c.l.b16 %v34
  %v126 = vunpack.c.l.b16 %v35
  %v127 = vunpack.c.l.b16 %v36
  %v128 = vunpack.c.l.b16 %v37
  %v129 = vunpack.c.l.b16 %v38
  %v130 = vunpack.c.l.b16 %v39
  %v131 = vunpack.c.l.b16 %v40
  %v132 = vunpack.c.l.b16 %v41
  %v133 = vunpack.c.l.b16 %v42
  %v134 = vunpack.c.l.b16 %v43
  %v135 = vunpack.c.l.b16 %v44
  %v136 = vunpack.c.l.b16 %v45
  %v137 = vunpack.c.l.b16 %v46
  %v138 = vunpack.c.l.b16 %v47
  %v139 = vunpack.c.l.b16 %v48
  %v140 = vunpack.c.l.b16 %v49
  %v141 = vunpack.c.l.b16 %v50
  %v142 = vpack.c.b16 %v111, %v110
  %v143 = vpack.c.b16 %v113, %v112
  %v144 = vpack.c.b16 %v115, %v114
  %v145 = vpack.c.b16 %v117, %v116
  %v146 = vpack.c.b16 %v119, %v118
  %v147 = vpack.c.b16 %v121, %v120
  %v148 = vpack.c.b16 %v123, %v122
  %v149 = vpack.c.b16 %v125, %v124
  %v150 = vpack.c.b16 %v127, %v126
  %v151 = vpack.c.b16 %v129, %v128
  %v152 = vpack.c.b16 %v131, %v130
  %v153 = vpack.c.b16 %v133, %v132
  %v154 = vpack.c.b16 %v135, %v134
  %v155 = vpack.c.b16 %v137, %v136
  %v156 = vpack.c.b16 %v139, %v138
  %v157 = vpack.c.b16 %v141, %v140
  %174 = vmatprep.subr.bf16.mxu0 0
  %175 = vmatpush1.bf16.msra.mxu0 %v142
  %176 = vmatprep.subr.bf16.mxu0 0
  %177 = vmatpush1.bf16.msra.mxu0 %v143
  %178 = vmatprep.subr.bf16.mxu0 0
  %179 = vmatpush1.bf16.msra.mxu0 %v144
  %180 = vmatprep.subr.bf16.mxu0 0
  %181 = vmatpush1.bf16.msra.mxu0 %v145
  %182 = vmatprep.subr.bf16.mxu0 0
  %183 = vmatpush1.bf16.msra.mxu0 %v146
  %184 = vmatprep.subr.bf16.mxu0 0
  %185 = vmatpush1.bf16.msra.mxu0 %v147
  %186 = vmatprep.subr.bf16.mxu0 0
  %187 = vmatpush1.bf16.msra.mxu0 %v148
  %188 = vmatprep.subr.bf16.mxu0 0
  %189 = vmatpush1.bf16.msra.mxu0 %v149
  %190 = vmatprep.subr.bf16.mxu0 0
  %191 = vmatpush1.bf16.msra.mxu0 %v150
  %192 = vmatprep.subr.bf16.mxu0 0
  %193 = vmatpush1.bf16.msra.mxu0 %v151
  %194 = vmatprep.subr.bf16.mxu0 0
  %195 = vmatpush1.bf16.msra.mxu0 %v152
  %196 = vmatprep.subr.bf16.mxu0 0
  %197 = vmatpush1.bf16.msra.mxu0 %v153
  %198 = vmatprep.subr.bf16.mxu0 0
  %199 = vmatpush1.bf16.msra.mxu0 %v154
  %200 = vmatprep.subr.bf16.mxu0 0
  %201 = vmatpush1.bf16.msra.mxu0 %v155
  %202 = vmatprep.subr.bf16.mxu0 0
  %203 = vmatpush1.bf16.msra.mxu0 %v156
  %204 = vmatprep.subr.bf16.mxu0 0
  %205 = vmatpush1.bf16.msra.mxu0 %v157
  %206 = vmatprep.mubr.bf16.mxu0 %v71
  %207 = vmatmul.mubr.bf16.gmra.mrb[0].mxu0 %v70
  %v208 = vpop.f32.mrb[0].mxu0
  %v209 = vadd.f32 %v56, %v208
  %v210 = vpop.f32.mrb[0].mxu0
  %v211 = vpop.f32.mrb[0].mxu0
  %v212 = vadd.f32 %v56, %v211
  %v213 = vpop.f32.mrb[0].mxu0
  %214 = vmatprep.mubr.bf16.mxu0 %v73
  %215 = vmatmul.mubr.bf16.gmra.mrb[0].mxu0 %v72
  %v216 = vpop.f32.mrb[0].mxu0
  %v217 = vadd.f32 %v56, %v216
  %v218 = vpop.f32.mrb[0].mxu0
  %v219 = vpop.f32.mrb[0].mxu0
  %v220 = vadd.f32 %v56, %v219
  %v221 = vpop.f32.mrb[0].mxu0
  %222 = vdwg.mxu0
  %v223 = vmax.f32 %v209, 0.0
  %v224 = vmax.f32 %v212, 0.0
  %v225 = vmax.f32 %v217, 0.0
  %v226 = vmax.f32 %v220, 0.0
  %v227 = vpack.c.bf16 %v224, %v223
  %v228 = vpack.c.bf16 %v226, %v225
  %v231 = vunpack.c.l.b16 %v227
  %v232 = vunpack.c.h.b16 %v227
  %v233 = vunpack.c.l.b16 %v228
  %v234 = vunpack.c.h.b16 %v228
  %v235 = vpack.c.b16 %v231, %v231
  %v236 = vpack.c.b16 %v232, %v232
  %v237 = vpack.c.b16 %v233, %v233
  %v238 = vpack.c.b16 %v234, %v234
  %243 = vst [vmem:[%s3] sm:$0xf] %v235
  %244 = vst [vmem:[%s3 + $0x4] sm:$0xf] %v236
  %245 = vst [vmem:[%s3 + $0x8] sm:$0xf] %v237
  %246 = vst [vmem:[%s3 + $0xc] sm:$0xf] %v238
  // Predicated region
  $region14: #{vqvae_forward.30} parent=0 // pred_check
    _
  $region15: #{vqvae_forward.30} parent=0 // pred_check_branch
    %248 = sbr.rel (0) target = $region17
  $region16: #{vqvae_forward.30} parent=0 // pred_region
    _
  $region17: #{vqvae_forward.30} parent=0 // pred_fallthru
    _
  // Predicated region
  $region18: #{vqvae_forward.30} parent=0 // pred_check
    _
  $region19: #{vqvae_forward.30} parent=0 // pred_check_branch
    %250 = sbr.rel (0) target = $region21
  $region20: #{vqvae_forward.30} parent=0 // pred_region
    _
  $region21: #{vqvae_forward.30} parent=0 // pred_fallthru
    _

// kernel: vqvae_forward.39
$region0: #{vqvae_forward.39}
  #allocation0 [shape = 'u32[]', space=smem, size = 0x4, offset = 0x4, fixed_abs, tag = 'smem constant byte address 0x4 - core index']
  #allocation1 [shape = 'u32[144,128]{1,0:T(1,128)}', space=vmem, size = 0x12000, scoped, tag = 'internal scratch']
  #allocation2 [shape = 'u32[2048]{0}', space=vmem, size = 0x2000, scoped, tag = 'scoped memory for vqvae_forward.39']
  #allocation3 [shape = 'u32[2048]{0}', space=vmem, size = 0x2000, scoped, tag = 'scoped memory for vqvae_forward.39']
  #allocation4 [shape = 'u32[2048]{0}', space=vmem, size = 0x2000, scoped, tag = 'scoped memory for vqvae_forward.39']
  #allocation5 [shape = 'u32[2048]{0}', space=vmem, size = 0x2000, scoped, tag = 'scoped memory for vqvae_forward.39']
  #allocation6 [shape = 'u32[2048]{0}', space=vmem, size = 0x2000, scoped, tag = 'scoped memory for vqvae_forward.39']
  %s0 = inlined_call_operand.vmem [shape: bf16[384,128], index: 0, kind: input, shape index: {}]
  %s1 = inlined_call_operand.vmem [shape: f32[1,128], index: 1, kind: input, shape index: {}]
  %s2 = inlined_call_operand.vmem [shape: bf16[32,288], index: 2, kind: input, shape index: {}]
  %s3 = inlined_call_operand.<no memory space> [shape: bf16[], index: 3, kind: input, shape index: {}]
  %s4 = inlined_call_operand.vmem [shape: bf16[32,128], index: 4, kind: output, shape index: {}]
  %s5 = sld [smem:[#allocation0]]
  $region22: #{vqvae_forward.39} parent=0
    _
  %s7 = ssub.s32 1, %s5
  %s8 = scalar_select 0, %s7, %s5
  %v9 = vstv %s3
  %v10 = vunpack.i.l.bf16 %v9
  %v12 = vunpack.i.h.bf16 %v9
  $region1: #{vqvae_forward.39} parent=0
    #allocation7 [shape = 'u8[24576]{0}', space=vmem, size = 0x6000, dematerialized = true, scoped, tag = 'FusionAdapter Buffer %fusion.16 = bf16[32,384]{1,0:T(8,128)(2,1)} fusion(%param_2.15, %param_3.7), kind=kLoop, calls=%fused_computation.84.clone, metadata={op_name="jit(vqvae_forward)/jit(_pad)/pad" stack_frame_id=78}']
    // Predicated region
    $region2: #{vqvae_forward.39} parent=1 // pred_check
      _
    $region3: #{vqvae_forward.39} parent=1 // pred_check_branch
      %15 = sbr.rel (0) target = $region5
    $region4: #{vqvae_forward.39} parent=1 // pred_region
      _
    $region5: #{vqvae_forward.39} parent=1 // pred_fallthru
      _
    // Predicated region
    $region6: #{vqvae_forward.39} parent=1 // pred_check
      _
    $region7: #{vqvae_forward.39} parent=1 // pred_check_branch
      %17 = sbr.rel (0) target = $region9
    $region8: #{vqvae_forward.39} parent=1 // pred_region
      _
    $region9: #{vqvae_forward.39} parent=1 // pred_fallthru
      _
    // Predicated region
    $region10: #{vqvae_forward.39} parent=1 // pred_check
      _
    $region11: #{vqvae_forward.39} parent=1 // pred_check_branch
      %19 = sbr.rel (0) target = $region13
    $region12: #{vqvae_forward.39} parent=1 // pred_region
      _
    $region13: #{vqvae_forward.39} parent=1 // pred_fallthru
      _
    %v20 = vld [vmem:[%s2] sm:$0xf]
    %v21 = vunpack.c.l.bf16 %v20
    %v22 = vunpack.c.h.bf16 %v20
    %v23 = vlaneseq
    %v24 = vand.u32 %v23, 127
    %vm26 = vcmp.lt.s32.totalorder %v24, 288
    %v27 = vsel %vm26, %v21, %v10
    %v28 = vpack.c.bf16 0.0, %v27
    %30 = vst [vmem:[#allocation7] sm:$0xf] %v28
    %s31 = scalar_lea.vmem %s2, 4
    %v32 = vld [vmem:[%s31] sm:$0xf]
    %v33 = vunpack.c.l.bf16 %v32
    %v34 = vunpack.c.h.bf16 %v32
    %v35 = vlaneseq
    %v36 = vand.u32 %v35, 127
    %v37 = vadd.s32 %v36, 128
    %vm38 = vcmp.lt.s32.totalorder %v37, 288
    %v39 = vsel %vm38, %v33, %v10
    %s40 = scalar_lea.vmem [#allocation7], 4
    %v41 = vpack.c.bf16 0.0, %v39
    %43 = vst [vmem:[%s40] sm:$0xf] %v41
    %s44 = scalar_lea.vmem %s2, 8
    %s46 = sor.u32 255, 127
    %s47 = sand.u32 %s46, 85
    %s48 = sshrl.u32 %s47, 1
    %s49 = sor.u32 %s47, %s48
    %s50 = sand.u32 51, %s49
    %s51 = sshrl.u32 %s50, 2
    %s52 = sor.u32 %s50, %s51
    %s53 = sand.u32 15, %s52
    %v54 = vld [vmem:[%s44] sm:%s53]
    %v55 = vunpack.c.l.bf16 %v54
    %v56 = vunpack.c.h.bf16 %v54
    %v57 = vlaneseq
    %v58 = vand.u32 %v57, 127
    %v59 = vadd.s32 %v58, 256
    %vm60 = vcmp.lt.s32.totalorder %v59, 288
    %v61 = vsel %vm60, %v55, %v10
    %s62 = scalar_lea.vmem [#allocation7], 8
    %v63 = vpack.c.bf16 0.0, %v61
    %65 = vst [vmem:[%s62] sm:$0xf] %v63
    %s66 = scalar_lea.vmem %s2, 12
    %v67 = vld [vmem:[%s66] sm:$0xf]
    %v68 = vunpack.c.l.bf16 %v67
    %v69 = vunpack.c.h.bf16 %v67
    %v70 = vlaneseq
    %v71 = vand.u32 %v70, 127
    %vm73 = vcmp.lt.s32.totalorder %v71, 288
    %v74 = vsel %vm73, %v68, %v10
    %s75 = scalar_lea.vmem [#allocation7], 12
    %v76 = vpack.c.bf16 0.0, %v74
    %78 = vst [vmem:[%s75] sm:$0xf] %v76
    %s79 = scalar_lea.vmem %s2, 16
    %v80 = vld [vmem:[%s79] sm:$0xf]
    %v81 = vunpack.c.l.bf16 %v80
    %v82 = vunpack.c.h.bf16 %v80
    %v83 = vlaneseq
    %v84 = vand.u32 %v83, 127
    %v85 = vadd.s32 %v84, 128
    %vm86 = vcmp.lt.s32.totalorder %v85, 288
    %v87 = vsel %vm86, %v81, %v10
    %s88 = scalar_lea.vmem [#allocation7], 16
    %v89 = vpack.c.bf16 0.0, %v87
    %91 = vst [vmem:[%s88] sm:$0xf] %v89
    %s92 = scalar_lea.vmem %s2, 20
    %s94 = sor.u32 255, 127
    %s95 = sand.u32 %s94, 85
    %s96 = sshrl.u32 %s95, 1
    %s97 = sor.u32 %s95, %s96
    %s98 = sand.u32 51, %s97
    %s99 = sshrl.u32 %s98, 2
    %s100 = sor.u32 %s98, %s99
    %s101 = sand.u32 15, %s100
    %v102 = vld [vmem:[%s92] sm:%s101]
    %v103 = vunpack.c.l.bf16 %v102
    %v104 = vunpack.c.h.bf16 %v102
    %v105 = vlaneseq
    %v106 = vand.u32 %v105, 127
    %v107 = vadd.s32 %v106, 256
    %vm108 = vcmp.lt.s32.totalorder %v107, 288
    %v109 = vsel %vm108, %v103, %v10
    %s110 = scalar_lea.vmem [#allocation7], 20
    %v111 = vpack.c.bf16 0.0, %v109
    %113 = vst [vmem:[%s110] sm:$0xf] %v111
    %s114 = scalar_lea.vmem %s2, 24
    %v115 = vld [vmem:[%s114] sm:$0xf]
    %v116 = vunpack.c.l.bf16 %v115
    %v117 = vunpack.c.h.bf16 %v115
    %v118 = vlaneseq
    %v119 = vand.u32 %v118, 127
    %vm121 = vcmp.lt.s32.totalorder %v119, 288
    %v122 = vsel %vm121, %v116, %v10
    %s123 = scalar_lea.vmem [#allocation7], 24
    %v124 = vpack.c.bf16 0.0, %v122
    %126 = vst [vmem:[%s123] sm:$0xf] %v124
    %s127 = scalar_lea.vmem %s2, 28
    %v128 = vld [vmem:[%s127] sm:$0xf]
    %v129 = vunpack.c.l.bf16 %v128
    %v130 = vunpack.c.h.bf16 %v128
    %v131 = vlaneseq
    %v132 = vand.u32 %v131, 127
    %v133 = vadd.s32 %v132, 128
    %vm134 = vcmp.lt.s32.totalorder %v133, 288
    %v135 = vsel %vm134, %v129, %v10
    %s136 = scalar_lea.vmem [#allocation7], 28
    %v137 = vpack.c.bf16 0.0, %v135
    %139 = vst [vmem:[%s136] sm:$0xf] %v137
    %s140 = scalar_lea.vmem %s2, 32
    %s142 = sor.u32 255, 127
    %s143 = sand.u32 %s142, 85
    %s144 = sshrl.u32 %s143, 1
    %s145 = sor.u32 %s143, %s144
    %s146 = sand.u32 51, %s145
    %s147 = sshrl.u32 %s146, 2
    %s148 = sor.u32 %s146, %s147
    %s149 = sand.u32 15, %s148
    %v150 = vld [vmem:[%s140] sm:%s149]
    %v151 = vunpack.c.l.bf16 %v150
    %v152 = vunpack.c.h.bf16 %v150
    %v153 = vlaneseq
    %v154 = vand.u32 %v153, 127
    %v155 = vadd.s32 %v154, 256
    %vm156 = vcmp.lt.s32.totalorder %v155, 288
    %v157 = vsel %vm156, %v151, %v10
    %s158 = scalar_lea.vmem [#allocation7], 32
    %v159 = vpack.c.bf16 0.0, %v157
    %161 = vst [vmem:[%s158] sm:$0xf] %v159
    %s162 = scalar_lea.vmem %s2, 36
    %v163 = vld [vmem:[%s162] sm:$0xf]
    %v164 = vunpack.c.l.bf16 %v163
    %v165 = vunpack.c.h.bf16 %v163
    %v166 = vlaneseq
    %v167 = vand.u32 %v166, 127
    %vm169 = vcmp.lt.s32.totalorder %v167, 288
    %v170 = vsel %vm169, %v164, %v10
    %s171 = scalar_lea.vmem [#allocation7], 36
    %v172 = vpack.c.bf16 0.0, %v170
    %174 = vst [vmem:[%s171] sm:$0xf] %v172
    %s175 = scalar_lea.vmem %s2, 40
    %v176 = vld [vmem:[%s175] sm:$0xf]
    %v177 = vunpack.c.l.bf16 %v176
    %v178 = vunpack.c.h.bf16 %v176
    %v179 = vlaneseq
    %v180 = vand.u32 %v179, 127
    %v181 = vadd.s32 %v180, 128
    %vm182 = vcmp.lt.s32.totalorder %v181, 288
    %v183 = vsel %vm182, %v177, %v10
    %s184 = scalar_lea.vmem [#allocation7], 40
    %v185 = vpack.c.bf16 0.0, %v183
    %187 = vst [vmem:[%s184] sm:$0xf] %v185
    %s188 = scalar_lea.vmem %s2, 44
    %s190 = sor.u32 255, 127
    %s191 = sand.u32 %s190, 85
    %s192 = sshrl.u32 %s191, 1
    %s193 = sor.u32 %s191, %s192
    %s194 = sand.u32 51, %s193
    %s195 = sshrl.u32 %s194, 2
    %s196 = sor.u32 %s194, %s195
    %s197 = sand.u32 15, %s196
    %v198 = vld [vmem:[%s188] sm:%s197]
    %v199 = vunpack.c.l.bf16 %v198
    %v200 = vunpack.c.h.bf16 %v198
    %v201 = vlaneseq
    %v202 = vand.u32 %v201, 127
    %v203 = vadd.s32 %v202, 256
    %vm204 = vcmp.lt.s32.totalorder %v203, 288
    %v205 = vsel %vm204, %v199, %v10
    %s206 = scalar_lea.vmem [#allocation7], 44
    %v207 = vpack.c.bf16 0.0, %v205
    %209 = vst [vmem:[%s206] sm:$0xf] %v207
    %v211 = vld [vmem:[#allocation7] sm:$0xff]
    %v212 = vld [vmem:[#allocation7 + $0x8] sm:$0xf]
    %v213 = vld [vmem:[#allocation7 + $0xc] sm:$0xff]
    %v214 = vld [vmem:[#allocation7 + $0x14] sm:$0xf]
    %v215 = vld [vmem:[#allocation7 + $0x18] sm:$0xff]
    %v216 = vld [vmem:[#allocation7 + $0x20] sm:$0xf]
    %v217 = vld [vmem:[#allocation7 + $0x24] sm:$0xff]
    %v218 = vld [vmem:[#allocation7 + $0x2c] sm:$0xf]
    %v219 = vld [vmem:[%s0] sm:$0xf]
    %v220 = vld [vmem:[%s0 + $0x4] sm:$0xf]
    %v221 = vld [vmem:[%s0 + $0x8] sm:$0xf]
    %v222 = vld [vmem:[%s0 + $0xc] sm:$0xf]
    %v223 = vld [vmem:[%s0 + $0x10] sm:$0xf]
    %v224 = vld [vmem:[%s0 + $0x14] sm:$0xf]
    %v225 = vld [vmem:[%s0 + $0x18] sm:$0xf]
    %v226 = vld [vmem:[%s0 + $0x1c] sm:$0xf]
    %v227 = vld [vmem:[%s0 + $0x20] sm:$0xf]
    %v228 = vld [vmem:[%s0 + $0x24] sm:$0xf]
    %v229 = vld [vmem:[%s0 + $0x28] sm:$0xf]
    %v230 = vld [vmem:[%s0 + $0x2c] sm:$0xf]
    %v231 = vld [vmem:[%s0 + $0x30] sm:$0xf]
    %v232 = vld [vmem:[%s0 + $0x34] sm:$0xf]
    %v233 = vld [vmem:[%s0 + $0x38] sm:$0xf]
    %v234 = vld [vmem:[%s0 + $0x3c] sm:$0xf]
    %v235 = vld [vmem:[%s0 + $0x40] sm:$0xf]
    %v236 = vld [vmem:[%s0 + $0x44] sm:$0xf]
    %v237 = vld [vmem:[%s0 + $0x48] sm:$0xf]
    %v238 = vld [vmem:[%s0 + $0x4c] sm:$0xf]
    %v239 = vld [vmem:[%s0 + $0x50] sm:$0xf]
    %v240 = vld [vmem:[%s0 + $0x54] sm:$0xf]
    %v241 = vld [vmem:[%s0 + $0x58] sm:$0xf]
    %v242 = vld [vmem:[%s0 + $0x5c] sm:$0xf]
    %v243 = vld [vmem:[%s0 + $0x60] sm:$0xf]
    %v244 = vld [vmem:[%s0 + $0x64] sm:$0xf]
    %v245 = vld [vmem:[%s0 + $0x68] sm:$0xf]
    %v246 = vld [vmem:[%s0 + $0x6c] sm:$0xf]
    %v247 = vld [vmem:[%s0 + $0x70] sm:$0xf]
    %v248 = vld [vmem:[%s0 + $0x74] sm:$0xf]
    %v249 = vld [vmem:[%s0 + $0x78] sm:$0xf]
    %v250 = vld [vmem:[%s0 + $0x7c] sm:$0xf]
    %v251 = vld [vmem:[%s0 + $0x80] sm:$0xf]
    %v252 = vld [vmem:[%s0 + $0x84] sm:$0xf]
    %v253 = vld [vmem:[%s0 + $0x88] sm:$0xf]
    %v254 = vld [vmem:[%s0 + $0x8c] sm:$0xf]
    %v255 = vld [vmem:[%s0 + $0x90] sm:$0xf]
    %v256 = vld [vmem:[%s0 + $0x94] sm:$0xf]
    %v257 = vld [vmem:[%s0 + $0x98] sm:$0xf]
    %v258 = vld [vmem:[%s0 + $0x9c] sm:$0xf]
    %v259 = vld [vmem:[%s0 + $0xa0] sm:$0xf]
    %v260 = vld [vmem:[%s0 + $0xa4] sm:$0xf]
    %v261 = vld [vmem:[%s0 + $0xa8] sm:$0xf]
    %v262 = vld [vmem:[%s0 + $0xac] sm:$0xf]
    %v263 = vld [vmem:[%s0 + $0xb0] sm:$0xf]
    %v264 = vld [vmem:[%s0 + $0xb4] sm:$0xf]
    %v265 = vld [vmem:[%s0 + $0xb8] sm:$0xf]
    %v266 = vld [vmem:[%s0 + $0xbc] sm:$0xf]
    %v267 = vld [vmem:[%s1] sm:$0x1]
    %v269 = vlaneseq
    %v270 = vshrl.u32 %v269, 7
    %v271 = vsub.s32 0, %v270
    %v272 = vrot.slane %v267, %v271
    %v282 = vunpack.c.l.b16 %v211
    %v283 = vunpack.c.h.b16 %v211
    %v284 = vunpack.c.l.b16 %v212
    %v285 = vunpack.c.l.b16 %v213
    %v286 = vunpack.c.h.b16 %v213
    %v287 = vunpack.c.l.b16 %v214
    %v288 = vunpack.c.l.b16 %v215
    %v289 = vunpack.c.h.b16 %v215
    %v290 = vunpack.c.l.b16 %v216
    %v291 = vunpack.c.l.b16 %v217
    %v292 = vunpack.c.h.b16 %v217
    %v293 = vunpack.c.l.b16 %v218
    %v294 = vpack.c.b16 %v285, %v282
    %v295 = vpack.c.b16 %v286, %v283
    %v296 = vpack.c.b16 %v287, %v284
    %v297 = vpack.c.b16 %v291, %v288
    %v298 = vpack.c.b16 %v292, %v289
    %v299 = vpack.c.b16 %v293, %v290
    %v354 = vunpack.c.l.b16 %v219
    %v355 = vunpack.c.l.b16 %v220
    %v356 = vunpack.c.l.b16 %v221
    %v357 = vunpack.c.l.b16 %v222
    %v358 = vunpack.c.l.b16 %v223
    %v359 = vunpack.c.l.b16 %v224
    %v360 = vunpack.c.l.b16 %v225
    %v361 = vunpack.c.l.b16 %v226
    %v362 = vunpack.c.l.b16 %v227
    %v363 = vunpack.c.l.b16 %v228
    %v364 = vunpack.c.l.b16 %v229
    %v365 = vunpack.c.l.b16 %v230
    %v366 = vunpack.c.l.b16 %v231
    %v367 = vunpack.c.l.b16 %v232
    %v368 = vunpack.c.l.b16 %v233
    %v369 = vunpack.c.l.b16 %v234
    %v370 = vunpack.c.l.b16 %v235
    %v371 = vunpack.c.l.b16 %v236
    %v372 = vunpack.c.l.b16 %v237
    %v373 = vunpack.c.l.b16 %v238
    %v374 = vunpack.c.l.b16 %v239
    %v375 = vunpack.c.l.b16 %v240
    %v376 = vunpack.c.l.b16 %v241
    %v377 = vunpack.c.l.b16 %v242
    %v378 = vunpack.c.l.b16 %v243
    %v379 = vunpack.c.l.b16 %v244
    %v380 = vunpack.c.l.b16 %v245
    %v381 = vunpack.c.l.b16 %v246
    %v382 = vunpack.c.l.b16 %v247
    %v383 = vunpack.c.l.b16 %v248
    %v384 = vunpack.c.l.b16 %v249
    %v385 = vunpack.c.l.b16 %v250
    %v386 = vunpack.c.l.b16 %v251
    %v387 = vunpack.c.l.b16 %v252
    %v388 = vunpack.c.l.b16 %v253
    %v389 = vunpack.c.l.b16 %v254
    %v390 = vunpack.c.l.b16 %v255
    %v391 = vunpack.c.l.b16 %v256
    %v392 = vunpack.c.l.b16 %v257
    %v393 = vunpack.c.l.b16 %v258
    %v394 = vunpack.c.l.b16 %v259
    %v395 = vunpack.c.l.b16 %v260
    %v396 = vunpack.c.l.b16 %v261
    %v397 = vunpack.c.l.b16 %v262
    %v398 = vunpack.c.l.b16 %v263
    %v399 = vunpack.c.l.b16 %v264
    %v400 = vunpack.c.l.b16 %v265
    %v401 = vunpack.c.l.b16 %v266
    %v402 = vpack.c.b16 %v355, %v354
    %v403 = vpack.c.b16 %v357, %v356
    %v404 = vpack.c.b16 %v359, %v358
    %v405 = vpack.c.b16 %v361, %v360
    %v406 = vpack.c.b16 %v363, %v362
    %v407 = vpack.c.b16 %v365, %v364
    %v408 = vpack.c.b16 %v367, %v366
    %v409 = vpack.c.b16 %v369, %v368
    %v410 = vpack.c.b16 %v371, %v370
    %v411 = vpack.c.b16 %v373, %v372
    %v412 = vpack.c.b16 %v375, %v374
    %v413 = vpack.c.b16 %v377, %v376
    %v414 = vpack.c.b16 %v379, %v378
    %v415 = vpack.c.b16 %v381, %v380
    %v416 = vpack.c.b16 %v383, %v382
    %v417 = vpack.c.b16 %v385, %v384
    %v418 = vpack.c.b16 %v387, %v386
    %v419 = vpack.c.b16 %v389, %v388
    %v420 = vpack.c.b16 %v391, %v390
    %v421 = vpack.c.b16 %v393, %v392
    %v422 = vpack.c.b16 %v395, %v394
    %v423 = vpack.c.b16 %v397, %v396
    %v424 = vpack.c.b16 %v399, %v398
    %v425 = vpack.c.b16 %v401, %v400
    %450 = vmatprep.subr.bf16.mxu0 0
    %451 = vmatpush1.bf16.msra.mxu0 %v402
    %452 = vmatprep.subr.bf16.mxu0 0
    %453 = vmatpush1.bf16.msra.mxu0 %v403
    %454 = vmatprep.subr.bf16.mxu0 0
    %455 = vmatpush1.bf16.msra.mxu0 %v404
    %456 = vmatprep.subr.bf16.mxu0 0
    %457 = vmatpush1.bf16.msra.mxu0 %v405
    %458 = vmatprep.subr.bf16.mxu0 0
    %459 = vmatpush1.bf16.msra.mxu0 %v406
    %460 = vmatprep.subr.bf16.mxu0 0
    %461 = vmatpush1.bf16.msra.mxu0 %v407
    %462 = vmatprep.subr.bf16.mxu0 0
    %463 = vmatpush1.bf16.msra.mxu0 %v408
    %464 = vmatprep.subr.bf16.mxu0 0
    %465 = vmatpush1.bf16.msra.mxu0 %v409
    %466 = vmatprep.subr.bf16.mxu0 0
    %467 = vmatpush1.bf16.msra.mxu0 %v410
    %468 = vmatprep.subr.bf16.mxu0 0
    %469 = vmatpush1.bf16.msra.mxu0 %v411
    %470 = vmatprep.subr.bf16.mxu0 0
    %471 = vmatpush1.bf16.msra.mxu0 %v412
    %472 = vmatprep.subr.bf16.mxu0 0
    %473 = vmatpush1.bf16.msra.mxu0 %v413
    %474 = vmatprep.subr.bf16.mxu0 0
    %475 = vmatpush1.bf16.msra.mxu0 %v414
    %476 = vmatprep.subr.bf16.mxu0 0
    %477 = vmatpush1.bf16.msra.mxu0 %v415
    %478 = vmatprep.subr.bf16.mxu0 0
    %479 = vmatpush1.bf16.msra.mxu0 %v416
    %480 = vmatprep.subr.bf16.mxu0 0
    %481 = vmatpush1.bf16.msra.mxu0 %v417
    %482 = vmatprep.mubr.bf16.mxu0 %v295
    %483 = vmatmul.mubr.bf16.gmra.mrb[0].mxu0 %v294
    %v484 = vpop.f32.mrb[0].mxu0
    %v485 = vadd.f32 %v272, %v484
    %v486 = vpop.f32.mrb[0].mxu0
    %v487 = vpop.f32.mrb[0].mxu0
    %v488 = vadd.f32 %v272, %v487
    %v489 = vpop.f32.mrb[0].mxu0
    %490 = vmatprep.mubr.bf16.mxu0 %v298
    %491 = vmatmul.mubr.bf16.gmra.mrb[0].mxu0 %v297
    %v492 = vpop.f32.mrb[0].mxu0
    %v493 = vadd.f32 %v272, %v492
    %v494 = vpop.f32.mrb[0].mxu0
    %v495 = vpop.f32.mrb[0].mxu0
    %v496 = vadd.f32 %v272, %v495
    %v497 = vpop.f32.mrb[0].mxu0
    %498 = vdwg.mxu0
    %499 = vmatprep.subr.bf16.mxu0 0
    %500 = vmatpush1.bf16.msra.mxu0 %v418
    %501 = vmatprep.subr.bf16.mxu0 0
    %502 = vmatpush1.bf16.msra.mxu0 %v419
    %503 = vmatprep.subr.bf16.mxu0 0
    %504 = vmatpush1.bf16.msra.mxu0 %v420
    %505 = vmatprep.subr.bf16.mxu0 0
    %506 = vmatpush1.bf16.msra.mxu0 %v421
    %507 = vmatprep.subr.bf16.mxu0 0
    %508 = vmatpush1.bf16.msra.mxu0 %v422
    %509 = vmatprep.subr.bf16.mxu0 0
    %510 = vmatpush1.bf16.msra.mxu0 %v423
    %511 = vmatprep.subr.bf16.mxu0 0
    %512 = vmatpush1.bf16.msra.mxu0 %v424
    %513 = vmatprep.subr.bf16.mxu0 0
    %514 = vmatpush1.bf16.msra.mxu0 %v425
    %515 = vmatprep.subr.bf16.mxu0 0
    %516 = vmatpush1.bf16.msra.mxu0 0
    %517 = vmatprep.subr.bf16.mxu0 0
    %518 = vmatpush1.bf16.msra.mxu0 0
    %519 = vmatprep.subr.bf16.mxu0 0
    %520 = vmatpush1.bf16.msra.mxu0 0
    %521 = vmatprep.subr.bf16.mxu0 0
    %522 = vmatpush1.bf16.msra.mxu0 0
    %523 = vmatprep.subr.bf16.mxu0 0
    %524 = vmatpush1.bf16.msra.mxu0 0
    %525 = vmatprep.subr.bf16.mxu0 0
    %526 = vmatpush1.bf16.msra.mxu0 0
    %527 = vmatprep.subr.bf16.mxu0 0
    %528 = vmatpush1.bf16.msra.mxu0 0
    %529 = vmatprep.subr.bf16.mxu0 0
    %530 = vmatpush1.bf16.msra.mxu0 0
    %531 = vmatprep.mubr.bf16.mxu0 0
    %532 = vmatmul.mubr.bf16.gmra.mrb[0].mxu0 %v296
    %v533 = vpop.f32.mrb[0].mxu0
    %v534 = vadd.f32 %v485, %v533
    %v535 = vpop.f32.mrb[0].mxu0
    %v536 = vpop.f32.mrb[0].mxu0
    %v537 = vadd.f32 %v488, %v536
    %v538 = vpop.f32.mrb[0].mxu0
    %539 = vmatprep.mubr.bf16.mxu0 0
    %540 = vmatmul.mubr.bf16.gmra.mrb[0].mxu0 %v299
    %v541 = vpop.f32.mrb[0].mxu0
    %v542 = vadd.f32 %v493, %v541
    %v543 = vpop.f32.mrb[0].mxu0
    %v544 = vpop.f32.mrb[0].mxu0
    %v545 = vadd.f32 %v496, %v544
    %v546 = vpop.f32.mrb[0].mxu0
    %547 = vdwg.mxu0
    %v548 = vpack.c.bf16 %v537, %v534
    %v549 = vpack.c.bf16 %v545, %v542
    %v552 = vunpack.c.l.b16 %v548
    %v553 = vunpack.c.h.b16 %v548
    %v554 = vunpack.c.l.b16 %v549
    %v555 = vunpack.c.h.b16 %v549
    %v556 = vpack.c.b16 %v552, %v552
    %v557 = vpack.c.b16 %v553, %v553
    %v558 = vpack.c.b16 %v554, %v554
    %v559 = vpack.c.b16 %v555, %v555
    %564 = vst [vmem:[%s4] sm:$0xf] %v556
    %565 = vst [vmem:[%s4 + $0x4] sm:$0xf] %v557
    %566 = vst [vmem:[%s4 + $0x8] sm:$0xf] %v558
    %567 = vst [vmem:[%s4 + $0xc] sm:$0xf] %v559
    // Predicated region
    $region14: #{vqvae_forward.39} parent=1 // pred_check
      _
    $region15: #{vqvae_forward.39} parent=1 // pred_check_branch
      %569 = sbr.rel (0) target = $region17
    $region16: #{vqvae_forward.39} parent=1 // pred_region
      _
    $region17: #{vqvae_forward.39} parent=1 // pred_fallthru
      _
    // Predicated region
    $region18: #{vqvae_forward.39} parent=1 // pred_check
      _
    $region19: #{vqvae_forward.39} parent=1 // pred_check_branch
      %571 = sbr.rel (0) target = $region21
    $region20: #{vqvae_forward.39} parent=1 // pred_region
      _
    $region21: #{vqvae_forward.39} parent=1 // pred_fallthru
      _

// kernel: vqvae_forward.38
$region0: #{vqvae_forward.38}
  #allocation0 [shape = 'u32[]', space=smem, size = 0x4, offset = 0x4, fixed_abs, tag = 'smem constant byte address 0x4 - core index']
  #allocation1 [shape = 'u32[144,128]{1,0:T(1,128)}', space=vmem, size = 0x12000, scoped, tag = 'internal scratch']
  #allocation2 [shape = 'u32[2048]{0}', space=vmem, size = 0x2000, scoped, tag = 'scoped memory for vqvae_forward.38']
  #allocation3 [shape = 'u32[2048]{0}', space=vmem, size = 0x2000, scoped, tag = 'scoped memory for vqvae_forward.38']
  #allocation4 [shape = 'u32[2048]{0}', space=vmem, size = 0x2000, scoped, tag = 'scoped memory for vqvae_forward.38']
  #allocation5 [shape = 'u32[2048]{0}', space=vmem, size = 0x2000, scoped, tag = 'scoped memory for vqvae_forward.38']
  #allocation6 [shape = 'u32[2048]{0}', space=vmem, size = 0x2000, scoped, tag = 'scoped memory for vqvae_forward.38']
  %s0 = inlined_call_operand.vmem [shape: bf16[384,128], index: 0, kind: input, shape index: {}]
  %s1 = inlined_call_operand.vmem [shape: f32[1,128], index: 1, kind: input, shape index: {}]
  %s2 = inlined_call_operand.vmem [shape: bf16[32,288], index: 2, kind: input, shape index: {}]
  %s3 = inlined_call_operand.<no memory space> [shape: bf16[], index: 3, kind: input, shape index: {}]
  %s4 = inlined_call_operand.vmem [shape: bf16[32,128], index: 4, kind: output, shape index: {}]
  %s5 = sld [smem:[#allocation0]]
  $region22: #{vqvae_forward.38} parent=0
    _
  %s7 = ssub.s32 1, %s5
  %s8 = scalar_select 0, %s7, %s5
  %v9 = vstv %s3
  %v10 = vunpack.i.l.bf16 %v9
  %v12 = vunpack.i.h.bf16 %v9
  $region1: #{vqvae_forward.38} parent=0
    #allocation7 [shape = 'u8[24576]{0}', space=vmem, size = 0x6000, dematerialized = true, scoped, tag = 'FusionAdapter Buffer %fusion.14 = bf16[32,384]{1,0:T(8,128)(2,1)} fusion(%param_2.13, %param_3.6), kind=kLoop, calls=%fused_computation.82.clone, metadata={op_name="jit(vqvae_forward)/jit(_pad)/pad" stack_frame_id=102}']
    // Predicated region
    $region2: #{vqvae_forward.38} parent=1 // pred_check
      _
    $region3: #{vqvae_forward.38} parent=1 // pred_check_branch
      %15 = sbr.rel (0) target = $region5
    $region4: #{vqvae_forward.38} parent=1 // pred_region
      _
    $region5: #{vqvae_forward.38} parent=1 // pred_fallthru
      _
    // Predicated region
    $region6: #{vqvae_forward.38} parent=1 // pred_check
      _
    $region7: #{vqvae_forward.38} parent=1 // pred_check_branch
      %17 = sbr.rel (0) target = $region9
    $region8: #{vqvae_forward.38} parent=1 // pred_region
      _
    $region9: #{vqvae_forward.38} parent=1 // pred_fallthru
      _
    // Predicated region
    $region10: #{vqvae_forward.38} parent=1 // pred_check
      _
    $region11: #{vqvae_forward.38} parent=1 // pred_check_branch
      %19 = sbr.rel (0) target = $region13
    $region12: #{vqvae_forward.38} parent=1 // pred_region
      _
    $region13: #{vqvae_forward.38} parent=1 // pred_fallthru
      _
    %v20 = vld [vmem:[%s2] sm:$0xf]
    %v21 = vunpack.c.l.bf16 %v20
    %v22 = vunpack.c.h.bf16 %v20
    %v23 = vlaneseq
    %v24 = vand.u32 %v23, 127
    %vm26 = vcmp.lt.s32.totalorder %v24, 288
    %v27 = vsel %vm26, %v21, %v10
    %v28 = vpack.c.bf16 0.0, %v27
    %30 = vst [vmem:[#allocation7] sm:$0xf] %v28
    %s31 = scalar_lea.vmem %s2, 4
    %v32 = vld [vmem:[%s31] sm:$0xf]
    %v33 = vunpack.c.l.bf16 %v32
    %v34 = vunpack.c.h.bf16 %v32
    %v35 = vlaneseq
    %v36 = vand.u32 %v35, 127
    %v37 = vadd.s32 %v36, 128
    %vm38 = vcmp.lt.s32.totalorder %v37, 288
    %v39 = vsel %vm38, %v33, %v10
    %s40 = scalar_lea.vmem [#allocation7], 4
    %v41 = vpack.c.bf16 0.0, %v39
    %43 = vst [vmem:[%s40] sm:$0xf] %v41
    %s44 = scalar_lea.vmem %s2, 8
    %s46 = sor.u32 255, 127
    %s47 = sand.u32 %s46, 85
    %s48 = sshrl.u32 %s47, 1
    %s49 = sor.u32 %s47, %s48
    %s50 = sand.u32 51, %s49
    %s51 = sshrl.u32 %s50, 2
    %s52 = sor.u32 %s50, %s51
    %s53 = sand.u32 15, %s52
    %v54 = vld [vmem:[%s44] sm:%s53]
    %v55 = vunpack.c.l.bf16 %v54
    %v56 = vunpack.c.h.bf16 %v54
    %v57 = vlaneseq
    %v58 = vand.u32 %v57, 127
    %v59 = vadd.s32 %v58, 256
    %vm60 = vcmp.lt.s32.totalorder %v59, 288
    %v61 = vsel %vm60, %v55, %v10
    %s62 = scalar_lea.vmem [#allocation7], 8
    %v63 = vpack.c.bf16 0.0, %v61
    %65 = vst [vmem:[%s62] sm:$0xf] %v63
    %s66 = scalar_lea.vmem %s2, 12
    %v67 = vld [vmem:[%s66] sm:$0xf]
    %v68 = vunpack.c.l.bf16 %v67
    %v69 = vunpack.c.h.bf16 %v67
    %v70 = vlaneseq
    %v71 = vand.u32 %v70, 127
    %vm73 = vcmp.lt.s32.totalorder %v71, 288
    %v74 = vsel %vm73, %v68, %v10
    %s75 = scalar_lea.vmem [#allocation7], 12
    %v76 = vpack.c.bf16 0.0, %v74
    %78 = vst [vmem:[%s75] sm:$0xf] %v76
    %s79 = scalar_lea.vmem %s2, 16
    %v80 = vld [vmem:[%s79] sm:$0xf]
    %v81 = vunpack.c.l.bf16 %v80
    %v82 = vunpack.c.h.bf16 %v80
    %v83 = vlaneseq
    %v84 = vand.u32 %v83, 127
    %v85 = vadd.s32 %v84, 128
    %vm86 = vcmp.lt.s32.totalorder %v85, 288
    %v87 = vsel %vm86, %v81, %v10
    %s88 = scalar_lea.vmem [#allocation7], 16
    %v89 = vpack.c.bf16 0.0, %v87
    %91 = vst [vmem:[%s88] sm:$0xf] %v89
    %s92 = scalar_lea.vmem %s2, 20
    %s94 = sor.u32 255, 127
    %s95 = sand.u32 %s94, 85
    %s96 = sshrl.u32 %s95, 1
    %s97 = sor.u32 %s95, %s96
    %s98 = sand.u32 51, %s97
    %s99 = sshrl.u32 %s98, 2
    %s100 = sor.u32 %s98, %s99
    %s101 = sand.u32 15, %s100
    %v102 = vld [vmem:[%s92] sm:%s101]
    %v103 = vunpack.c.l.bf16 %v102
    %v104 = vunpack.c.h.bf16 %v102
    %v105 = vlaneseq
    %v106 = vand.u32 %v105, 127
    %v107 = vadd.s32 %v106, 256
    %vm108 = vcmp.lt.s32.totalorder %v107, 288
    %v109 = vsel %vm108, %v103, %v10
    %s110 = scalar_lea.vmem [#allocation7], 20
    %v111 = vpack.c.bf16 0.0, %v109
    %113 = vst [vmem:[%s110] sm:$0xf] %v111
    %s114 = scalar_lea.vmem %s2, 24
    %v115 = vld [vmem:[%s114] sm:$0xf]
    %v116 = vunpack.c.l.bf16 %v115
    %v117 = vunpack.c.h.bf16 %v115
    %v118 = vlaneseq
    %v119 = vand.u32 %v118, 127
    %vm121 = vcmp.lt.s32.totalorder %v119, 288
    %v122 = vsel %vm121, %v116, %v10
    %s123 = scalar_lea.vmem [#allocation7], 24
    %v124 = vpack.c.bf16 0.0, %v122
    %126 = vst [vmem:[%s123] sm:$0xf] %v124
    %s127 = scalar_lea.vmem %s2, 28
    %v128 = vld [vmem:[%s127] sm:$0xf]
    %v129 = vunpack.c.l.bf16 %v128
    %v130 = vunpack.c.h.bf16 %v128
    %v131 = vlaneseq
    %v132 = vand.u32 %v131, 127
    %v133 = vadd.s32 %v132, 128
    %vm134 = vcmp.lt.s32.totalorder %v133, 288
    %v135 = vsel %vm134, %v129, %v10
    %s136 = scalar_lea.vmem [#allocation7], 28
    %v137 = vpack.c.bf16 0.0, %v135
    %139 = vst [vmem:[%s136] sm:$0xf] %v137
    %s140 = scalar_lea.vmem %s2, 32
    %s142 = sor.u32 255, 127
    %s143 = sand.u32 %s142, 85
    %s144 = sshrl.u32 %s143, 1
    %s145 = sor.u32 %s143, %s144
    %s146 = sand.u32 51, %s145
    %s147 = sshrl.u32 %s146, 2
    %s148 = sor.u32 %s146, %s147
    %s149 = sand.u32 15, %s148
    %v150 = vld [vmem:[%s140] sm:%s149]
    %v151 = vunpack.c.l.bf16 %v150
    %v152 = vunpack.c.h.bf16 %v150
    %v153 = vlaneseq
    %v154 = vand.u32 %v153, 127
    %v155 = vadd.s32 %v154, 256
    %vm156 = vcmp.lt.s32.totalorder %v155, 288
    %v157 = vsel %vm156, %v151, %v10
    %s158 = scalar_lea.vmem [#allocation7], 32
    %v159 = vpack.c.bf16 0.0, %v157
    %161 = vst [vmem:[%s158] sm:$0xf] %v159
    %s162 = scalar_lea.vmem %s2, 36
    %v163 = vld [vmem:[%s162] sm:$0xf]
    %v164 = vunpack.c.l.bf16 %v163
    %v165 = vunpack.c.h.bf16 %v163
    %v166 = vlaneseq
    %v167 = vand.u32 %v166, 127
    %vm169 = vcmp.lt.s32.totalorder %v167, 288
    %v170 = vsel %vm169, %v164, %v10
    %s171 = scalar_lea.vmem [#allocation7], 36
    %v172 = vpack.c.bf16 0.0, %v170
    %174 = vst [vmem:[%s171] sm:$0xf] %v172
    %s175 = scalar_lea.vmem %s2, 40
    %v176 = vld [vmem:[%s175] sm:$0xf]
    %v177 = vunpack.c.l.bf16 %v176
    %v178 = vunpack.c.h.bf16 %v176
    %v179 = vlaneseq
    %v180 = vand.u32 %v179, 127
    %v181 = vadd.s32 %v180, 128
    %vm182 = vcmp.lt.s32.totalorder %v181, 288
    %v183 = vsel %vm182, %v177, %v10
    %s184 = scalar_lea.vmem [#allocation7], 40
    %v185 = vpack.c.bf16 0.0, %v183
    %187 = vst [vmem:[%s184] sm:$0xf] %v185
    %s188 = scalar_lea.vmem %s2, 44
    %s190 = sor.u32 255, 127
    %s191 = sand.u32 %s190, 85
    %s192 = sshrl.u32 %s191, 1
    %s193 = sor.u32 %s191, %s192
    %s194 = sand.u32 51, %s193
    %s195 = sshrl.u32 %s194, 2
    %s196 = sor.u32 %s194, %s195
    %s197 = sand.u32 15, %s196
    %v198 = vld [vmem:[%s188] sm:%s197]
    %v199 = vunpack.c.l.bf16 %v198
    %v200 = vunpack.c.h.bf16 %v198
    %v201 = vlaneseq
    %v202 = vand.u32 %v201, 127
    %v203 = vadd.s32 %v202, 256
    %vm204 = vcmp.lt.s32.totalorder %v203, 288
    %v205 = vsel %vm204, %v199, %v10
    %s206 = scalar_lea.vmem [#allocation7], 44
    %v207 = vpack.c.bf16 0.0, %v205
    %209 = vst [vmem:[%s206] sm:$0xf] %v207
    %v211 = vld [vmem:[#allocation7] sm:$0xff]
    %v212 = vld [vmem:[#allocation7 + $0x8] sm:$0xf]
    %v213 = vld [vmem:[#allocation7 + $0xc] sm:$0xff]
    %v214 = vld [vmem:[#allocation7 + $0x14] sm:$0xf]
    %v215 = vld [vmem:[#allocation7 + $0x18] sm:$0xff]
    %v216 = vld [vmem:[#allocation7 + $0x20] sm:$0xf]
    %v217 = vld [vmem:[#allocation7 + $0x24] sm:$0xff]
    %v218 = vld [vmem:[#allocation7 + $0x2c] sm:$0xf]
    %v219 = vmax.bf16 %v211, 0
    %v220 = vmax.bf16 %v212, 0
    %v221 = vmax.bf16 %v213, 0
    %v222 = vmax.bf16 %v214, 0
    %v223 = vmax.bf16 %v215, 0
    %v224 = vmax.bf16 %v216, 0
    %v225 = vmax.bf16 %v217, 0
    %v226 = vmax.bf16 %v218, 0
    %v227 = vld [vmem:[%s0] sm:$0xf]
    %v228 = vld [vmem:[%s0 + $0x4] sm:$0xf]
    %v229 = vld [vmem:[%s0 + $0x8] sm:$0xf]
    %v230 = vld [vmem:[%s0 + $0xc] sm:$0xf]
    %v231 = vld [vmem:[%s0 + $0x10] sm:$0xf]
    %v232 = vld [vmem:[%s0 + $0x14] sm:$0xf]
    %v233 = vld [vmem:[%s0 + $0x18] sm:$0xf]
    %v234 = vld [vmem:[%s0 + $0x1c] sm:$0xf]
    %v235 = vld [vmem:[%s0 + $0x20] sm:$0xf]
    %v236 = vld [vmem:[%s0 + $0x24] sm:$0xf]
    %v237 = vld [vmem:[%s0 + $0x28] sm:$0xf]
    %v238 = vld [vmem:[%s0 + $0x2c] sm:$0xf]
    %v239 = vld [vmem:[%s0 + $0x30] sm:$0xf]
    %v240 = vld [vmem:[%s0 + $0x34] sm:$0xf]
    %v241 = vld [vmem:[%s0 + $0x38] sm:$0xf]
    %v242 = vld [vmem:[%s0 + $0x3c] sm:$0xf]
    %v243 = vld [vmem:[%s0 + $0x40] sm:$0xf]
    %v244 = vld [vmem:[%s0 + $0x44] sm:$0xf]
    %v245 = vld [vmem:[%s0 + $0x48] sm:$0xf]
    %v246 = vld [vmem:[%s0 + $0x4c] sm:$0xf]
    %v247 = vld [vmem:[%s0 + $0x50] sm:$0xf]
    %v248 = vld [vmem:[%s0 + $0x54] sm:$0xf]
    %v249 = vld [vmem:[%s0 + $0x58] sm:$0xf]
    %v250 = vld [vmem:[%s0 + $0x5c] sm:$0xf]
    %v251 = vld [vmem:[%s0 + $0x60] sm:$0xf]
    %v252 = vld [vmem:[%s0 + $0x64] sm:$0xf]
    %v253 = vld [vmem:[%s0 + $0x68] sm:$0xf]
    %v254 = vld [vmem:[%s0 + $0x6c] sm:$0xf]
    %v255 = vld [vmem:[%s0 + $0x70] sm:$0xf]
    %v256 = vld [vmem:[%s0 + $0x74] sm:$0xf]
    %v257 = vld [vmem:[%s0 + $0x78] sm:$0xf]
    %v258 = vld [vmem:[%s0 + $0x7c] sm:$0xf]
    %v259 = vld [vmem:[%s0 + $0x80] sm:$0xf]
    %v260 = vld [vmem:[%s0 + $0x84] sm:$0xf]
    %v261 = vld [vmem:[%s0 + $0x88] sm:$0xf]
    %v262 = vld [vmem:[%s0 + $0x8c] sm:$0xf]
    %v263 = vld [vmem:[%s0 + $0x90] sm:$0xf]
    %v264 = vld [vmem:[%s0 + $0x94] sm:$0xf]
    %v265 = vld [vmem:[%s0 + $0x98] sm:$0xf]
    %v266 = vld [vmem:[%s0 + $0x9c] sm:$0xf]
    %v267 = vld [vmem:[%s0 + $0xa0] sm:$0xf]
    %v268 = vld [vmem:[%s0 + $0xa4] sm:$0xf]
    %v269 = vld [vmem:[%s0 + $0xa8] sm:$0xf]
    %v270 = vld [vmem:[%s0 + $0xac] sm:$0xf]
    %v271 = vld [vmem:[%s0 + $0xb0] sm:$0xf]
    %v272 = vld [vmem:[%s0 + $0xb4] sm:$0xf]
    %v273 = vld [vmem:[%s0 + $0xb8] sm:$0xf]
    %v274 = vld [vmem:[%s0 + $0xbc] sm:$0xf]
    %v275 = vld [vmem:[%s1] sm:$0x1]
    %v277 = vlaneseq
    %v278 = vshrl.u32 %v277, 7
    %v279 = vsub.s32 0, %v278
    %v280 = vrot.slane %v275, %v279
    %v290 = vunpack.c.l.b16 %v219
    %v291 = vunpack.c.h.b16 %v219
    %v292 = vunpack.c.l.b16 %v220
    %v293 = vunpack.c.l.b16 %v221
    %v294 = vunpack.c.h.b16 %v221
    %v295 = vunpack.c.l.b16 %v222
    %v296 = vunpack.c.l.b16 %v223
    %v297 = vunpack.c.h.b16 %v223
    %v298 = vunpack.c.l.b16 %v224
    %v299 = vunpack.c.l.b16 %v225
    %v300 = vunpack.c.h.b16 %v225
    %v301 = vunpack.c.l.b16 %v226
    %v302 = vpack.c.b16 %v293, %v290
    %v303 = vpack.c.b16 %v294, %v291
    %v304 = vpack.c.b16 %v295, %v292
    %v305 = vpack.c.b16 %v299, %v296
    %v306 = vpack.c.b16 %v300, %v297
    %v307 = vpack.c.b16 %v301, %v298
    %v362 = vunpack.c.l.b16 %v227
    %v363 = vunpack.c.l.b16 %v228
    %v364 = vunpack.c.l.b16 %v229
    %v365 = vunpack.c.l.b16 %v230
    %v366 = vunpack.c.l.b16 %v231
    %v367 = vunpack.c.l.b16 %v232
    %v368 = vunpack.c.l.b16 %v233
    %v369 = vunpack.c.l.b16 %v234
    %v370 = vunpack.c.l.b16 %v235
    %v371 = vunpack.c.l.b16 %v236
    %v372 = vunpack.c.l.b16 %v237
    %v373 = vunpack.c.l.b16 %v238
    %v374 = vunpack.c.l.b16 %v239
    %v375 = vunpack.c.l.b16 %v240
    %v376 = vunpack.c.l.b16 %v241
    %v377 = vunpack.c.l.b16 %v242
    %v378 = vunpack.c.l.b16 %v243
    %v379 = vunpack.c.l.b16 %v244
    %v380 = vunpack.c.l.b16 %v245
    %v381 = vunpack.c.l.b16 %v246
    %v382 = vunpack.c.l.b16 %v247
    %v383 = vunpack.c.l.b16 %v248
    %v384 = vunpack.c.l.b16 %v249
    %v385 = vunpack.c.l.b16 %v250
    %v386 = vunpack.c.l.b16 %v251
    %v387 = vunpack.c.l.b16 %v252
    %v388 = vunpack.c.l.b16 %v253
    %v389 = vunpack.c.l.b16 %v254
    %v390 = vunpack.c.l.b16 %v255
    %v391 = vunpack.c.l.b16 %v256
    %v392 = vunpack.c.l.b16 %v257
    %v393 = vunpack.c.l.b16 %v258
    %v394 = vunpack.c.l.b16 %v259
    %v395 = vunpack.c.l.b16 %v260
    %v396 = vunpack.c.l.b16 %v261
    %v397 = vunpack.c.l.b16 %v262
    %v398 = vunpack.c.l.b16 %v263
    %v399 = vunpack.c.l.b16 %v264
    %v400 = vunpack.c.l.b16 %v265
    %v401 = vunpack.c.l.b16 %v266
    %v402 = vunpack.c.l.b16 %v267
    %v403 = vunpack.c.l.b16 %v268
    %v404 = vunpack.c.l.b16 %v269
    %v405 = vunpack.c.l.b16 %v270
    %v406 = vunpack.c.l.b16 %v271
    %v407 = vunpack.c.l.b16 %v272
    %v408 = vunpack.c.l.b16 %v273
    %v409 = vunpack.c.l.b16 %v274
    %v410 = vpack.c.b16 %v363, %v362
    %v411 = vpack.c.b16 %v365, %v364
    %v412 = vpack.c.b16 %v367, %v366
    %v413 = vpack.c.b16 %v369, %v368
    %v414 = vpack.c.b16 %v371, %v370
    %v415 = vpack.c.b16 %v373, %v372
    %v416 = vpack.c.b16 %v375, %v374
    %v417 = vpack.c.b16 %v377, %v376
    %v418 = vpack.c.b16 %v379, %v378
    %v419 = vpack.c.b16 %v381, %v380
    %v420 = vpack.c.b16 %v383, %v382
    %v421 = vpack.c.b16 %v385, %v384
    %v422 = vpack.c.b16 %v387, %v386
    %v423 = vpack.c.b16 %v389, %v388
    %v424 = vpack.c.b16 %v391, %v390
    %v425 = vpack.c.b16 %v393, %v392
    %v426 = vpack.c.b16 %v395, %v394
    %v427 = vpack.c.b16 %v397, %v396
    %v428 = vpack.c.b16 %v399, %v398
    %v429 = vpack.c.b16 %v401, %v400
    %v430 = vpack.c.b16 %v403, %v402
    %v431 = vpack.c.b16 %v405, %v404
    %v432 = vpack.c.b16 %v407, %v406
    %v433 = vpack.c.b16 %v409, %v408
    %458 = vmatprep.subr.bf16.mxu0 0
    %459 = vmatpush1.bf16.msra.mxu0 %v410
    %460 = vmatprep.subr.bf16.mxu0 0
    %461 = vmatpush1.bf16.msra.mxu0 %v411
    %462 = vmatprep.subr.bf16.mxu0 0
    %463 = vmatpush1.bf16.msra.mxu0 %v412
    %464 = vmatprep.subr.bf16.mxu0 0
    %465 = vmatpush1.bf16.msra.mxu0 %v413
    %466 = vmatprep.subr.bf16.mxu0 0
    %467 = vmatpush1.bf16.msra.mxu0 %v414
    %468 = vmatprep.subr.bf16.mxu0 0
    %469 = vmatpush1.bf16.msra.mxu0 %v415
    %470 = vmatprep.subr.bf16.mxu0 0
    %471 = vmatpush1.bf16.msra.mxu0 %v416
    %472 = vmatprep.subr.bf16.mxu0 0
    %473 = vmatpush1.bf16.msra.mxu0 %v417
    %474 = vmatprep.subr.bf16.mxu0 0
    %475 = vmatpush1.bf16.msra.mxu0 %v418
    %476 = vmatprep.subr.bf16.mxu0 0
    %477 = vmatpush1.bf16.msra.mxu0 %v419
    %478 = vmatprep.subr.bf16.mxu0 0
    %479 = vmatpush1.bf16.msra.mxu0 %v420
    %480 = vmatprep.subr.bf16.mxu0 0
    %481 = vmatpush1.bf16.msra.mxu0 %v421
    %482 = vmatprep.subr.bf16.mxu0 0
    %483 = vmatpush1.bf16.msra.mxu0 %v422
    %484 = vmatprep.subr.bf16.mxu0 0
    %485 = vmatpush1.bf16.msra.mxu0 %v423
    %486 = vmatprep.subr.bf16.mxu0 0
    %487 = vmatpush1.bf16.msra.mxu0 %v424
    %488 = vmatprep.subr.bf16.mxu0 0
    %489 = vmatpush1.bf16.msra.mxu0 %v425
    %490 = vmatprep.mubr.bf16.mxu0 %v303
    %491 = vmatmul.mubr.bf16.gmra.mrb[0].mxu0 %v302
    %v492 = vpop.f32.mrb[0].mxu0
    %v493 = vadd.f32 %v280, %v492
    %v494 = vpop.f32.mrb[0].mxu0
    %v495 = vpop.f32.mrb[0].mxu0
    %v496 = vadd.f32 %v280, %v495
    %v497 = vpop.f32.mrb[0].mxu0
    %498 = vmatprep.mubr.bf16.mxu0 %v306
    %499 = vmatmul.mubr.bf16.gmra.mrb[0].mxu0 %v305
    %v500 = vpop.f32.mrb[0].mxu0
    %v501 = vadd.f32 %v280, %v500
    %v502 = vpop.f32.mrb[0].mxu0
    %v503 = vpop.f32.mrb[0].mxu0
    %v504 = vadd.f32 %v280, %v503
    %v505 = vpop.f32.mrb[0].mxu0
    %506 = vdwg.mxu0
    %507 = vmatprep.subr.bf16.mxu0 0
    %508 = vmatpush1.bf16.msra.mxu0 %v426
    %509 = vmatprep.subr.bf16.mxu0 0
    %510 = vmatpush1.bf16.msra.mxu0 %v427
    %511 = vmatprep.subr.bf16.mxu0 0
    %512 = vmatpush1.bf16.msra.mxu0 %v428
    %513 = vmatprep.subr.bf16.mxu0 0
    %514 = vmatpush1.bf16.msra.mxu0 %v429
    %515 = vmatprep.subr.bf16.mxu0 0
    %516 = vmatpush1.bf16.msra.mxu0 %v430
    %517 = vmatprep.subr.bf16.mxu0 0
    %518 = vmatpush1.bf16.msra.mxu0 %v431
    %519 = vmatprep.subr.bf16.mxu0 0
    %520 = vmatpush1.bf16.msra.mxu0 %v432
    %521 = vmatprep.subr.bf16.mxu0 0
    %522 = vmatpush1.bf16.msra.mxu0 %v433
    %523 = vmatprep.subr.bf16.mxu0 0
    %524 = vmatpush1.bf16.msra.mxu0 0
    %525 = vmatprep.subr.bf16.mxu0 0
    %526 = vmatpush1.bf16.msra.mxu0 0
    %527 = vmatprep.subr.bf16.mxu0 0
    %528 = vmatpush1.bf16.msra.mxu0 0
    %529 = vmatprep.subr.bf16.mxu0 0
    %530 = vmatpush1.bf16.msra.mxu0 0
    %531 = vmatprep.subr.bf16.mxu0 0
    %532 = vmatpush1.bf16.msra.mxu0 0
    %533 = vmatprep.subr.bf16.mxu0 0
    %534 = vmatpush1.bf16.msra.mxu0 0
    %535 = vmatprep.subr.bf16.mxu0 0
    %536 = vmatpush1.bf16.msra.mxu0 0
    %537 = vmatprep.subr.bf16.mxu0 0
    %538 = vmatpush1.bf16.msra.mxu0 0
    %539 = vmatprep.mubr.bf16.mxu0 0
    %540 = vmatmul.mubr.bf16.gmra.mrb[0].mxu0 %v304
    %v541 = vpop.f32.mrb[0].mxu0
    %v542 = vadd.f32 %v493, %v541
    %v543 = vpop.f32.mrb[0].mxu0
    %v544 = vpop.f32.mrb[0].mxu0
    %v545 = vadd.f32 %v496, %v544
    %v546 = vpop.f32.mrb[0].mxu0
    %547 = vmatprep.mubr.bf16.mxu0 0
    %548 = vmatmul.mubr.bf16.gmra.mrb[0].mxu0 %v307
    %v549 = vpop.f32.mrb[0].mxu0
    %v550 = vadd.f32 %v501, %v549
    %v551 = vpop.f32.mrb[0].mxu0
    %v552 = vpop.f32.mrb[0].mxu0
    %v553 = vadd.f32 %v504, %v552
    %v554 = vpop.f32.mrb[0].mxu0
    %555 = vdwg.mxu0
    %v556 = vmax.f32 %v542, 0.0
    %v557 = vmax.f32 %v545, 0.0
    %v558 = vmax.f32 %v550, 0.0
    %v559 = vmax.f32 %v553, 0.0
    %v560 = vpack.c.bf16 %v557, %v556
    %v561 = vpack.c.bf16 %v559, %v558
    %v564 = vunpack.c.l.b16 %v560
    %v565 = vunpack.c.h.b16 %v560
    %v566 = vunpack.c.l.b16 %v561
    %v567 = vunpack.c.h.b16 %v561
    %v568 = vpack.c.b16 %v564, %v564
    %v569 = vpack.c.b16 %v565, %v565
    %v570 = vpack.c.b16 %v566, %v566
    %v571 = vpack.c.b16 %v567, %v567
    %576 = vst [vmem:[%s4] sm:$0xf] %v568
    %577 = vst [vmem:[%s4 + $0x4] sm:$0xf] %v569
    %578 = vst [vmem:[%s4 + $0x8] sm:$0xf] %v570
    %579 = vst [vmem:[%s4 + $0xc] sm:$0xf] %v571
    // Predicated region
    $region14: #{vqvae_forward.38} parent=1 // pred_check
      _
    $region15: #{vqvae_forward.38} parent=1 // pred_check_branch
      %581 = sbr.rel (0) target = $region17
    $region16: #{vqvae_forward.38} parent=1 // pred_region
      _
    $region17: #{vqvae_forward.38} parent=1 // pred_fallthru
      _
    // Predicated region
    $region18: #{vqvae_forward.38} parent=1 // pred_check
      _
    $region19: #{vqvae_forward.38} parent=1 // pred_check_branch
      %583 = sbr.rel (0) target = $region21
    $region20: #{vqvae_forward.38} parent=1 // pred_region
      _
    $region21: #{vqvae_forward.38} parent=1 // pred_fallthru
      _

// kernel: vqvae_forward.44
$region0: #{vqvae_forward.44}
  #allocation0 [shape = 'u32[]', space=smem, size = 0x4, offset = 0x4, fixed_abs, tag = 'smem constant byte address 0x4 - core index']
  #allocation1 [shape = 'u32[144,128]{1,0:T(1,128)}', space=vmem, size = 0x12000, scoped, tag = 'internal scratch']
  %s0 = inlined_call_operand.vmem [shape: bf16[128,128], index: 0, kind: input, shape index: {}]
  %s1 = inlined_call_operand.vmem [shape: f32[1,128], index: 1, kind: input, shape index: {}]
  %s2 = inlined_call_operand.vmem [shape: bf16[32,128], index: 2, kind: input, shape index: {}]
  %s3 = inlined_call_operand.vmem [shape: bf16[32,128], index: 3, kind: input, shape index: {}]
  %s4 = inlined_call_operand.vmem [shape: pred[128], index: 4, kind: input, shape index: {}]
  %s5 = inlined_call_operand.<no memory space> [shape: bf16[], index: 5, kind: input, shape index: {}]
  %s6 = inlined_call_operand.vmem [shape: bf16[32,128], index: 6, kind: output, shape index: {}]
  %s7 = sld [smem:[#allocation0]]
  $region30: #{vqvae_forward.44} parent=0
    _
  %s9 = ssub.s32 1, %s7
  %s10 = scalar_select 0, %s9, %s7
  %v11 = vstv %s5
  %v12 = vunpack.i.l.bf16 %v11
  %v14 = vunpack.i.h.bf16 %v11
  $region1: #{vqvae_forward.44} parent=0
    #allocation2 [shape = 'u8[8192]{0}', space=vmem, size = 0x2000, dematerialized = true, scoped, tag = 'FusionAdapter Buffer %fusion.26 = bf16[32,128]{1,0:T(8,128)(2,1)} fusion(%param_3.22, %param_4.13, %param_5.10), kind=kLoop, calls=%fused_computation.96.clone, metadata={op_name="jit(vqvae_forward)/jit(_pad)/pad" stack_frame_id=125}']
    // Predicated region
    $region2: #{vqvae_forward.44} parent=1 // pred_check
      _
    $region3: #{vqvae_forward.44} parent=1 // pred_check_branch
      %17 = sbr.rel (0) target = $region5
    $region4: #{vqvae_forward.44} parent=1 // pred_region
      _
    $region5: #{vqvae_forward.44} parent=1 // pred_fallthru
      _
    // Predicated region
    $region6: #{vqvae_forward.44} parent=1 // pred_check
      _
    $region7: #{vqvae_forward.44} parent=1 // pred_check_branch
      %19 = sbr.rel (0) target = $region9
    $region8: #{vqvae_forward.44} parent=1 // pred_region
      _
    $region9: #{vqvae_forward.44} parent=1 // pred_fallthru
      _
    // Predicated region
    $region10: #{vqvae_forward.44} parent=1 // pred_check
      _
    $region11: #{vqvae_forward.44} parent=1 // pred_check_branch
      %21 = sbr.rel (0) target = $region13
    $region12: #{vqvae_forward.44} parent=1 // pred_region
      _
    $region13: #{vqvae_forward.44} parent=1 // pred_fallthru
      _
    // Predicated region
    $region14: #{vqvae_forward.44} parent=1 // pred_check
      _
    $region15: #{vqvae_forward.44} parent=1 // pred_check_branch
      %23 = sbr.rel (0) target = $region17
    $region16: #{vqvae_forward.44} parent=1 // pred_region
      _
    $region17: #{vqvae_forward.44} parent=1 // pred_fallthru
      _
    // Predicated region
    $region18: #{vqvae_forward.44} parent=1 // pred_check
      _
    $region19: #{vqvae_forward.44} parent=1 // pred_check_branch
      %25 = sbr.rel (0) target = $region21
    $region20: #{vqvae_forward.44} parent=1 // pred_region
      _
    $region21: #{vqvae_forward.44} parent=1 // pred_fallthru
      _
    %v26 = vld [vmem:[%s3] sm:$0xf]
    %v27 = vunpack.c.l.bf16 %v26
    %v28 = vunpack.c.h.bf16 %v26
    %v29 = vld [vmem:[%s4] ss:$0 sm:$0xff]
    %v31 = vshra.s32 %v29, 0
    %v32 = vand.u32 %v31, 255
    %s33 = scalar_lea.vmem %s3, 4
    %v34 = vld [vmem:[%s33] sm:$0xf]
    %v35 = vunpack.c.l.bf16 %v34
    %v36 = vunpack.c.h.bf16 %v34
    %v37 = vpack.c.bf16 %v35, %v27
    %39 = xla_tuple %v32, %v32
    %v40 = vpack.c.bf16 %v12, %v12
    %v42 = vcvt.s32.f32 %v32
    %v43 = vcvt.s32.f32 %v32
    %v44 = vpack.c.bf16 %v43, %v42
    %46 = xla_tuple %v44, %v37, %v40
    %47 = xla_tuple %46
    %vm48 = vcmp.ne.s16.totalorder %v44, 0
    %v49 = vsel %vm48, %v37, %v40
    %50 = xla_tuple %v49
    %v51 = vunpack.c.l.bf16 %v49
    %v52 = vunpack.c.h.bf16 %v49
    %v53 = vpack.c.bf16 0.0, %v51
    %55 = vst [vmem:[#allocation2] sm:$0xf] %v53
    %s56 = scalar_lea.vmem [#allocation2], 4
    %v57 = vpack.c.bf16 0.0, %v52
    %59 = vst [vmem:[%s56] sm:$0xf] %v57
    %s60 = scalar_lea.vmem %s3, 8
    %v61 = vld [vmem:[%s60] sm:$0xf]
    %v62 = vunpack.c.l.bf16 %v61
    %v63 = vunpack.c.h.bf16 %v61
    %s64 = scalar_lea.vmem %s3, 12
    %v65 = vld [vmem:[%s64] sm:$0xf]
    %v66 = vunpack.c.l.bf16 %v65
    %v67 = vunpack.c.h.bf16 %v65
    %v68 = vpack.c.bf16 %v66, %v62
    %70 = xla_tuple %v32, %v32
    %v71 = vpack.c.bf16 %v12, %v12
    %v73 = vcvt.s32.f32 %v32
    %v74 = vcvt.s32.f32 %v32
    %v75 = vpack.c.bf16 %v74, %v73
    %77 = xla_tuple %v75, %v68, %v71
    %78 = xla_tuple %77
    %vm79 = vcmp.ne.s16.totalorder %v75, 0
    %v80 = vsel %vm79, %v68, %v71
    %81 = xla_tuple %v80
    %v82 = vunpack.c.l.bf16 %v80
    %v83 = vunpack.c.h.bf16 %v80
    %s84 = scalar_lea.vmem [#allocation2], 8
    %v85 = vpack.c.bf16 0.0, %v82
    %87 = vst [vmem:[%s84] sm:$0xf] %v85
    %s88 = scalar_lea.vmem [#allocation2], 12
    %v89 = vpack.c.bf16 0.0, %v83
    %91 = vst [vmem:[%s88] sm:$0xf] %v89
    %v93 = vld [vmem:[#allocation2] sm:$0xf]
    %v94 = vld [vmem:[#allocation2 + $0x4] sm:$0xf]
    %v95 = vld [vmem:[#allocation2 + $0x8] sm:$0xf]
    %v96 = vld [vmem:[#allocation2 + $0xc] sm:$0xf]
    %v97 = vld [vmem:[%s0] sm:$0xf]
    %v98 = vld [vmem:[%s0 + $0x4] sm:$0xf]
    %v99 = vld [vmem:[%s0 + $0x8] sm:$0xf]
    %v100 = vld [vmem:[%s0 + $0xc] sm:$0xf]
    %v101 = vld [vmem:[%s0 + $0x10] sm:$0xf]
    %v102 = vld [vmem:[%s0 + $0x14] sm:$0xf]
    %v103 = vld [vmem:[%s0 + $0x18] sm:$0xf]
    %v104 = vld [vmem:[%s0 + $0x1c] sm:$0xf]
    %v105 = vld [vmem:[%s0 + $0x20] sm:$0xf]
    %v106 = vld [vmem:[%s0 + $0x24] sm:$0xf]
    %v107 = vld [vmem:[%s0 + $0x28] sm:$0xf]
    %v108 = vld [vmem:[%s0 + $0x2c] sm:$0xf]
    %v109 = vld [vmem:[%s0 + $0x30] sm:$0xf]
    %v110 = vld [vmem:[%s0 + $0x34] sm:$0xf]
    %v111 = vld [vmem:[%s0 + $0x38] sm:$0xf]
    %v112 = vld [vmem:[%s0 + $0x3c] sm:$0xf]
    %v113 = vld [vmem:[%s1] sm:$0x1]
    %v115 = vlaneseq
    %v116 = vshrl.u32 %v115, 7
    %v117 = vsub.s32 0, %v116
    %v118 = vrot.slane %v113, %v117
    %v124 = vunpack.c.l.b16 %v93
    %v125 = vunpack.c.l.b16 %v94
    %v126 = vunpack.c.l.b16 %v95
    %v127 = vunpack.c.l.b16 %v96
    %v128 = vpack.c.b16 %v125, %v124
    %v129 = vpack.c.b16 %v127, %v126
    %v148 = vunpack.c.l.b16 %v97
    %v149 = vunpack.c.l.b16 %v98
    %v150 = vunpack.c.l.b16 %v99
    %v151 = vunpack.c.l.b16 %v100
    %v152 = vunpack.c.l.b16 %v101
    %v153 = vunpack.c.l.b16 %v102
    %v154 = vunpack.c.l.b16 %v103
    %v155 = vunpack.c.l.b16 %v104
    %v156 = vunpack.c.l.b16 %v105
    %v157 = vunpack.c.l.b16 %v106
    %v158 = vunpack.c.l.b16 %v107
    %v159 = vunpack.c.l.b16 %v108
    %v160 = vunpack.c.l.b16 %v109
    %v161 = vunpack.c.l.b16 %v110
    %v162 = vunpack.c.l.b16 %v111
    %v163 = vunpack.c.l.b16 %v112
    %v164 = vpack.c.b16 %v149, %v148
    %v165 = vpack.c.b16 %v151, %v150
    %v166 = vpack.c.b16 %v153, %v152
    %v167 = vpack.c.b16 %v155, %v154
    %v168 = vpack.c.b16 %v157, %v156
    %v169 = vpack.c.b16 %v159, %v158
    %v170 = vpack.c.b16 %v161, %v160
    %v171 = vpack.c.b16 %v163, %v162
    %180 = vmatprep.subr.bf16.mxu0 0
    %181 = vmatpush1.bf16.msra.mxu0 %v164
    %182 = vmatprep.subr.bf16.mxu0 0
    %183 = vmatpush1.bf16.msra.mxu0 %v165
    %184 = vmatprep.subr.bf16.mxu0 0
    %185 = vmatpush1.bf16.msra.mxu0 %v166
    %186 = vmatprep.subr.bf16.mxu0 0
    %187 = vmatpush1.bf16.msra.mxu0 %v167
    %188 = vmatprep.subr.bf16.mxu0 0
    %189 = vmatpush1.bf16.msra.mxu0 %v168
    %190 = vmatprep.subr.bf16.mxu0 0
    %191 = vmatpush1.bf16.msra.mxu0 %v169
    %192 = vmatprep.subr.bf16.mxu0 0
    %193 = vmatpush1.bf16.msra.mxu0 %v170
    %194 = vmatprep.subr.bf16.mxu0 0
    %195 = vmatpush1.bf16.msra.mxu0 %v171
    %196 = vmatprep.subr.bf16.mxu0 0
    %197 = vmatpush1.bf16.msra.mxu0 0
    %198 = vmatprep.subr.bf16.mxu0 0
    %199 = vmatpush1.bf16.msra.mxu0 0
    %200 = vmatprep.subr.bf16.mxu0 0
    %201 = vmatpush1.bf16.msra.mxu0 0
    %202 = vmatprep.subr.bf16.mxu0 0
    %203 = vmatpush1.bf16.msra.mxu0 0
    %204 = vmatprep.subr.bf16.mxu0 0
    %205 = vmatpush1.bf16.msra.mxu0 0
    %206 = vmatprep.subr.bf16.mxu0 0
    %207 = vmatpush1.bf16.msra.mxu0 0
    %208 = vmatprep.subr.bf16.mxu0 0
    %209 = vmatpush1.bf16.msra.mxu0 0
    %210 = vmatprep.subr.bf16.mxu0 0
    %211 = vmatpush1.bf16.msra.mxu0 0
    %212 = vmatprep.mubr.bf16.mxu0 0
    %213 = vmatmul.mubr.bf16.gmra.mrb[0].mxu0 %v128
    %v214 = vpop.f32.mrb[0].mxu0
    %v215 = vadd.f32 %v118, %v214
    %v216 = vpop.f32.mrb[0].mxu0
    %v217 = vpop.f32.mrb[0].mxu0
    %v218 = vadd.f32 %v118, %v217
    %v219 = vpop.f32.mrb[0].mxu0
    %220 = vmatprep.mubr.bf16.mxu0 0
    %221 = vmatmul.mubr.bf16.gmra.mrb[0].mxu0 %v129
    %v222 = vpop.f32.mrb[0].mxu0
    %v223 = vadd.f32 %v118, %v222
    %v224 = vpop.f32.mrb[0].mxu0
    %v225 = vpop.f32.mrb[0].mxu0
    %v226 = vadd.f32 %v118, %v225
    %v227 = vpop.f32.mrb[0].mxu0
    %228 = vdwg.mxu0
    %v229 = vld [vmem:[%s2] sm:$0xf]
    %v230 = vld [vmem:[%s2 + $0x4] sm:$0xf]
    %v231 = vld [vmem:[%s2 + $0x8] sm:$0xf]
    %v232 = vld [vmem:[%s2 + $0xc] sm:$0xf]
    %v233 = vunpack.c.l.bf16 %v229
    %v234 = vunpack.c.l.bf16 %v230
    %v235 = vunpack.c.l.bf16 %v231
    %v236 = vunpack.c.l.bf16 %v232
    %v237 = vadd.f32 %v215, %v233
    %v238 = vadd.f32 %v218, %v234
    %v239 = vadd.f32 %v223, %v235
    %v240 = vadd.f32 %v226, %v236
    %v241 = vmax.f32 %v237, 0.0
    %v242 = vmax.f32 %v238, 0.0
    %v243 = vmax.f32 %v239, 0.0
    %v244 = vmax.f32 %v240, 0.0
    %v245 = vpack.c.bf16 %v242, %v241
    %v246 = vpack.c.bf16 %v244, %v243
    %v249 = vunpack.c.l.b16 %v245
    %v250 = vunpack.c.h.b16 %v245
    %v251 = vunpack.c.l.b16 %v246
    %v252 = vunpack.c.h.b16 %v246
    %v253 = vpack.c.b16 %v249, %v249
    %v254 = vpack.c.b16 %v250, %v250
    %v255 = vpack.c.b16 %v251, %v251
    %v256 = vpack.c.b16 %v252, %v252
    %261 = vst [vmem:[%s6] sm:$0xf] %v253
    %262 = vst [vmem:[%s6 + $0x4] sm:$0xf] %v254
    %263 = vst [vmem:[%s6 + $0x8] sm:$0xf] %v255
    %264 = vst [vmem:[%s6 + $0xc] sm:$0xf] %v256
    // Predicated region
    $region22: #{vqvae_forward.44} parent=1 // pred_check
      _
    $region23: #{vqvae_forward.44} parent=1 // pred_check_branch
      %266 = sbr.rel (0) target = $region25
    $region24: #{vqvae_forward.44} parent=1 // pred_region
      _
    $region25: #{vqvae_forward.44} parent=1 // pred_fallthru
      _
    // Predicated region
    $region26: #{vqvae_forward.44} parent=1 // pred_check
      _
    $region27: #{vqvae_forward.44} parent=1 // pred_check_branch
      %268 = sbr.rel (0) target = $region29
    $region28: #{vqvae_forward.44} parent=1 // pred_region
      _
    $region29: #{vqvae_forward.44} parent=1 // pred_fallthru
      _

// kernel: vqvae_forward.45
$region0: #{vqvae_forward.45}
  #allocation0 [shape = 'u32[]', space=smem, size = 0x4, offset = 0x4, fixed_abs, tag = 'smem constant byte address 0x4 - core index']
  #allocation1 [shape = 'u32[144,128]{1,0:T(1,128)}', space=vmem, size = 0x12000, scoped, tag = 'internal scratch']
  %s0 = inlined_call_operand.vmem [shape: bf16[128,128], index: 0, kind: input, shape index: {}]
  %s1 = inlined_call_operand.vmem [shape: f32[1,128], index: 1, kind: input, shape index: {}]
  %s2 = inlined_call_operand.vmem [shape: bf16[32,128], index: 2, kind: input, shape index: {}]
  %s3 = inlined_call_operand.vmem [shape: bf16[32,128], index: 3, kind: input, shape index: {}]
  %s4 = inlined_call_operand.vmem [shape: pred[128], index: 4, kind: input, shape index: {}]
  %s5 = inlined_call_operand.<no memory space> [shape: bf16[], index: 5, kind: input, shape index: {}]
  %s6 = inlined_call_operand.vmem [shape: bf16[32,128], index: 6, kind: output, shape index: {}]
  %s7 = sld [smem:[#allocation0]]
  $region30: #{vqvae_forward.45} parent=0
    _
  %s9 = ssub.s32 1, %s7
  %s10 = scalar_select 0, %s9, %s7
  %v11 = vstv %s5
  %v12 = vunpack.i.l.bf16 %v11
  %v14 = vunpack.i.h.bf16 %v11
  $region1: #{vqvae_forward.45} parent=0
    #allocation2 [shape = 'u8[8192]{0}', space=vmem, size = 0x2000, dematerialized = true, scoped, tag = 'FusionAdapter Buffer %fusion.28 = bf16[32,128]{1,0:T(8,128)(2,1)} fusion(%param_3.21, %param_4.14, %param_5.11), kind=kLoop, calls=%fused_computation.98.clone, metadata={op_name="jit(vqvae_forward)/jit(_pad)/pad" stack_frame_id=125}']
    // Predicated region
    $region2: #{vqvae_forward.45} parent=1 // pred_check
      _
    $region3: #{vqvae_forward.45} parent=1 // pred_check_branch
      %17 = sbr.rel (0) target = $region5
    $region4: #{vqvae_forward.45} parent=1 // pred_region
      _
    $region5: #{vqvae_forward.45} parent=1 // pred_fallthru
      _
    // Predicated region
    $region6: #{vqvae_forward.45} parent=1 // pred_check
      _
    $region7: #{vqvae_forward.45} parent=1 // pred_check_branch
      %19 = sbr.rel (0) target = $region9
    $region8: #{vqvae_forward.45} parent=1 // pred_region
      _
    $region9: #{vqvae_forward.45} parent=1 // pred_fallthru
      _
    // Predicated region
    $region10: #{vqvae_forward.45} parent=1 // pred_check
      _
    $region11: #{vqvae_forward.45} parent=1 // pred_check_branch
      %21 = sbr.rel (0) target = $region13
    $region12: #{vqvae_forward.45} parent=1 // pred_region
      _
    $region13: #{vqvae_forward.45} parent=1 // pred_fallthru
      _
    // Predicated region
    $region14: #{vqvae_forward.45} parent=1 // pred_check
      _
    $region15: #{vqvae_forward.45} parent=1 // pred_check_branch
      %23 = sbr.rel (0) target = $region17
    $region16: #{vqvae_forward.45} parent=1 // pred_region
      _
    $region17: #{vqvae_forward.45} parent=1 // pred_fallthru
      _
    // Predicated region
    $region18: #{vqvae_forward.45} parent=1 // pred_check
      _
    $region19: #{vqvae_forward.45} parent=1 // pred_check_branch
      %25 = sbr.rel (0) target = $region21
    $region20: #{vqvae_forward.45} parent=1 // pred_region
      _
    $region21: #{vqvae_forward.45} parent=1 // pred_fallthru
      _
    %v26 = vld [vmem:[%s3] sm:$0xf]
    %v27 = vunpack.c.l.bf16 %v26
    %v28 = vunpack.c.h.bf16 %v26
    %v29 = vld [vmem:[%s4] ss:$0 sm:$0xff]
    %v31 = vshra.s32 %v29, 0
    %v32 = vand.u32 %v31, 255
    %s33 = scalar_lea.vmem %s3, 4
    %v34 = vld [vmem:[%s33] sm:$0xf]
    %v35 = vunpack.c.l.bf16 %v34
    %v36 = vunpack.c.h.bf16 %v34
    %v37 = vpack.c.bf16 %v35, %v27
    %39 = xla_tuple %v32, %v32
    %v40 = vpack.c.bf16 %v12, %v12
    %v42 = vcvt.s32.f32 %v32
    %v43 = vcvt.s32.f32 %v32
    %v44 = vpack.c.bf16 %v43, %v42
    %46 = xla_tuple %v44, %v37, %v40
    %47 = xla_tuple %46
    %vm48 = vcmp.ne.s16.totalorder %v44, 0
    %v49 = vsel %vm48, %v37, %v40
    %50 = xla_tuple %v49
    %v51 = vunpack.c.l.bf16 %v49
    %v52 = vunpack.c.h.bf16 %v49
    %v53 = vpack.c.bf16 0.0, %v51
    %55 = vst [vmem:[#allocation2] sm:$0xf] %v53
    %s56 = scalar_lea.vmem [#allocation2], 4
    %v57 = vpack.c.bf16 0.0, %v52
    %59 = vst [vmem:[%s56] sm:$0xf] %v57
    %s60 = scalar_lea.vmem %s3, 8
    %v61 = vld [vmem:[%s60] sm:$0xf]
    %v62 = vunpack.c.l.bf16 %v61
    %v63 = vunpack.c.h.bf16 %v61
    %s64 = scalar_lea.vmem %s3, 12
    %v65 = vld [vmem:[%s64] sm:$0xf]
    %v66 = vunpack.c.l.bf16 %v65
    %v67 = vunpack.c.h.bf16 %v65
    %v68 = vpack.c.bf16 %v66, %v62
    %70 = xla_tuple %v32, %v32
    %v71 = vpack.c.bf16 %v12, %v12
    %v73 = vcvt.s32.f32 %v32
    %v74 = vcvt.s32.f32 %v32
    %v75 = vpack.c.bf16 %v74, %v73
    %77 = xla_tuple %v75, %v68, %v71
    %78 = xla_tuple %77
    %vm79 = vcmp.ne.s16.totalorder %v75, 0
    %v80 = vsel %vm79, %v68, %v71
    %81 = xla_tuple %v80
    %v82 = vunpack.c.l.bf16 %v80
    %v83 = vunpack.c.h.bf16 %v80
    %s84 = scalar_lea.vmem [#allocation2], 8
    %v85 = vpack.c.bf16 0.0, %v82
    %87 = vst [vmem:[%s84] sm:$0xf] %v85
    %s88 = scalar_lea.vmem [#allocation2], 12
    %v89 = vpack.c.bf16 0.0, %v83
    %91 = vst [vmem:[%s88] sm:$0xf] %v89
    %v93 = vld [vmem:[#allocation2] sm:$0xf]
    %v94 = vld [vmem:[#allocation2 + $0x4] sm:$0xf]
    %v95 = vld [vmem:[#allocation2 + $0x8] sm:$0xf]
    %v96 = vld [vmem:[#allocation2 + $0xc] sm:$0xf]
    %v97 = vld [vmem:[%s0] sm:$0xf]
    %v98 = vld [vmem:[%s0 + $0x4] sm:$0xf]
    %v99 = vld [vmem:[%s0 + $0x8] sm:$0xf]
    %v100 = vld [vmem:[%s0 + $0xc] sm:$0xf]
    %v101 = vld [vmem:[%s0 + $0x10] sm:$0xf]
    %v102 = vld [vmem:[%s0 + $0x14] sm:$0xf]
    %v103 = vld [vmem:[%s0 + $0x18] sm:$0xf]
    %v104 = vld [vmem:[%s0 + $0x1c] sm:$0xf]
    %v105 = vld [vmem:[%s0 + $0x20] sm:$0xf]
    %v106 = vld [vmem:[%s0 + $0x24] sm:$0xf]
    %v107 = vld [vmem:[%s0 + $0x28] sm:$0xf]
    %v108 = vld [vmem:[%s0 + $0x2c] sm:$0xf]
    %v109 = vld [vmem:[%s0 + $0x30] sm:$0xf]
    %v110 = vld [vmem:[%s0 + $0x34] sm:$0xf]
    %v111 = vld [vmem:[%s0 + $0x38] sm:$0xf]
    %v112 = vld [vmem:[%s0 + $0x3c] sm:$0xf]
    %v113 = vld [vmem:[%s1] sm:$0x1]
    %v115 = vlaneseq
    %v116 = vshrl.u32 %v115, 7
    %v117 = vsub.s32 0, %v116
    %v118 = vrot.slane %v113, %v117
    %v124 = vunpack.c.l.b16 %v93
    %v125 = vunpack.c.l.b16 %v94
    %v126 = vunpack.c.l.b16 %v95
    %v127 = vunpack.c.l.b16 %v96
    %v128 = vpack.c.b16 %v125, %v124
    %v129 = vpack.c.b16 %v127, %v126
    %v148 = vunpack.c.l.b16 %v97
    %v149 = vunpack.c.l.b16 %v98
    %v150 = vunpack.c.l.b16 %v99
    %v151 = vunpack.c.l.b16 %v100
    %v152 = vunpack.c.l.b16 %v101
    %v153 = vunpack.c.l.b16 %v102
    %v154 = vunpack.c.l.b16 %v103
    %v155 = vunpack.c.l.b16 %v104
    %v156 = vunpack.c.l.b16 %v105
    %v157 = vunpack.c.l.b16 %v106
    %v158 = vunpack.c.l.b16 %v107
    %v159 = vunpack.c.l.b16 %v108
    %v160 = vunpack.c.l.b16 %v109
    %v161 = vunpack.c.l.b16 %v110
    %v162 = vunpack.c.l.b16 %v111
    %v163 = vunpack.c.l.b16 %v112
    %v164 = vpack.c.b16 %v149, %v148
    %v165 = vpack.c.b16 %v151, %v150
    %v166 = vpack.c.b16 %v153, %v152
    %v167 = vpack.c.b16 %v155, %v154
    %v168 = vpack.c.b16 %v157, %v156
    %v169 = vpack.c.b16 %v159, %v158
    %v170 = vpack.c.b16 %v161, %v160
    %v171 = vpack.c.b16 %v163, %v162
    %180 = vmatprep.subr.bf16.mxu0 0
    %181 = vmatpush1.bf16.msra.mxu0 %v164
    %182 = vmatprep.subr.bf16.mxu0 0
    %183 = vmatpush1.bf16.msra.mxu0 %v165
    %184 = vmatprep.subr.bf16.mxu0 0
    %185 = vmatpush1.bf16.msra.mxu0 %v166
    %186 = vmatprep.subr.bf16.mxu0 0
    %187 = vmatpush1.bf16.msra.mxu0 %v167
    %188 = vmatprep.subr.bf16.mxu0 0
    %189 = vmatpush1.bf16.msra.mxu0 %v168
    %190 = vmatprep.subr.bf16.mxu0 0
    %191 = vmatpush1.bf16.msra.mxu0 %v169
    %192 = vmatprep.subr.bf16.mxu0 0
    %193 = vmatpush1.bf16.msra.mxu0 %v170
    %194 = vmatprep.subr.bf16.mxu0 0
    %195 = vmatpush1.bf16.msra.mxu0 %v171
    %196 = vmatprep.subr.bf16.mxu0 0
    %197 = vmatpush1.bf16.msra.mxu0 0
    %198 = vmatprep.subr.bf16.mxu0 0
    %199 = vmatpush1.bf16.msra.mxu0 0
    %200 = vmatprep.subr.bf16.mxu0 0
    %201 = vmatpush1.bf16.msra.mxu0 0
    %202 = vmatprep.subr.bf16.mxu0 0
    %203 = vmatpush1.bf16.msra.mxu0 0
    %204 = vmatprep.subr.bf16.mxu0 0
    %205 = vmatpush1.bf16.msra.mxu0 0
    %206 = vmatprep.subr.bf16.mxu0 0
    %207 = vmatpush1.bf16.msra.mxu0 0
    %208 = vmatprep.subr.bf16.mxu0 0
    %209 = vmatpush1.bf16.msra.mxu0 0
    %210 = vmatprep.subr.bf16.mxu0 0
    %211 = vmatpush1.bf16.msra.mxu0 0
    %212 = vmatprep.mubr.bf16.mxu0 0
    %213 = vmatmul.mubr.bf16.gmra.mrb[0].mxu0 %v128
    %v214 = vpop.f32.mrb[0].mxu0
    %v215 = vadd.f32 %v118, %v214
    %v216 = vpop.f32.mrb[0].mxu0
    %v217 = vpop.f32.mrb[0].mxu0
    %v218 = vadd.f32 %v118, %v217
    %v219 = vpop.f32.mrb[0].mxu0
    %220 = vmatprep.mubr.bf16.mxu0 0
    %221 = vmatmul.mubr.bf16.gmra.mrb[0].mxu0 %v129
    %v222 = vpop.f32.mrb[0].mxu0
    %v223 = vadd.f32 %v118, %v222
    %v224 = vpop.f32.mrb[0].mxu0
    %v225 = vpop.f32.mrb[0].mxu0
    %v226 = vadd.f32 %v118, %v225
    %v227 = vpop.f32.mrb[0].mxu0
    %228 = vdwg.mxu0
    %v229 = vld [vmem:[%s2] sm:$0xf]
    %v230 = vld [vmem:[%s2 + $0x4] sm:$0xf]
    %v231 = vld [vmem:[%s2 + $0x8] sm:$0xf]
    %v232 = vld [vmem:[%s2 + $0xc] sm:$0xf]
    %v233 = vunpack.c.l.bf16 %v229
    %v234 = vunpack.c.l.bf16 %v230
    %v235 = vunpack.c.l.bf16 %v231
    %v236 = vunpack.c.l.bf16 %v232
    %v237 = vadd.f32 %v215, %v233
    %v238 = vadd.f32 %v218, %v234
    %v239 = vadd.f32 %v223, %v235
    %v240 = vadd.f32 %v226, %v236
    %v241 = vpack.c.bf16 %v238, %v237
    %v242 = vpack.c.bf16 %v240, %v239
    %v245 = vunpack.c.l.b16 %v241
    %v246 = vunpack.c.h.b16 %v241
    %v247 = vunpack.c.l.b16 %v242
    %v248 = vunpack.c.h.b16 %v242
    %v249 = vpack.c.b16 %v245, %v245
    %v250 = vpack.c.b16 %v246, %v246
    %v251 = vpack.c.b16 %v247, %v247
    %v252 = vpack.c.b16 %v248, %v248
    %257 = vst [vmem:[%s6] sm:$0xf] %v249
    %258 = vst [vmem:[%s6 + $0x4] sm:$0xf] %v250
    %259 = vst [vmem:[%s6 + $0x8] sm:$0xf] %v251
    %260 = vst [vmem:[%s6 + $0xc] sm:$0xf] %v252
    // Predicated region
    $region22: #{vqvae_forward.45} parent=1 // pred_check
      _
    $region23: #{vqvae_forward.45} parent=1 // pred_check_branch
      %262 = sbr.rel (0) target = $region25
    $region24: #{vqvae_forward.45} parent=1 // pred_region
      _
    $region25: #{vqvae_forward.45} parent=1 // pred_fallthru
      _
    // Predicated region
    $region26: #{vqvae_forward.45} parent=1 // pred_check
      _
    $region27: #{vqvae_forward.45} parent=1 // pred_check_branch
      %264 = sbr.rel (0) target = $region29
    $region28: #{vqvae_forward.45} parent=1 // pred_region
      _
    $region29: #{vqvae_forward.45} parent=1 // pred_fallthru
      _

// kernel: vqvae_forward.43
$region0: #{vqvae_forward.43}
  #allocation0 [shape = 'u32[]', space=smem, size = 0x4, offset = 0x4, fixed_abs, tag = 'smem constant byte address 0x4 - core index']
  #allocation1 [shape = 'u32[144,128]{1,0:T(1,128)}', space=vmem, size = 0x12000, scoped, tag = 'internal scratch']
  %s0 = inlined_call_operand.vmem [shape: bf16[128,128], index: 0, kind: input, shape index: {}]
  %s1 = inlined_call_operand.vmem [shape: f32[1,128], index: 1, kind: input, shape index: {}]
  %s2 = inlined_call_operand.vmem [shape: bf16[32,128], index: 2, kind: input, shape index: {}]
  %s3 = inlined_call_operand.vmem [shape: pred[128], index: 3, kind: input, shape index: {}]
  %s4 = inlined_call_operand.<no memory space> [shape: bf16[], index: 4, kind: input, shape index: {}]
  %s5 = inlined_call_operand.vmem [shape: f32[32,128], index: 5, kind: output, shape index: {}]
  %s6 = sld [smem:[#allocation0]]
  $region26: #{vqvae_forward.43} parent=0
    _
  %s8 = ssub.s32 1, %s6
  %s9 = scalar_select 0, %s8, %s6
  %v10 = vstv %s4
  %v11 = vunpack.i.l.bf16 %v10
  %v13 = vunpack.i.h.bf16 %v10
  $region1: #{vqvae_forward.43} parent=0
    #allocation2 [shape = 'u8[8192]{0}', space=vmem, size = 0x2000, dematerialized = true, scoped, tag = 'FusionAdapter Buffer %fusion.24 = bf16[32,128]{1,0:T(8,128)(2,1)} fusion(%param_2.44, %param_3.23, %param_4.12), kind=kLoop, calls=%fused_computation.94.clone, metadata={op_name="jit(vqvae_forward)/jit(_pad)/pad" stack_frame_id=144}']
    // Predicated region
    $region2: #{vqvae_forward.43} parent=1 // pred_check
      _
    $region3: #{vqvae_forward.43} parent=1 // pred_check_branch
      %16 = sbr.rel (0) target = $region5
    $region4: #{vqvae_forward.43} parent=1 // pred_region
      _
    $region5: #{vqvae_forward.43} parent=1 // pred_fallthru
      _
    // Predicated region
    $region6: #{vqvae_forward.43} parent=1 // pred_check
      _
    $region7: #{vqvae_forward.43} parent=1 // pred_check_branch
      %18 = sbr.rel (0) target = $region9
    $region8: #{vqvae_forward.43} parent=1 // pred_region
      _
    $region9: #{vqvae_forward.43} parent=1 // pred_fallthru
      _
    // Predicated region
    $region10: #{vqvae_forward.43} parent=1 // pred_check
      _
    $region11: #{vqvae_forward.43} parent=1 // pred_check_branch
      %20 = sbr.rel (0) target = $region13
    $region12: #{vqvae_forward.43} parent=1 // pred_region
      _
    $region13: #{vqvae_forward.43} parent=1 // pred_fallthru
      _
    // Predicated region
    $region14: #{vqvae_forward.43} parent=1 // pred_check
      _
    $region15: #{vqvae_forward.43} parent=1 // pred_check_branch
      %22 = sbr.rel (0) target = $region17
    $region16: #{vqvae_forward.43} parent=1 // pred_region
      _
    $region17: #{vqvae_forward.43} parent=1 // pred_fallthru
      _
    %v23 = vld [vmem:[%s2] sm:$0xf]
    %v24 = vunpack.c.l.bf16 %v23
    %v25 = vunpack.c.h.bf16 %v23
    %v26 = vld [vmem:[%s3] ss:$0 sm:$0xff]
    %v28 = vshra.s32 %v26, 0
    %v29 = vand.u32 %v28, 255
    %s30 = scalar_lea.vmem %s2, 4
    %v31 = vld [vmem:[%s30] sm:$0xf]
    %v32 = vunpack.c.l.bf16 %v31
    %v33 = vunpack.c.h.bf16 %v31
    %v34 = vpack.c.bf16 %v32, %v24
    %36 = xla_tuple %v29, %v29
    %v37 = vpack.c.bf16 %v11, %v11
    %v39 = vcvt.s32.f32 %v29
    %v40 = vcvt.s32.f32 %v29
    %v41 = vpack.c.bf16 %v40, %v39
    %43 = xla_tuple %v41, %v34, %v37
    %44 = xla_tuple %43
    %vm45 = vcmp.ne.s16.totalorder %v41, 0
    %v46 = vsel %vm45, %v34, %v37
    %47 = xla_tuple %v46
    %v48 = vunpack.c.l.bf16 %v46
    %v49 = vunpack.c.h.bf16 %v46
    %v50 = vpack.c.bf16 0.0, %v48
    %52 = vst [vmem:[#allocation2] sm:$0xf] %v50
    %s53 = scalar_lea.vmem [#allocation2], 4
    %v54 = vpack.c.bf16 0.0, %v49
    %56 = vst [vmem:[%s53] sm:$0xf] %v54
    %s57 = scalar_lea.vmem %s2, 8
    %v58 = vld [vmem:[%s57] sm:$0xf]
    %v59 = vunpack.c.l.bf16 %v58
    %v60 = vunpack.c.h.bf16 %v58
    %s61 = scalar_lea.vmem %s2, 12
    %v62 = vld [vmem:[%s61] sm:$0xf]
    %v63 = vunpack.c.l.bf16 %v62
    %v64 = vunpack.c.h.bf16 %v62
    %v65 = vpack.c.bf16 %v63, %v59
    %67 = xla_tuple %v29, %v29
    %v68 = vpack.c.bf16 %v11, %v11
    %v70 = vcvt.s32.f32 %v29
    %v71 = vcvt.s32.f32 %v29
    %v72 = vpack.c.bf16 %v71, %v70
    %74 = xla_tuple %v72, %v65, %v68
    %75 = xla_tuple %74
    %vm76 = vcmp.ne.s16.totalorder %v72, 0
    %v77 = vsel %vm76, %v65, %v68
    %78 = xla_tuple %v77
    %v79 = vunpack.c.l.bf16 %v77
    %v80 = vunpack.c.h.bf16 %v77
    %s81 = scalar_lea.vmem [#allocation2], 8
    %v82 = vpack.c.bf16 0.0, %v79
    %84 = vst [vmem:[%s81] sm:$0xf] %v82
    %s85 = scalar_lea.vmem [#allocation2], 12
    %v86 = vpack.c.bf16 0.0, %v80
    %88 = vst [vmem:[%s85] sm:$0xf] %v86
    %v90 = vld [vmem:[#allocation2] sm:$0xf]
    %v91 = vld [vmem:[#allocation2 + $0x4] sm:$0xf]
    %v92 = vld [vmem:[#allocation2 + $0x8] sm:$0xf]
    %v93 = vld [vmem:[#allocation2 + $0xc] sm:$0xf]
    %v94 = vld [vmem:[%s0] sm:$0xf]
    %v95 = vld [vmem:[%s0 + $0x4] sm:$0xf]
    %v96 = vld [vmem:[%s0 + $0x8] sm:$0xf]
    %v97 = vld [vmem:[%s0 + $0xc] sm:$0xf]
    %v98 = vld [vmem:[%s0 + $0x10] sm:$0xf]
    %v99 = vld [vmem:[%s0 + $0x14] sm:$0xf]
    %v100 = vld [vmem:[%s0 + $0x18] sm:$0xf]
    %v101 = vld [vmem:[%s0 + $0x1c] sm:$0xf]
    %v102 = vld [vmem:[%s0 + $0x20] sm:$0xf]
    %v103 = vld [vmem:[%s0 + $0x24] sm:$0xf]
    %v104 = vld [vmem:[%s0 + $0x28] sm:$0xf]
    %v105 = vld [vmem:[%s0 + $0x2c] sm:$0xf]
    %v106 = vld [vmem:[%s0 + $0x30] sm:$0xf]
    %v107 = vld [vmem:[%s0 + $0x34] sm:$0xf]
    %v108 = vld [vmem:[%s0 + $0x38] sm:$0xf]
    %v109 = vld [vmem:[%s0 + $0x3c] sm:$0xf]
    %v110 = vld [vmem:[%s1] sm:$0x1]
    %v112 = vlaneseq
    %v113 = vshrl.u32 %v112, 7
    %v114 = vsub.s32 0, %v113
    %v115 = vrot.slane %v110, %v114
    %v121 = vunpack.c.l.b16 %v90
    %v122 = vunpack.c.l.b16 %v91
    %v123 = vunpack.c.l.b16 %v92
    %v124 = vunpack.c.l.b16 %v93
    %v125 = vpack.c.b16 %v122, %v121
    %v126 = vpack.c.b16 %v124, %v123
    %v145 = vunpack.c.l.b16 %v94
    %v146 = vunpack.c.l.b16 %v95
    %v147 = vunpack.c.l.b16 %v96
    %v148 = vunpack.c.l.b16 %v97
    %v149 = vunpack.c.l.b16 %v98
    %v150 = vunpack.c.l.b16 %v99
    %v151 = vunpack.c.l.b16 %v100
    %v152 = vunpack.c.l.b16 %v101
    %v153 = vunpack.c.l.b16 %v102
    %v154 = vunpack.c.l.b16 %v103
    %v155 = vunpack.c.l.b16 %v104
    %v156 = vunpack.c.l.b16 %v105
    %v157 = vunpack.c.l.b16 %v106
    %v158 = vunpack.c.l.b16 %v107
    %v159 = vunpack.c.l.b16 %v108
    %v160 = vunpack.c.l.b16 %v109
    %v161 = vpack.c.b16 %v146, %v145
    %v162 = vpack.c.b16 %v148, %v147
    %v163 = vpack.c.b16 %v150, %v149
    %v164 = vpack.c.b16 %v152, %v151
    %v165 = vpack.c.b16 %v154, %v153
    %v166 = vpack.c.b16 %v156, %v155
    %v167 = vpack.c.b16 %v158, %v157
    %v168 = vpack.c.b16 %v160, %v159
    %177 = vmatprep.subr.bf16.mxu0 0
    %178 = vmatpush1.bf16.msra.mxu0 %v161
    %179 = vmatprep.subr.bf16.mxu0 0
    %180 = vmatpush1.bf16.msra.mxu0 %v162
    %181 = vmatprep.subr.bf16.mxu0 0
    %182 = vmatpush1.bf16.msra.mxu0 %v163
    %183 = vmatprep.subr.bf16.mxu0 0
    %184 = vmatpush1.bf16.msra.mxu0 %v164
    %185 = vmatprep.subr.bf16.mxu0 0
    %186 = vmatpush1.bf16.msra.mxu0 %v165
    %187 = vmatprep.subr.bf16.mxu0 0
    %188 = vmatpush1.bf16.msra.mxu0 %v166
    %189 = vmatprep.subr.bf16.mxu0 0
    %190 = vmatpush1.bf16.msra.mxu0 %v167
    %191 = vmatprep.subr.bf16.mxu0 0
    %192 = vmatpush1.bf16.msra.mxu0 %v168
    %193 = vmatprep.subr.bf16.mxu0 0
    %194 = vmatpush1.bf16.msra.mxu0 0
    %195 = vmatprep.subr.bf16.mxu0 0
    %196 = vmatpush1.bf16.msra.mxu0 0
    %197 = vmatprep.subr.bf16.mxu0 0
    %198 = vmatpush1.bf16.msra.mxu0 0
    %199 = vmatprep.subr.bf16.mxu0 0
    %200 = vmatpush1.bf16.msra.mxu0 0
    %201 = vmatprep.subr.bf16.mxu0 0
    %202 = vmatpush1.bf16.msra.mxu0 0
    %203 = vmatprep.subr.bf16.mxu0 0
    %204 = vmatpush1.bf16.msra.mxu0 0
    %205 = vmatprep.subr.bf16.mxu0 0
    %206 = vmatpush1.bf16.msra.mxu0 0
    %207 = vmatprep.subr.bf16.mxu0 0
    %208 = vmatpush1.bf16.msra.mxu0 0
    %209 = vmatprep.mubr.bf16.mxu0 0
    %210 = vmatmul.mubr.bf16.gmra.mrb[0].mxu0 %v125
    %v211 = vpop.f32.mrb[0].mxu0
    %v212 = vadd.f32 %v115, %v211
    %v213 = vpop.f32.mrb[0].mxu0
    %v214 = vpop.f32.mrb[0].mxu0
    %v215 = vadd.f32 %v115, %v214
    %v216 = vpop.f32.mrb[0].mxu0
    %217 = vmatprep.mubr.bf16.mxu0 0
    %218 = vmatmul.mubr.bf16.gmra.mrb[0].mxu0 %v126
    %v219 = vpop.f32.mrb[0].mxu0
    %v220 = vadd.f32 %v115, %v219
    %v221 = vpop.f32.mrb[0].mxu0
    %v222 = vpop.f32.mrb[0].mxu0
    %v223 = vadd.f32 %v115, %v222
    %v224 = vpop.f32.mrb[0].mxu0
    %225 = vdwg.mxu0
    %226 = vst [vmem:[%s5] sm:$0xff] %v212
    %227 = vst [vmem:[%s5 + $0x8] sm:$0xff] %v215
    %228 = vst [vmem:[%s5 + $0x10] sm:$0xff] %v220
    %229 = vst [vmem:[%s5 + $0x18] sm:$0xff] %v223
    // Predicated region
    $region18: #{vqvae_forward.43} parent=1 // pred_check
      _
    $region19: #{vqvae_forward.43} parent=1 // pred_check_branch
      %231 = sbr.rel (0) target = $region21
    $region20: #{vqvae_forward.43} parent=1 // pred_region
      _
    $region21: #{vqvae_forward.43} parent=1 // pred_fallthru
      _
    // Predicated region
    $region22: #{vqvae_forward.43} parent=1 // pred_check
      _
    $region23: #{vqvae_forward.43} parent=1 // pred_check_branch
      %233 = sbr.rel (0) target = $region25
    $region24: #{vqvae_forward.43} parent=1 // pred_region
      _
    $region25: #{vqvae_forward.43} parent=1 // pred_fallthru
      _

// kernel: vqvae_forward.40
$region0: #{vqvae_forward.40}
  #allocation0 [shape = 'u32[]', space=smem, size = 0x4, offset = 0x4, fixed_abs, tag = 'smem constant byte address 0x4 - core index']
  #allocation1 [shape = 'u32[144,128]{1,0:T(1,128)}', space=vmem, size = 0x12000, scoped, tag = 'internal scratch']
  #allocation2 [shape = 'u32[2048]{0}', space=vmem, size = 0x2000, scoped, tag = 'scoped memory for vqvae_forward.40']
  #allocation3 [shape = 'u32[2048]{0}', space=vmem, size = 0x2000, scoped, tag = 'scoped memory for vqvae_forward.40']
  #allocation4 [shape = 'u32[2048]{0}', space=vmem, size = 0x2000, scoped, tag = 'scoped memory for vqvae_forward.40']
  #allocation5 [shape = 'u32[2048]{0}', space=vmem, size = 0x2000, scoped, tag = 'scoped memory for vqvae_forward.40']
  #allocation6 [shape = 'u32[2048]{0}', space=vmem, size = 0x2000, scoped, tag = 'scoped memory for vqvae_forward.40']
  %s0 = inlined_call_operand.vmem [shape: bf16[256,128], index: 0, kind: input, shape index: {}]
  %s1 = inlined_call_operand.vmem [shape: f32[1,128], index: 1, kind: input, shape index: {}]
  %s2 = inlined_call_operand.vmem [shape: bf16[32,144], index: 2, kind: input, shape index: {}]
  %s3 = inlined_call_operand.<no memory space> [shape: bf16[], index: 3, kind: input, shape index: {}]
  %s4 = inlined_call_operand.vmem [shape: bf16[32,128], index: 4, kind: output, shape index: {}]
  %s5 = sld [smem:[#allocation0]]
  $region22: #{vqvae_forward.40} parent=0
    _
  %s7 = ssub.s32 1, %s5
  %s8 = scalar_select 0, %s7, %s5
  %v9 = vstv %s3
  %v10 = vunpack.i.l.bf16 %v9
  %v12 = vunpack.i.h.bf16 %v9
  $region1: #{vqvae_forward.40} parent=0
    #allocation7 [shape = 'u8[16384]{0}', space=vmem, size = 0x4000, dematerialized = true, scoped, tag = 'FusionAdapter Buffer %fusion.18 = bf16[32,256]{1,0:T(8,128)(2,1)} fusion(%param_2.17, %param_3.8), kind=kLoop, calls=%fused_computation.86.clone, metadata={op_name="jit(vqvae_forward)/jit(_pad)/pad" stack_frame_id=188}']
    // Predicated region
    $region2: #{vqvae_forward.40} parent=1 // pred_check
      _
    $region3: #{vqvae_forward.40} parent=1 // pred_check_branch
      %15 = sbr.rel (0) target = $region5
    $region4: #{vqvae_forward.40} parent=1 // pred_region
      _
    $region5: #{vqvae_forward.40} parent=1 // pred_fallthru
      _
    // Predicated region
    $region6: #{vqvae_forward.40} parent=1 // pred_check
      _
    $region7: #{vqvae_forward.40} parent=1 // pred_check_branch
      %17 = sbr.rel (0) target = $region9
    $region8: #{vqvae_forward.40} parent=1 // pred_region
      _
    $region9: #{vqvae_forward.40} parent=1 // pred_fallthru
      _
    // Predicated region
    $region10: #{vqvae_forward.40} parent=1 // pred_check
      _
    $region11: #{vqvae_forward.40} parent=1 // pred_check_branch
      %19 = sbr.rel (0) target = $region13
    $region12: #{vqvae_forward.40} parent=1 // pred_region
      _
    $region13: #{vqvae_forward.40} parent=1 // pred_fallthru
      _
    %v20 = vld [vmem:[%s2] sm:$0xf]
    %v21 = vunpack.c.l.bf16 %v20
    %v22 = vunpack.c.h.bf16 %v20
    %v23 = vlaneseq
    %v24 = vand.u32 %v23, 127
    %vm26 = vcmp.lt.s32.totalorder %v24, 144
    %v27 = vsel %vm26, %v21, %v10
    %v28 = vpack.c.bf16 0.0, %v27
    %30 = vst [vmem:[#allocation7] sm:$0xf] %v28
    %s31 = scalar_lea.vmem %s2, 4
    %s33 = sor.u32 255, 127
    %s34 = sand.u32 %s33, 85
    %s35 = sshrl.u32 %s34, 1
    %s36 = sor.u32 %s34, %s35
    %s37 = sand.u32 51, %s36
    %s38 = sshrl.u32 %s37, 2
    %s39 = sor.u32 %s37, %s38
    %s40 = sand.u32 15, %s39
    %v41 = vld [vmem:[%s31] sm:%s40]
    %v42 = vunpack.c.l.bf16 %v41
    %v43 = vunpack.c.h.bf16 %v41
    %v44 = vlaneseq
    %v45 = vand.u32 %v44, 127
    %v46 = vadd.s32 %v45, 128
    %vm47 = vcmp.lt.s32.totalorder %v46, 144
    %v48 = vsel %vm47, %v42, %v10
    %s49 = scalar_lea.vmem [#allocation7], 4
    %v50 = vpack.c.bf16 0.0, %v48
    %52 = vst [vmem:[%s49] sm:$0xf] %v50
    %s53 = scalar_lea.vmem %s2, 8
    %v54 = vld [vmem:[%s53] sm:$0xf]
    %v55 = vunpack.c.l.bf16 %v54
    %v56 = vunpack.c.h.bf16 %v54
    %v57 = vlaneseq
    %v58 = vand.u32 %v57, 127
    %vm60 = vcmp.lt.s32.totalorder %v58, 144
    %v61 = vsel %vm60, %v55, %v10
    %s62 = scalar_lea.vmem [#allocation7], 8
    %v63 = vpack.c.bf16 0.0, %v61
    %65 = vst [vmem:[%s62] sm:$0xf] %v63
    %s66 = scalar_lea.vmem %s2, 12
    %s68 = sor.u32 255, 127
    %s69 = sand.u32 %s68, 85
    %s70 = sshrl.u32 %s69, 1
    %s71 = sor.u32 %s69, %s70
    %s72 = sand.u32 51, %s71
    %s73 = sshrl.u32 %s72, 2
    %s74 = sor.u32 %s72, %s73
    %s75 = sand.u32 15, %s74
    %v76 = vld [vmem:[%s66] sm:%s75]
    %v77 = vunpack.c.l.bf16 %v76
    %v78 = vunpack.c.h.bf16 %v76
    %v79 = vlaneseq
    %v80 = vand.u32 %v79, 127
    %v81 = vadd.s32 %v80, 128
    %vm82 = vcmp.lt.s32.totalorder %v81, 144
    %v83 = vsel %vm82, %v77, %v10
    %s84 = scalar_lea.vmem [#allocation7], 12
    %v85 = vpack.c.bf16 0.0, %v83
    %87 = vst [vmem:[%s84] sm:$0xf] %v85
    %s88 = scalar_lea.vmem %s2, 16
    %v89 = vld [vmem:[%s88] sm:$0xf]
    %v90 = vunpack.c.l.bf16 %v89
    %v91 = vunpack.c.h.bf16 %v89
    %v92 = vlaneseq
    %v93 = vand.u32 %v92, 127
    %vm95 = vcmp.lt.s32.totalorder %v93, 144
    %v96 = vsel %vm95, %v90, %v10
    %s97 = scalar_lea.vmem [#allocation7], 16
    %v98 = vpack.c.bf16 0.0, %v96
    %100 = vst [vmem:[%s97] sm:$0xf] %v98
    %s101 = scalar_lea.vmem %s2, 20
    %s103 = sor.u32 255, 127
    %s104 = sand.u32 %s103, 85
    %s105 = sshrl.u32 %s104, 1
    %s106 = sor.u32 %s104, %s105
    %s107 = sand.u32 51, %s106
    %s108 = sshrl.u32 %s107, 2
    %s109 = sor.u32 %s107, %s108
    %s110 = sand.u32 15, %s109
    %v111 = vld [vmem:[%s101] sm:%s110]
    %v112 = vunpack.c.l.bf16 %v111
    %v113 = vunpack.c.h.bf16 %v111
    %v114 = vlaneseq
    %v115 = vand.u32 %v114, 127
    %v116 = vadd.s32 %v115, 128
    %vm117 = vcmp.lt.s32.totalorder %v116, 144
    %v118 = vsel %vm117, %v112, %v10
    %s119 = scalar_lea.vmem [#allocation7], 20
    %v120 = vpack.c.bf16 0.0, %v118
    %122 = vst [vmem:[%s119] sm:$0xf] %v120
    %s123 = scalar_lea.vmem %s2, 24
    %v124 = vld [vmem:[%s123] sm:$0xf]
    %v125 = vunpack.c.l.bf16 %v124
    %v126 = vunpack.c.h.bf16 %v124
    %v127 = vlaneseq
    %v128 = vand.u32 %v127, 127
    %vm130 = vcmp.lt.s32.totalorder %v128, 144
    %v131 = vsel %vm130, %v125, %v10
    %s132 = scalar_lea.vmem [#allocation7], 24
    %v133 = vpack.c.bf16 0.0, %v131
    %135 = vst [vmem:[%s132] sm:$0xf] %v133
    %s136 = scalar_lea.vmem %s2, 28
    %s138 = sor.u32 255, 127
    %s139 = sand.u32 %s138, 85
    %s140 = sshrl.u32 %s139, 1
    %s141 = sor.u32 %s139, %s140
    %s142 = sand.u32 51, %s141
    %s143 = sshrl.u32 %s142, 2
    %s144 = sor.u32 %s142, %s143
    %s145 = sand.u32 15, %s144
    %v146 = vld [vmem:[%s136] sm:%s145]
    %v147 = vunpack.c.l.bf16 %v146
    %v148 = vunpack.c.h.bf16 %v146
    %v149 = vlaneseq
    %v150 = vand.u32 %v149, 127
    %v151 = vadd.s32 %v150, 128
    %vm152 = vcmp.lt.s32.totalorder %v151, 144
    %v153 = vsel %vm152, %v147, %v10
    %s154 = scalar_lea.vmem [#allocation7], 28
    %v155 = vpack.c.bf16 0.0, %v153
    %157 = vst [vmem:[%s154] sm:$0xf] %v155
    %v159 = vld [vmem:[#allocation7] sm:$0xff]
    %v160 = vld [vmem:[#allocation7 + $0x8] sm:$0xff]
    %v161 = vld [vmem:[#allocation7 + $0x10] sm:$0xff]
    %v162 = vld [vmem:[#allocation7 + $0x18] sm:$0xff]
    %v163 = vld [vmem:[%s0] sm:$0xf]
    %v164 = vld [vmem:[%s0 + $0x4] sm:$0xf]
    %v165 = vld [vmem:[%s0 + $0x8] sm:$0xf]
    %v166 = vld [vmem:[%s0 + $0xc] sm:$0xf]
    %v167 = vld [vmem:[%s0 + $0x10] sm:$0xf]
    %v168 = vld [vmem:[%s0 + $0x14] sm:$0xf]
    %v169 = vld [vmem:[%s0 + $0x18] sm:$0xf]
    %v170 = vld [vmem:[%s0 + $0x1c] sm:$0xf]
    %v171 = vld [vmem:[%s0 + $0x20] sm:$0xf]
    %v172 = vld [vmem:[%s0 + $0x24] sm:$0xf]
    %v173 = vld [vmem:[%s0 + $0x28] sm:$0xf]
    %v174 = vld [vmem:[%s0 + $0x2c] sm:$0xf]
    %v175 = vld [vmem:[%s0 + $0x30] sm:$0xf]
    %v176 = vld [vmem:[%s0 + $0x34] sm:$0xf]
    %v177 = vld [vmem:[%s0 + $0x38] sm:$0xf]
    %v178 = vld [vmem:[%s0 + $0x3c] sm:$0xf]
    %v179 = vld [vmem:[%s0 + $0x40] sm:$0xf]
    %v180 = vld [vmem:[%s0 + $0x44] sm:$0xf]
    %v181 = vld [vmem:[%s0 + $0x48] sm:$0xf]
    %v182 = vld [vmem:[%s0 + $0x4c] sm:$0xf]
    %v183 = vld [vmem:[%s0 + $0x50] sm:$0xf]
    %v184 = vld [vmem:[%s0 + $0x54] sm:$0xf]
    %v185 = vld [vmem:[%s0 + $0x58] sm:$0xf]
    %v186 = vld [vmem:[%s0 + $0x5c] sm:$0xf]
    %v187 = vld [vmem:[%s0 + $0x60] sm:$0xf]
    %v188 = vld [vmem:[%s0 + $0x64] sm:$0xf]
    %v189 = vld [vmem:[%s0 + $0x68] sm:$0xf]
    %v190 = vld [vmem:[%s0 + $0x6c] sm:$0xf]
    %v191 = vld [vmem:[%s0 + $0x70] sm:$0xf]
    %v192 = vld [vmem:[%s0 + $0x74] sm:$0xf]
    %v193 = vld [vmem:[%s0 + $0x78] sm:$0xf]
    %v194 = vld [vmem:[%s0 + $0x7c] sm:$0xf]
    %v195 = vld [vmem:[%s1] sm:$0x1]
    %v197 = vlaneseq
    %v198 = vshrl.u32 %v197, 7
    %v199 = vsub.s32 0, %v198
    %v200 = vrot.slane %v195, %v199
    %v206 = vunpack.c.l.b16 %v159
    %v207 = vunpack.c.h.b16 %v159
    %v208 = vunpack.c.l.b16 %v160
    %v209 = vunpack.c.h.b16 %v160
    %v210 = vunpack.c.l.b16 %v161
    %v211 = vunpack.c.h.b16 %v161
    %v212 = vunpack.c.l.b16 %v162
    %v213 = vunpack.c.h.b16 %v162
    %v214 = vpack.c.b16 %v208, %v206
    %v215 = vpack.c.b16 %v209, %v207
    %v216 = vpack.c.b16 %v212, %v210
    %v217 = vpack.c.b16 %v213, %v211
    %v254 = vunpack.c.l.b16 %v163
    %v255 = vunpack.c.l.b16 %v164
    %v256 = vunpack.c.l.b16 %v165
    %v257 = vunpack.c.l.b16 %v166
    %v258 = vunpack.c.l.b16 %v167
    %v259 = vunpack.c.l.b16 %v168
    %v260 = vunpack.c.l.b16 %v169
    %v261 = vunpack.c.l.b16 %v170
    %v262 = vunpack.c.l.b16 %v171
    %v263 = vunpack.c.l.b16 %v172
    %v264 = vunpack.c.l.b16 %v173
    %v265 = vunpack.c.l.b16 %v174
    %v266 = vunpack.c.l.b16 %v175
    %v267 = vunpack.c.l.b16 %v176
    %v268 = vunpack.c.l.b16 %v177
    %v269 = vunpack.c.l.b16 %v178
    %v270 = vunpack.c.l.b16 %v179
    %v271 = vunpack.c.l.b16 %v180
    %v272 = vunpack.c.l.b16 %v181
    %v273 = vunpack.c.l.b16 %v182
    %v274 = vunpack.c.l.b16 %v183
    %v275 = vunpack.c.l.b16 %v184
    %v276 = vunpack.c.l.b16 %v185
    %v277 = vunpack.c.l.b16 %v186
    %v278 = vunpack.c.l.b16 %v187
    %v279 = vunpack.c.l.b16 %v188
    %v280 = vunpack.c.l.b16 %v189
    %v281 = vunpack.c.l.b16 %v190
    %v282 = vunpack.c.l.b16 %v191
    %v283 = vunpack.c.l.b16 %v192
    %v284 = vunpack.c.l.b16 %v193
    %v285 = vunpack.c.l.b16 %v194
    %v286 = vpack.c.b16 %v255, %v254
    %v287 = vpack.c.b16 %v257, %v256
    %v288 = vpack.c.b16 %v259, %v258
    %v289 = vpack.c.b16 %v261, %v260
    %v290 = vpack.c.b16 %v263, %v262
    %v291 = vpack.c.b16 %v265, %v264
    %v292 = vpack.c.b16 %v267, %v266
    %v293 = vpack.c.b16 %v269, %v268
    %v294 = vpack.c.b16 %v271, %v270
    %v295 = vpack.c.b16 %v273, %v272
    %v296 = vpack.c.b16 %v275, %v274
    %v297 = vpack.c.b16 %v277, %v276
    %v298 = vpack.c.b16 %v279, %v278
    %v299 = vpack.c.b16 %v281, %v280
    %v300 = vpack.c.b16 %v283, %v282
    %v301 = vpack.c.b16 %v285, %v284
    %318 = vmatprep.subr.bf16.mxu0 0
    %319 = vmatpush1.bf16.msra.mxu0 %v286
    %320 = vmatprep.subr.bf16.mxu0 0
    %321 = vmatpush1.bf16.msra.mxu0 %v287
    %322 = vmatprep.subr.bf16.mxu0 0
    %323 = vmatpush1.bf16.msra.mxu0 %v288
    %324 = vmatprep.subr.bf16.mxu0 0
    %325 = vmatpush1.bf16.msra.mxu0 %v289
    %326 = vmatprep.subr.bf16.mxu0 0
    %327 = vmatpush1.bf16.msra.mxu0 %v290
    %328 = vmatprep.subr.bf16.mxu0 0
    %329 = vmatpush1.bf16.msra.mxu0 %v291
    %330 = vmatprep.subr.bf16.mxu0 0
    %331 = vmatpush1.bf16.msra.mxu0 %v292
    %332 = vmatprep.subr.bf16.mxu0 0
    %333 = vmatpush1.bf16.msra.mxu0 %v293
    %334 = vmatprep.subr.bf16.mxu0 0
    %335 = vmatpush1.bf16.msra.mxu0 %v294
    %336 = vmatprep.subr.bf16.mxu0 0
    %337 = vmatpush1.bf16.msra.mxu0 %v295
    %338 = vmatprep.subr.bf16.mxu0 0
    %339 = vmatpush1.bf16.msra.mxu0 %v296
    %340 = vmatprep.subr.bf16.mxu0 0
    %341 = vmatpush1.bf16.msra.mxu0 %v297
    %342 = vmatprep.subr.bf16.mxu0 0
    %343 = vmatpush1.bf16.msra.mxu0 %v298
    %344 = vmatprep.subr.bf16.mxu0 0
    %345 = vmatpush1.bf16.msra.mxu0 %v299
    %346 = vmatprep.subr.bf16.mxu0 0
    %347 = vmatpush1.bf16.msra.mxu0 %v300
    %348 = vmatprep.subr.bf16.mxu0 0
    %349 = vmatpush1.bf16.msra.mxu0 %v301
    %350 = vmatprep.mubr.bf16.mxu0 %v215
    %351 = vmatmul.mubr.bf16.gmra.mrb[0].mxu0 %v214
    %v352 = vpop.f32.mrb[0].mxu0
    %v353 = vadd.f32 %v200, %v352
    %v354 = vpop.f32.mrb[0].mxu0
    %v355 = vpop.f32.mrb[0].mxu0
    %v356 = vadd.f32 %v200, %v355
    %v357 = vpop.f32.mrb[0].mxu0
    %358 = vmatprep.mubr.bf16.mxu0 %v217
    %359 = vmatmul.mubr.bf16.gmra.mrb[0].mxu0 %v216
    %v360 = vpop.f32.mrb[0].mxu0
    %v361 = vadd.f32 %v200, %v360
    %v362 = vpop.f32.mrb[0].mxu0
    %v363 = vpop.f32.mrb[0].mxu0
    %v364 = vadd.f32 %v200, %v363
    %v365 = vpop.f32.mrb[0].mxu0
    %366 = vdwg.mxu0
    %v367 = vpack.c.bf16 %v356, %v353
    %v368 = vpack.c.bf16 %v364, %v361
    %v371 = vunpack.c.l.b16 %v367
    %v372 = vunpack.c.h.b16 %v367
    %v373 = vunpack.c.l.b16 %v368
    %v374 = vunpack.c.h.b16 %v368
    %v375 = vpack.c.b16 %v371, %v371
    %v376 = vpack.c.b16 %v372, %v372
    %v377 = vpack.c.b16 %v373, %v373
    %v378 = vpack.c.b16 %v374, %v374
    %383 = vst [vmem:[%s4] sm:$0xf] %v375
    %384 = vst [vmem:[%s4 + $0x4] sm:$0xf] %v376
    %385 = vst [vmem:[%s4 + $0x8] sm:$0xf] %v377
    %386 = vst [vmem:[%s4 + $0xc] sm:$0xf] %v378
    // Predicated region
    $region14: #{vqvae_forward.40} parent=1 // pred_check
      _
    $region15: #{vqvae_forward.40} parent=1 // pred_check_branch
      %388 = sbr.rel (0) target = $region17
    $region16: #{vqvae_forward.40} parent=1 // pred_region
      _
    $region17: #{vqvae_forward.40} parent=1 // pred_fallthru
      _
    // Predicated region
    $region18: #{vqvae_forward.40} parent=1 // pred_check
      _
    $region19: #{vqvae_forward.40} parent=1 // pred_check_branch
      %390 = sbr.rel (0) target = $region21
    $region20: #{vqvae_forward.40} parent=1 // pred_region
      _
    $region21: #{vqvae_forward.40} parent=1 // pred_fallthru
      _

// kernel: vqvae_forward.31
$region0: #{vqvae_forward.31}
  #allocation0 [shape = 'u32[]', space=smem, size = 0x4, offset = 0x4, fixed_abs, tag = 'smem constant byte address 0x4 - core index']
  #allocation1 [shape = 'u32[144,128]{1,0:T(1,128)}', space=vmem, size = 0x12000, scoped, tag = 'internal scratch']
  %s0 = inlined_call_operand.vmem [shape: f32[32,128], index: 0, kind: input, shape index: {}]
  %s1 = inlined_call_operand.vmem [shape: bf16[128,128], index: 1, kind: input, shape index: {}]
  %s2 = inlined_call_operand.vmem [shape: f32[1,128], index: 2, kind: input, shape index: {}]
  %s3 = inlined_call_operand.hbm [shape: f32[32,128], index: 3, kind: output, shape index: {0}]
  %s4 = inlined_call_operand.vmem [shape: bf16[32,128], index: 4, kind: output, shape index: {1}]
  %s5 = inlined_call_operand.vmem [shape: f32[1,1,128], index: 5, kind: output, shape index: {2}]
  %s6 = inlined_call_operand.vmem [shape: f32[1,1,128], index: 6, kind: output, shape index: {3}]
  %7 = xla_tuple %s3, %s4, %s5, %s6
  %s8 = sld [smem:[#allocation0]]
  $region46: #{vqvae_forward.31} parent=0
    _
  %s10 = ssub.s32 1, %s8
  %s11 = scalar_select 0, %s10, %s8
  $region1: #{vqvae_forward.31} parent=0
    #allocation2 [shape = 'u8[16384]{0}', space=vmem, size = 0x4000, scoped, tag = 'output window, operand 0, single buffered']
    #allocation3 [shape = 's32[1]{0}', space=sflag, size = 0x4, scoped, tag = 'scoped memory for vqvae_forward.31']
    %12 = vsyncpa [#allocation3], 0
    // Predicated region
    $region2: #{vqvae_forward.31} parent=1 // pred_check
      _
    $region3: #{vqvae_forward.31} parent=1 // pred_check_branch
      %14 = sbr.rel (0) target = $region5
    $region4: #{vqvae_forward.31} parent=1 // pred_region
      _
    $region5: #{vqvae_forward.31} parent=1 // pred_fallthru
      _
    // Predicated region
    $region6: #{vqvae_forward.31} parent=1 // pred_check
      _
    $region7: #{vqvae_forward.31} parent=1 // pred_check_branch
      %16 = sbr.rel (0) target = $region9
    $region8: #{vqvae_forward.31} parent=1 // pred_region
      _
    $region9: #{vqvae_forward.31} parent=1 // pred_fallthru
      _
    // Predicated region
    $region10: #{vqvae_forward.31} parent=1 // pred_check
      _
    $region11: #{vqvae_forward.31} parent=1 // pred_check_branch
      %18 = sbr.rel (0) target = $region13
    $region12: #{vqvae_forward.31} parent=1 // pred_region
      _
    $region13: #{vqvae_forward.31} parent=1 // pred_fallthru
      _
    %v20 = vld [vmem:[%s0] sm:$0xff]
    %v21 = vld [vmem:[%s0 + $0x8] sm:$0xff]
    %v22 = vld [vmem:[%s0 + $0x10] sm:$0xff]
    %v23 = vld [vmem:[%s0 + $0x18] sm:$0xff]
    %v24 = vld [vmem:[%s1] sm:$0xf]
    %v25 = vld [vmem:[%s1 + $0x4] sm:$0xf]
    %v26 = vld [vmem:[%s1 + $0x8] sm:$0xf]
    %v27 = vld [vmem:[%s1 + $0xc] sm:$0xf]
    %v28 = vld [vmem:[%s1 + $0x10] sm:$0xf]
    %v29 = vld [vmem:[%s1 + $0x14] sm:$0xf]
    %v30 = vld [vmem:[%s1 + $0x18] sm:$0xf]
    %v31 = vld [vmem:[%s1 + $0x1c] sm:$0xf]
    %v32 = vld [vmem:[%s1 + $0x20] sm:$0xf]
    %v33 = vld [vmem:[%s1 + $0x24] sm:$0xf]
    %v34 = vld [vmem:[%s1 + $0x28] sm:$0xf]
    %v35 = vld [vmem:[%s1 + $0x2c] sm:$0xf]
    %v36 = vld [vmem:[%s1 + $0x30] sm:$0xf]
    %v37 = vld [vmem:[%s1 + $0x34] sm:$0xf]
    %v38 = vld [vmem:[%s1 + $0x38] sm:$0xf]
    %v39 = vld [vmem:[%s1 + $0x3c] sm:$0xf]
    %v40 = vmul.f32 %v20, %v20
    %v41 = vmul.f32 %v21, %v21
    %v42 = vmul.f32 %v22, %v22
    %v43 = vmul.f32 %v23, %v23
    %44 = vadd.xlane.f32.xlu0 %v40
    %v45 = vpop.xlane.xlu0 %44
    %46 = vadd.xlane.f32.xlu0 %v41
    %v47 = vpop.xlane.xlu0 %46
    %48 = vadd.xlane.f32.xlu0 %v42
    %v49 = vpop.xlane.xlu0 %48
    %50 = vadd.xlane.f32.xlu0 %v43
    %v51 = vpop.xlane.xlu0 %50
    %v52 = vpack.c.bf16 %v21, %v20
    %v53 = vpack.c.bf16 %v23, %v22
    %v70 = vunpack.c.l.b16 %v24
    %v71 = vunpack.c.l.b16 %v25
    %v72 = vunpack.c.l.b16 %v26
    %v73 = vunpack.c.l.b16 %v27
    %v74 = vunpack.c.l.b16 %v28
    %v75 = vunpack.c.l.b16 %v29
    %v76 = vunpack.c.l.b16 %v30
    %v77 = vunpack.c.l.b16 %v31
    %v78 = vunpack.c.l.b16 %v32
    %v79 = vunpack.c.l.b16 %v33
    %v80 = vunpack.c.l.b16 %v34
    %v81 = vunpack.c.l.b16 %v35
    %v82 = vunpack.c.l.b16 %v36
    %v83 = vunpack.c.l.b16 %v37
    %v84 = vunpack.c.l.b16 %v38
    %v85 = vunpack.c.l.b16 %v39
    %v86 = vpack.c.b16 %v71, %v70
    %v87 = vpack.c.b16 %v73, %v72
    %v88 = vpack.c.b16 %v75, %v74
    %v89 = vpack.c.b16 %v77, %v76
    %v90 = vpack.c.b16 %v79, %v78
    %v91 = vpack.c.b16 %v81, %v80
    %v92 = vpack.c.b16 %v83, %v82
    %v93 = vpack.c.b16 %v85, %v84
    %102 = vmatprep.subr.bf16.mxu0 0
    %103 = vmatpush1.bf16.xpose.msra.mxu0 %v86
    %104 = vmatprep.subr.bf16.mxu0 0
    %105 = vmatpush1.bf16.xpose.msra.mxu0 %v87
    %106 = vmatprep.subr.bf16.mxu0 0
    %107 = vmatpush1.bf16.xpose.msra.mxu0 %v88
    %108 = vmatprep.subr.bf16.mxu0 0
    %109 = vmatpush1.bf16.xpose.msra.mxu0 %v89
    %110 = vmatprep.subr.bf16.mxu0 0
    %111 = vmatpush1.bf16.xpose.msra.mxu0 %v90
    %112 = vmatprep.subr.bf16.mxu0 0
    %113 = vmatpush1.bf16.xpose.msra.mxu0 %v91
    %114 = vmatprep.subr.bf16.mxu0 0
    %115 = vmatpush1.bf16.xpose.msra.mxu0 %v92
    %116 = vmatprep.subr.bf16.mxu0 0
    %117 = vmatpush1.bf16.xpose.msra.mxu0 %v93
    %118 = vmatprep.subr.bf16.mxu0 0
    %119 = vmatpush1.bf16.xpose.msra.mxu0 0
    %120 = vmatprep.subr.bf16.mxu0 0
    %121 = vmatpush1.bf16.xpose.msra.mxu0 0
    %122 = vmatprep.subr.bf16.mxu0 0
    %123 = vmatpush1.bf16.xpose.msra.mxu0 0
    %124 = vmatprep.subr.bf16.mxu0 0
    %125 = vmatpush1.bf16.xpose.msra.mxu0 0
    %126 = vmatprep.subr.bf16.mxu0 0
    %127 = vmatpush1.bf16.xpose.msra.mxu0 0
    %128 = vmatprep.subr.bf16.mxu0 0
    %129 = vmatpush1.bf16.xpose.msra.mxu0 0
    %130 = vmatprep.subr.bf16.mxu0 0
    %131 = vmatpush1.bf16.xpose.msra.mxu0 0
    %132 = vmatprep.subr.bf16.mxu0 0
    %133 = vmatpush1.bf16.xpose.msra.mxu0 0
    %134 = vmatprep.mubr.bf16.mxu0 0
    %135 = vmatmul.mubr.bf16.gmra.mrb[0].mxu0 %v52
    %v136 = vpop.f32.mrb[0].mxu0
    %v137 = vadd.f32 0.0, %v136
    %v138 = vpop.f32.mrb[0].mxu0
    %v139 = vpop.f32.mrb[0].mxu0
    %v140 = vadd.f32 0.0, %v139
    %v141 = vpop.f32.mrb[0].mxu0
    %142 = vmatprep.mubr.bf16.mxu0 0
    %143 = vmatmul.mubr.bf16.gmra.mrb[0].mxu0 %v53
    %v144 = vpop.f32.mrb[0].mxu0
    %v145 = vadd.f32 0.0, %v144
    %v146 = vpop.f32.mrb[0].mxu0
    %v147 = vpop.f32.mrb[0].mxu0
    %v148 = vadd.f32 0.0, %v147
    %v149 = vpop.f32.mrb[0].mxu0
    %150 = vdwg.mxu0
    %v151 = vld [vmem:[%s2] sm:$0x1]
    %v153 = vlaneseq
    %v154 = vshrl.u32 %v153, 7
    %v155 = vsub.s32 0, %v154
    %v156 = vrot.slane %v151, %v155
    %v158 = vadd.f32 %v45, %v156
    %v159 = vadd.f32 %v47, %v156
    %v160 = vadd.f32 %v49, %v156
    %v161 = vadd.f32 %v51, %v156
    %v162 = vmul.f32 %v137, 2.0
    %v163 = vmul.f32 %v140, 2.0
    %v164 = vmul.f32 %v145, 2.0
    %v165 = vmul.f32 %v148, 2.0
    %v166 = vsub.f32 %v158, %v162
    %v167 = vsub.f32 %v159, %v163
    %v168 = vsub.f32 %v160, %v164
    %v169 = vsub.f32 %v161, %v165
    %v170 = vlaneseq
    %v171 = vand.u32 %v170, 127
    %vm172 = vcmp.lt.s32.totalorder %v171, 64
    %v173 = vsel %vm172, %v166, 1e+30
    %v174 = vsel %vm172, %v167, 1e+30
    %v175 = vsel %vm172, %v168, 1e+30
    %v176 = vsel %vm172, %v169, 1e+30
    %177 = vmin.xlane.f32.xlu0 %v173
    %v178 = vpop.xlane.xlu0 %177
    %179 = vmin.xlane.f32.xlu0 %v174
    %v180 = vpop.xlane.xlu0 %179
    %181 = vmin.xlane.f32.xlu0 %v175
    %v182 = vpop.xlane.xlu0 %181
    %183 = vmin.xlane.f32.xlu0 %v176
    %v184 = vpop.xlane.xlu0 %183
    %vm185 = vcmp.le.f32.partialorder %v173, %v178
    %vm186 = vcmp.le.f32.partialorder %v174, %v180
    %vm187 = vcmp.le.f32.partialorder %v175, %v182
    %vm188 = vcmp.le.f32.partialorder %v176, %v184
    %v189 = vsel %vm185, %v171, 128
    %v190 = vsel %vm186, %v171, 128
    %v191 = vsel %vm187, %v171, 128
    %v192 = vsel %vm188, %v171, 128
    %v193 = vand.u32 %v189, 65535
    %v194 = vshra.s32 %v189, 16
    %v195 = vcvt.s32.f32 %v193
    %v196 = vcvt.s32.f32 %v194
    %197 = vmin.xlane.f32.xlu0 %v196
    %v198 = vpop.xlane.xlu0 %197
    %vm199 = vcmp.eq.f32.partialorder %v196, %v198
    %v200 = vsel %vm199, %v195, inf
    %201 = vmin.xlane.f32.xlu0 %v200
    %v202 = vpop.xlane.xlu0 %201
    %v203 = vcvt.f32.s32 %v202
    %v204 = vcvt.f32.s32 %v198
    %v205 = vshll.u32 %v204, 16
    %v206 = vadd.s32 %v205, %v203
    %v207 = vand.u32 %v190, 65535
    %v208 = vshra.s32 %v190, 16
    %v209 = vcvt.s32.f32 %v207
    %v210 = vcvt.s32.f32 %v208
    %211 = vmin.xlane.f32.xlu0 %v210
    %v212 = vpop.xlane.xlu0 %211
    %vm213 = vcmp.eq.f32.partialorder %v210, %v212
    %v214 = vsel %vm213, %v209, inf
    %215 = vmin.xlane.f32.xlu0 %v214
    %v216 = vpop.xlane.xlu0 %215
    %v217 = vcvt.f32.s32 %v216
    %v218 = vcvt.f32.s32 %v212
    %v219 = vshll.u32 %v218, 16
    %v220 = vadd.s32 %v219, %v217
    %v221 = vand.u32 %v191, 65535
    %v222 = vshra.s32 %v191, 16
    %v223 = vcvt.s32.f32 %v221
    %v224 = vcvt.s32.f32 %v222
    %225 = vmin.xlane.f32.xlu0 %v224
    %v226 = vpop.xlane.xlu0 %225
    %vm227 = vcmp.eq.f32.partialorder %v224, %v226
    %v228 = vsel %vm227, %v223, inf
    %229 = vmin.xlane.f32.xlu0 %v228
    %v230 = vpop.xlane.xlu0 %229
    %v231 = vcvt.f32.s32 %v230
    %v232 = vcvt.f32.s32 %v226
    %v233 = vshll.u32 %v232, 16
    %v234 = vadd.s32 %v233, %v231
    %v235 = vand.u32 %v192, 65535
    %v236 = vshra.s32 %v192, 16
    %v237 = vcvt.s32.f32 %v235
    %v238 = vcvt.s32.f32 %v236
    %239 = vmin.xlane.f32.xlu0 %v238
    %v240 = vpop.xlane.xlu0 %239
    %vm241 = vcmp.eq.f32.partialorder %v238, %v240
    %v242 = vsel %vm241, %v237, inf
    %243 = vmin.xlane.f32.xlu0 %v242
    %v244 = vpop.xlane.xlu0 %243
    %v245 = vcvt.f32.s32 %v244
    %v246 = vcvt.f32.s32 %v240
    %v247 = vshll.u32 %v246, 16
    %v248 = vadd.s32 %v247, %v245
    %vm249 = vcmp.eq.s32.totalorder %v171, %v206
    %vm250 = vcmp.eq.s32.totalorder %v171, %v220
    %vm251 = vcmp.eq.s32.totalorder %v171, %v234
    %vm252 = vcmp.eq.s32.totalorder %v171, %v248
    %v253 = vsel %vm249, 1, 0
    %v254 = vsel %vm250, 1, 0
    %v255 = vsel %vm251, 1, 0
    %v256 = vsel %vm252, 1, 0
    %v257 = vcvt.s32.f32 %v253
    %v258 = vcvt.s32.f32 %v254
    %v259 = vcvt.s32.f32 %v255
    %v260 = vcvt.s32.f32 %v256
    %v261 = vpack.c.bf16 %v258, %v257
    %v262 = vpack.c.bf16 %v260, %v259
    %263 = vmatprep.subr.bf16.mxu0 0
    %264 = vmatpush1.bf16.msra.mxu0 %v86
    %265 = vmatprep.subr.bf16.mxu0 0
    %266 = vmatpush1.bf16.msra.mxu0 %v87
    %267 = vmatprep.subr.bf16.mxu0 0
    %268 = vmatpush1.bf16.msra.mxu0 %v88
    %269 = vmatprep.subr.bf16.mxu0 0
    %270 = vmatpush1.bf16.msra.mxu0 %v89
    %271 = vmatprep.subr.bf16.mxu0 0
    %272 = vmatpush1.bf16.msra.mxu0 %v90
    %273 = vmatprep.subr.bf16.mxu0 0
    %274 = vmatpush1.bf16.msra.mxu0 %v91
    %275 = vmatprep.subr.bf16.mxu0 0
    %276 = vmatpush1.bf16.msra.mxu0 %v92
    %277 = vmatprep.subr.bf16.mxu0 0
    %278 = vmatpush1.bf16.msra.mxu0 %v93
    %279 = vmatprep.subr.bf16.mxu0 0
    %280 = vmatpush1.bf16.msra.mxu0 0
    %281 = vmatprep.subr.bf16.mxu0 0
    %282 = vmatpush1.bf16.msra.mxu0 0
    %283 = vmatprep.subr.bf16.mxu0 0
    %284 = vmatpush1.bf16.msra.mxu0 0
    %285 = vmatprep.subr.bf16.mxu0 0
    %286 = vmatpush1.bf16.msra.mxu0 0
    %287 = vmatprep.subr.bf16.mxu0 0
    %288 = vmatpush1.bf16.msra.mxu0 0
    %289 = vmatprep.subr.bf16.mxu0 0
    %290 = vmatpush1.bf16.msra.mxu0 0
    %291 = vmatprep.subr.bf16.mxu0 0
    %292 = vmatpush1.bf16.msra.mxu0 0
    %293 = vmatprep.subr.bf16.mxu0 0
    %294 = vmatpush1.bf16.msra.mxu0 0
    %295 = vmatprep.mubr.bf16.mxu0 0
    %296 = vmatmul.mubr.bf16.gmra.mrb[0].mxu0 %v261
    %v297 = vpop.f32.mrb[0].mxu0
    %v298 = vadd.f32 0.0, %v297
    %v299 = vpop.f32.mrb[0].mxu0
    %v300 = vpop.f32.mrb[0].mxu0
    %v301 = vadd.f32 0.0, %v300
    %v302 = vpop.f32.mrb[0].mxu0
    %303 = vmatprep.mubr.bf16.mxu0 0
    %304 = vmatmul.mubr.bf16.gmra.mrb[0].mxu0 %v262
    %v305 = vpop.f32.mrb[0].mxu0
    %v306 = vadd.f32 0.0, %v305
    %v307 = vpop.f32.mrb[0].mxu0
    %v308 = vpop.f32.mrb[0].mxu0
    %v309 = vadd.f32 0.0, %v308
    %v310 = vpop.f32.mrb[0].mxu0
    %311 = vdwg.mxu0
    %312 = vst [vmem:[#allocation2] sm:$0xff] %v298
    %313 = vst [vmem:[#allocation2 + $0x8] sm:$0xff] %v301
    %314 = vst [vmem:[#allocation2 + $0x10] sm:$0xff] %v306
    %315 = vst [vmem:[#allocation2 + $0x18] sm:$0xff] %v309
    %v316 = vpack.c.bf16 %v301, %v298
    %v317 = vpack.c.bf16 %v309, %v306
    %v320 = vunpack.c.l.b16 %v316
    %v321 = vunpack.c.h.b16 %v316
    %v322 = vunpack.c.l.b16 %v317
    %v323 = vunpack.c.h.b16 %v317
    %v324 = vpack.c.b16 %v320, %v320
    %v325 = vpack.c.b16 %v321, %v321
    %v326 = vpack.c.b16 %v322, %v322
    %v327 = vpack.c.b16 %v323, %v323
    %332 = vst [vmem:[%s4] sm:$0xf] %v324
    %333 = vst [vmem:[%s4 + $0x4] sm:$0xf] %v325
    %334 = vst [vmem:[%s4 + $0x8] sm:$0xf] %v326
    %335 = vst [vmem:[%s4 + $0xc] sm:$0xf] %v327
    %v336 = vlaneseq
    %v337 = vshrl.u32 %v336, 7
    %v338 = vadd.s32 %v337, 8
    %v339 = vadd.s32 %v337, 16
    %v340 = vadd.s32 %v337, 24
    %s341 = smul.u32 0, 32
    %v342 = vstv %s341
    %v343 = vadd.s32 %v337, %v342
    %v344 = vadd.s32 %v338, %v342
    %v345 = vadd.s32 %v339, %v342
    %v346 = vadd.s32 %v340, %v342
    %vm347 = vcmp.lt.s32.totalorder %v343, 32
    %vm348 = vcmp.lt.s32.totalorder %v344, 32
    %vm349 = vcmp.lt.s32.totalorder %v345, 32
    %vm350 = vcmp.lt.s32.totalorder %v346, 32
    %v351 = vsel %vm347, 1, 0
    %v352 = vsel %vm348, 1, 0
    %v353 = vsel %vm349, 1, 0
    %v354 = vsel %vm350, 1, 0
    %v355 = vcvt.s32.f32 %v351
    %v356 = vcvt.s32.f32 %v352
    %v357 = vcvt.s32.f32 %v353
    %v358 = vcvt.s32.f32 %v354
    %v359 = vsub.f32 %v298, %v20
    %v360 = vsub.f32 %v301, %v21
    %v361 = vsub.f32 %v306, %v22
    %v362 = vsub.f32 %v309, %v23
    %v363 = vmul.f32 %v359, %v359
    %v364 = vmul.f32 %v360, %v360
    %v365 = vmul.f32 %v361, %v361
    %v366 = vmul.f32 %v362, %v362
    %367 = vadd.xlane.f32.xlu0 %v363
    %v368 = vpop.xlane.xlu0 %367
    %369 = vadd.xlane.f32.xlu0 %v364
    %v370 = vpop.xlane.xlu0 %369
    %371 = vadd.xlane.f32.xlu0 %v365
    %v372 = vpop.xlane.xlu0 %371
    %373 = vadd.xlane.f32.xlu0 %v366
    %v374 = vpop.xlane.xlu0 %373
    %v375 = vmul.f32 %v368, %v355
    %v376 = vmul.f32 %v370, %v356
    %v377 = vmul.f32 %v372, %v357
    %v378 = vmul.f32 %v374, %v358
    %v379 = vadd.f32 %v375, %v376
    %v380 = vadd.f32 %v379, %v377
    %v381 = vadd.f32 %v380, %v378
    %v382 = vrot.slane %v381, 4
    %v383 = vadd.f32 %v381, %v382
    %v384 = vrot.slane %v383, 2
    %v385 = vadd.f32 %v383, %v384
    %v386 = vrot.slane %v385, 1
    %v387 = vadd.f32 %v385, %v386
    %v388 = vmul.f32 %v257, %v355
    %v389 = vmul.f32 %v258, %v356
    %v390 = vmul.f32 %v259, %v357
    %v391 = vmul.f32 %v260, %v358
    %v392 = vadd.f32 %v388, %v389
    %v393 = vadd.f32 %v392, %v390
    %v394 = vadd.f32 %v393, %v391
    %v395 = vrot.slane %v394, 4
    %v396 = vadd.f32 %v394, %v395
    %v397 = vrot.slane %v396, 2
    %v398 = vadd.f32 %v396, %v397
    %v399 = vrot.slane %v398, 1
    %v400 = vadd.f32 %v398, %v399
    %401 = vst [vmem:[%s5] sm:$0x1] %v400
    %402 = vst [vmem:[%s6] sm:$0x1] %v387
    // Predicated region
    $region14: #{vqvae_forward.31} parent=1 // pred_check
      _
    $region15: #{vqvae_forward.31} parent=1 // pred_check_branch
      %404 = sbr.rel (0) target = $region17
    $region16: #{vqvae_forward.31} parent=1 // pred_region
      %s406 = ssub.s32 512, 512
      %407 = vsyncadd [#allocation3], %s406
      %s408 = sshll.u32 [#allocation2], 4
      %s409 = int_to_ptr.vmem [resolvable:$true] %s408
      %414 = dma.vmem_to_hbm [thread:$0]  %s409, 512, %s3, [#allocation3], 128, 128, 8
    $region17: #{vqvae_forward.31} parent=1 // pred_fallthru
      _
    // Predicated region
    $region18: #{vqvae_forward.31} parent=1 // pred_check
      _
    $region19: #{vqvae_forward.31} parent=1 // pred_check_branch
      %416 = sbr.rel (0) target = $region21
    $region20: #{vqvae_forward.31} parent=1 // pred_region
      _
    $region21: #{vqvae_forward.31} parent=1 // pred_fallthru
      _
    // Predicated region
    $region22: #{vqvae_forward.31} parent=1 // pred_check
      _
    $region23: #{vqvae_forward.31} parent=1 // pred_check_branch
      %418 = sbr.rel (0) target = $region25
    $region24: #{vqvae_forward.31} parent=1 // pred_region
      _
    $region25: #{vqvae_forward.31} parent=1 // pred_fallthru
      _
    // Predicated region
    $region26: #{vqvae_forward.31} parent=1 // pred_check
      _
    $region27: #{vqvae_forward.31} parent=1 // pred_check_branch
      %420 = sbr.rel (0) target = $region29
    $region28: #{vqvae_forward.31} parent=1 // pred_region
      _
    $region29: #{vqvae_forward.31} parent=1 // pred_fallthru
      _
    // Predicated region
    $region30: #{vqvae_forward.31} parent=1 // pred_check
      _
    $region31: #{vqvae_forward.31} parent=1 // pred_check_branch
      %422 = sbr.rel (0) target = $region33
    $region32: #{vqvae_forward.31} parent=1 // pred_region
      %423 = dma.done [#allocation3], 512
    $region33: #{vqvae_forward.31} parent=1 // pred_fallthru
      _
    // Predicated region
    $region34: #{vqvae_forward.31} parent=1 // pred_check
      _
    $region35: #{vqvae_forward.31} parent=1 // pred_check_branch
      %425 = sbr.rel (0) target = $region37
    $region36: #{vqvae_forward.31} parent=1 // pred_region
      _
    $region37: #{vqvae_forward.31} parent=1 // pred_fallthru
      _
    // Predicated region
    $region38: #{vqvae_forward.31} parent=1 // pred_check
      _
    $region39: #{vqvae_forward.31} parent=1 // pred_check_branch
      %427 = sbr.rel (0) target = $region41
    $region40: #{vqvae_forward.31} parent=1 // pred_region
      _
    $region41: #{vqvae_forward.31} parent=1 // pred_fallthru
      _
    // Predicated region
    $region42: #{vqvae_forward.31} parent=1 // pred_check
      _
    $region43: #{vqvae_forward.31} parent=1 // pred_check_branch
      %429 = sbr.rel (0) target = $region45
    $region44: #{vqvae_forward.31} parent=1 // pred_region
      _
    $region45: #{vqvae_forward.31} parent=1 // pred_fallthru
      _
    %430 = vsyncpa [#allocation3], 1

// kernel: tile.13
$region0: #{tile.13}
  #allocation0 [shape = 's32[1]{0}', space=sflag, size = 0x4, scoped, tag = 'scoped memory for tile.13']
  %s0 = inlined_call_operand.vmem [shape: f32[16], index: 0, kind: input, shape index: {}]
  %s1 = inlined_call_operand.vmem [shape: f32[4,16], index: 1, kind: output, shape index: {}]
  // Predicated region
  $region2: #{tile.13} parent=0 // pred_check
    _
  $region3: #{tile.13} parent=0 // pred_check_branch
    %3 = sbr.rel (0) target = $region5
  $region4: #{tile.13} parent=0 // pred_region
    _
  $region5: #{tile.13} parent=0 // pred_fallthru
    _
  %v4 = vld [vmem:[%s0] ss:$0 sm:$0xff]
  %5 = vst [vmem:[%s1] sm:$0xf] %v4

// kernel: tile.14
$region0: #{tile.14}
  %s0 = inlined_call_operand.vmem [shape: f32[4,16], index: 0, kind: input, shape index: {}]
  %s1 = inlined_call_operand.vmem [shape: f32[1,64], index: 1, kind: output, shape index: {}]
  $region1: #{tile.14} parent=0
    #allocation0 [shape = 'u8[4096]{0}', space=vmem, size = 0x1000, scoped, tag = 'scoped mem for output reshape']
    #allocation1 [shape = 'u8[4096]{0}', space=vmem, size = 0x1000, scoped, tag = 'scoped mem for input reshape']
    %s3 = sshllo.u32 0, 4
    %v4 = vld [vmem:[%s0] sm:%s3]
    %5 = vst [vmem:[#allocation1] sm:%s3] %v4
    %v6 = vld [vmem:[#allocation1] sm:$0x1]
    %vm7 = vcmask 130048
    %8 = vst.msk [vmem:[#allocation0] sm:$0x1] %vm7, %v6
    %s9 = scalar_lea.vmem [#allocation1], 3
    %v10 = vld [vmem:[%s9] sm:$0x1]
    %11 = vrot.lane.b32.xlu0 %v10, 48
    %v12 = vpop.permute.xlu0 %11
    %vm13 = vcmask 523648
    %14 = vst.msk [vmem:[#allocation0] sm:$0x1] %vm13, %v12
    %s15 = scalar_lea.vmem [#allocation1], 2
    %v16 = vld [vmem:[%s15] sm:$0x1]
    %17 = vrot.lane.b32.xlu0 %v16, 32
    %v18 = vpop.permute.xlu0 %17
    %vm19 = vcmask 392448
    %20 = vst.msk [vmem:[#allocation0] sm:$0x1] %vm19, %v18
    %s21 = scalar_lea.vmem [#allocation1], 1
    %v22 = vld [vmem:[%s21] sm:$0x1]
    %23 = vrot.lane.b32.xlu0 %v22, 16
    %v24 = vpop.permute.xlu0 %23
    %vm25 = vcmask 261248
    %26 = vst.msk [vmem:[#allocation0] sm:$0x1] %vm25, %v24
    %s28 = sshllo.u32 0, 1
    %v30 = vld [vmem:[#allocation0] sm:%s28]
    %s31 = sshllo.u32 0, 1
    %32 = vst [vmem:[%s1] sm:%s31] %v30

// kernel: vqvae_forward.34
$region0: #{vqvae_forward.34}
  #allocation0 [shape = 'u32[]', space=smem, size = 0x4, offset = 0x4, fixed_abs, tag = 'smem constant byte address 0x4 - core index']
  #allocation1 [shape = 'u32[144,128]{1,0:T(1,128)}', space=vmem, size = 0x12000, scoped, tag = 'internal scratch']
  #allocation2 [shape = 'u32[2048]{0}', space=vmem, size = 0x2000, scoped, tag = 'scoped memory for vqvae_forward.34']
  #allocation3 [shape = 'u32[2048]{0}', space=vmem, size = 0x2000, scoped, tag = 'scoped memory for vqvae_forward.34']
  #allocation4 [shape = 'u32[2048]{0}', space=vmem, size = 0x2000, scoped, tag = 'scoped memory for vqvae_forward.34']
  #allocation5 [shape = 'u32[2048]{0}', space=vmem, size = 0x2000, scoped, tag = 'scoped memory for vqvae_forward.34']
  #allocation6 [shape = 'u32[2048]{0}', space=vmem, size = 0x2000, scoped, tag = 'scoped memory for vqvae_forward.34']
  %s0 = inlined_call_operand.vmem [shape: bf16[384,128], index: 0, kind: input, shape index: {}]
  %s1 = inlined_call_operand.vmem [shape: f32[1,128], index: 1, kind: input, shape index: {}]
  %s2 = inlined_call_operand.vmem [shape: bf16[32,288], index: 2, kind: input, shape index: {}]
  %s3 = inlined_call_operand.<no memory space> [shape: bf16[], index: 3, kind: input, shape index: {}]
  %s4 = inlined_call_operand.vmem [shape: bf16[32,128], index: 4, kind: output, shape index: {}]
  %s5 = sld [smem:[#allocation0]]
  $region22: #{vqvae_forward.34} parent=0
    _
  %s7 = ssub.s32 1, %s5
  %s8 = scalar_select 0, %s7, %s5
  %v9 = vstv %s3
  %v10 = vunpack.i.l.bf16 %v9
  %v12 = vunpack.i.h.bf16 %v9
  $region1: #{vqvae_forward.34} parent=0
    #allocation7 [shape = 'u8[24576]{0}', space=vmem, size = 0x6000, dematerialized = true, scoped, tag = 'FusionAdapter Buffer %fusion.6 = bf16[32,384]{1,0:T(8,128)(2,1)} fusion(%param_2.5, %param_3.2), kind=kLoop, calls=%fused_computation.74.clone, metadata={op_name="jit(vqvae_forward)/jit(_pad)/pad" stack_frame_id=262}']
    // Predicated region
    $region2: #{vqvae_forward.34} parent=1 // pred_check
      _
    $region3: #{vqvae_forward.34} parent=1 // pred_check_branch
      %15 = sbr.rel (0) target = $region5
    $region4: #{vqvae_forward.34} parent=1 // pred_region
      _
    $region5: #{vqvae_forward.34} parent=1 // pred_fallthru
      _
    // Predicated region
    $region6: #{vqvae_forward.34} parent=1 // pred_check
      _
    $region7: #{vqvae_forward.34} parent=1 // pred_check_branch
      %17 = sbr.rel (0) target = $region9
    $region8: #{vqvae_forward.34} parent=1 // pred_region
      _
    $region9: #{vqvae_forward.34} parent=1 // pred_fallthru
      _
    // Predicated region
    $region10: #{vqvae_forward.34} parent=1 // pred_check
      _
    $region11: #{vqvae_forward.34} parent=1 // pred_check_branch
      %19 = sbr.rel (0) target = $region13
    $region12: #{vqvae_forward.34} parent=1 // pred_region
      _
    $region13: #{vqvae_forward.34} parent=1 // pred_fallthru
      _
    %v20 = vld [vmem:[%s2] sm:$0xf]
    %v21 = vunpack.c.l.bf16 %v20
    %v22 = vunpack.c.h.bf16 %v20
    %v23 = vlaneseq
    %v24 = vand.u32 %v23, 127
    %vm26 = vcmp.lt.s32.totalorder %v24, 288
    %v27 = vsel %vm26, %v21, %v10
    %v28 = vpack.c.bf16 0.0, %v27
    %30 = vst [vmem:[#allocation7] sm:$0xf] %v28
    %s31 = scalar_lea.vmem %s2, 4
    %v32 = vld [vmem:[%s31] sm:$0xf]
    %v33 = vunpack.c.l.bf16 %v32
    %v34 = vunpack.c.h.bf16 %v32
    %v35 = vlaneseq
    %v36 = vand.u32 %v35, 127
    %v37 = vadd.s32 %v36, 128
    %vm38 = vcmp.lt.s32.totalorder %v37, 288
    %v39 = vsel %vm38, %v33, %v10
    %s40 = scalar_lea.vmem [#allocation7], 4
    %v41 = vpack.c.bf16 0.0, %v39
    %43 = vst [vmem:[%s40] sm:$0xf] %v41
    %s44 = scalar_lea.vmem %s2, 8
    %s46 = sor.u32 255, 127
    %s47 = sand.u32 %s46, 85
    %s48 = sshrl.u32 %s47, 1
    %s49 = sor.u32 %s47, %s48
    %s50 = sand.u32 51, %s49
    %s51 = sshrl.u32 %s50, 2
    %s52 = sor.u32 %s50, %s51
    %s53 = sand.u32 15, %s52
    %v54 = vld [vmem:[%s44] sm:%s53]
    %v55 = vunpack.c.l.bf16 %v54
    %v56 = vunpack.c.h.bf16 %v54
    %v57 = vlaneseq
    %v58 = vand.u32 %v57, 127
    %v59 = vadd.s32 %v58, 256
    %vm60 = vcmp.lt.s32.totalorder %v59, 288
    %v61 = vsel %vm60, %v55, %v10
    %s62 = scalar_lea.vmem [#allocation7], 8
    %v63 = vpack.c.bf16 0.0, %v61
    %65 = vst [vmem:[%s62] sm:$0xf] %v63
    %s66 = scalar_lea.vmem %s2, 12
    %v67 = vld [vmem:[%s66] sm:$0xf]
    %v68 = vunpack.c.l.bf16 %v67
    %v69 = vunpack.c.h.bf16 %v67
    %v70 = vlaneseq
    %v71 = vand.u32 %v70, 127
    %vm73 = vcmp.lt.s32.totalorder %v71, 288
    %v74 = vsel %vm73, %v68, %v10
    %s75 = scalar_lea.vmem [#allocation7], 12
    %v76 = vpack.c.bf16 0.0, %v74
    %78 = vst [vmem:[%s75] sm:$0xf] %v76
    %s79 = scalar_lea.vmem %s2, 16
    %v80 = vld [vmem:[%s79] sm:$0xf]
    %v81 = vunpack.c.l.bf16 %v80
    %v82 = vunpack.c.h.bf16 %v80
    %v83 = vlaneseq
    %v84 = vand.u32 %v83, 127
    %v85 = vadd.s32 %v84, 128
    %vm86 = vcmp.lt.s32.totalorder %v85, 288
    %v87 = vsel %vm86, %v81, %v10
    %s88 = scalar_lea.vmem [#allocation7], 16
    %v89 = vpack.c.bf16 0.0, %v87
    %91 = vst [vmem:[%s88] sm:$0xf] %v89
    %s92 = scalar_lea.vmem %s2, 20
    %s94 = sor.u32 255, 127
    %s95 = sand.u32 %s94, 85
    %s96 = sshrl.u32 %s95, 1
    %s97 = sor.u32 %s95, %s96
    %s98 = sand.u32 51, %s97
    %s99 = sshrl.u32 %s98, 2
    %s100 = sor.u32 %s98, %s99
    %s101 = sand.u32 15, %s100
    %v102 = vld [vmem:[%s92] sm:%s101]
    %v103 = vunpack.c.l.bf16 %v102
    %v104 = vunpack.c.h.bf16 %v102
    %v105 = vlaneseq
    %v106 = vand.u32 %v105, 127
    %v107 = vadd.s32 %v106, 256
    %vm108 = vcmp.lt.s32.totalorder %v107, 288
    %v109 = vsel %vm108, %v103, %v10
    %s110 = scalar_lea.vmem [#allocation7], 20
    %v111 = vpack.c.bf16 0.0, %v109
    %113 = vst [vmem:[%s110] sm:$0xf] %v111
    %s114 = scalar_lea.vmem %s2, 24
    %v115 = vld [vmem:[%s114] sm:$0xf]
    %v116 = vunpack.c.l.bf16 %v115
    %v117 = vunpack.c.h.bf16 %v115
    %v118 = vlaneseq
    %v119 = vand.u32 %v118, 127
    %vm121 = vcmp.lt.s32.totalorder %v119, 288
    %v122 = vsel %vm121, %v116, %v10
    %s123 = scalar_lea.vmem [#allocation7], 24
    %v124 = vpack.c.bf16 0.0, %v122
    %126 = vst [vmem:[%s123] sm:$0xf] %v124
    %s127 = scalar_lea.vmem %s2, 28
    %v128 = vld [vmem:[%s127] sm:$0xf]
    %v129 = vunpack.c.l.bf16 %v128
    %v130 = vunpack.c.h.bf16 %v128
    %v131 = vlaneseq
    %v132 = vand.u32 %v131, 127
    %v133 = vadd.s32 %v132, 128
    %vm134 = vcmp.lt.s32.totalorder %v133, 288
    %v135 = vsel %vm134, %v129, %v10
    %s136 = scalar_lea.vmem [#allocation7], 28
    %v137 = vpack.c.bf16 0.0, %v135
    %139 = vst [vmem:[%s136] sm:$0xf] %v137
    %s140 = scalar_lea.vmem %s2, 32
    %s142 = sor.u32 255, 127
    %s143 = sand.u32 %s142, 85
    %s144 = sshrl.u32 %s143, 1
    %s145 = sor.u32 %s143, %s144
    %s146 = sand.u32 51, %s145
    %s147 = sshrl.u32 %s146, 2
    %s148 = sor.u32 %s146, %s147
    %s149 = sand.u32 15, %s148
    %v150 = vld [vmem:[%s140] sm:%s149]
    %v151 = vunpack.c.l.bf16 %v150
    %v152 = vunpack.c.h.bf16 %v150
    %v153 = vlaneseq
    %v154 = vand.u32 %v153, 127
    %v155 = vadd.s32 %v154, 256
    %vm156 = vcmp.lt.s32.totalorder %v155, 288
    %v157 = vsel %vm156, %v151, %v10
    %s158 = scalar_lea.vmem [#allocation7], 32
    %v159 = vpack.c.bf16 0.0, %v157
    %161 = vst [vmem:[%s158] sm:$0xf] %v159
    %s162 = scalar_lea.vmem %s2, 36
    %v163 = vld [vmem:[%s162] sm:$0xf]
    %v164 = vunpack.c.l.bf16 %v163
    %v165 = vunpack.c.h.bf16 %v163
    %v166 = vlaneseq
    %v167 = vand.u32 %v166, 127
    %vm169 = vcmp.lt.s32.totalorder %v167, 288
    %v170 = vsel %vm169, %v164, %v10
    %s171 = scalar_lea.vmem [#allocation7], 36
    %v172 = vpack.c.bf16 0.0, %v170
    %174 = vst [vmem:[%s171] sm:$0xf] %v172
    %s175 = scalar_lea.vmem %s2, 40
    %v176 = vld [vmem:[%s175] sm:$0xf]
    %v177 = vunpack.c.l.bf16 %v176
    %v178 = vunpack.c.h.bf16 %v176
    %v179 = vlaneseq
    %v180 = vand.u32 %v179, 127
    %v181 = vadd.s32 %v180, 128
    %vm182 = vcmp.lt.s32.totalorder %v181, 288
    %v183 = vsel %vm182, %v177, %v10
    %s184 = scalar_lea.vmem [#allocation7], 40
    %v185 = vpack.c.bf16 0.0, %v183
    %187 = vst [vmem:[%s184] sm:$0xf] %v185
    %s188 = scalar_lea.vmem %s2, 44
    %s190 = sor.u32 255, 127
    %s191 = sand.u32 %s190, 85
    %s192 = sshrl.u32 %s191, 1
    %s193 = sor.u32 %s191, %s192
    %s194 = sand.u32 51, %s193
    %s195 = sshrl.u32 %s194, 2
    %s196 = sor.u32 %s194, %s195
    %s197 = sand.u32 15, %s196
    %v198 = vld [vmem:[%s188] sm:%s197]
    %v199 = vunpack.c.l.bf16 %v198
    %v200 = vunpack.c.h.bf16 %v198
    %v201 = vlaneseq
    %v202 = vand.u32 %v201, 127
    %v203 = vadd.s32 %v202, 256
    %vm204 = vcmp.lt.s32.totalorder %v203, 288
    %v205 = vsel %vm204, %v199, %v10
    %s206 = scalar_lea.vmem [#allocation7], 44
    %v207 = vpack.c.bf16 0.0, %v205
    %209 = vst [vmem:[%s206] sm:$0xf] %v207
    %v211 = vld [vmem:[#allocation7] sm:$0xff]
    %v212 = vld [vmem:[#allocation7 + $0x8] sm:$0xf]
    %v213 = vld [vmem:[#allocation7 + $0xc] sm:$0xff]
    %v214 = vld [vmem:[#allocation7 + $0x14] sm:$0xf]
    %v215 = vld [vmem:[#allocation7 + $0x18] sm:$0xff]
    %v216 = vld [vmem:[#allocation7 + $0x20] sm:$0xf]
    %v217 = vld [vmem:[#allocation7 + $0x24] sm:$0xff]
    %v218 = vld [vmem:[#allocation7 + $0x2c] sm:$0xf]
    %v219 = vld [vmem:[%s0] sm:$0xf]
    %v220 = vld [vmem:[%s0 + $0x4] sm:$0xf]
    %v221 = vld [vmem:[%s0 + $0x8] sm:$0xf]
    %v222 = vld [vmem:[%s0 + $0xc] sm:$0xf]
    %v223 = vld [vmem:[%s0 + $0x10] sm:$0xf]
    %v224 = vld [vmem:[%s0 + $0x14] sm:$0xf]
    %v225 = vld [vmem:[%s0 + $0x18] sm:$0xf]
    %v226 = vld [vmem:[%s0 + $0x1c] sm:$0xf]
    %v227 = vld [vmem:[%s0 + $0x20] sm:$0xf]
    %v228 = vld [vmem:[%s0 + $0x24] sm:$0xf]
    %v229 = vld [vmem:[%s0 + $0x28] sm:$0xf]
    %v230 = vld [vmem:[%s0 + $0x2c] sm:$0xf]
    %v231 = vld [vmem:[%s0 + $0x30] sm:$0xf]
    %v232 = vld [vmem:[%s0 + $0x34] sm:$0xf]
    %v233 = vld [vmem:[%s0 + $0x38] sm:$0xf]
    %v234 = vld [vmem:[%s0 + $0x3c] sm:$0xf]
    %v235 = vld [vmem:[%s0 + $0x40] sm:$0xf]
    %v236 = vld [vmem:[%s0 + $0x44] sm:$0xf]
    %v237 = vld [vmem:[%s0 + $0x48] sm:$0xf]
    %v238 = vld [vmem:[%s0 + $0x4c] sm:$0xf]
    %v239 = vld [vmem:[%s0 + $0x50] sm:$0xf]
    %v240 = vld [vmem:[%s0 + $0x54] sm:$0xf]
    %v241 = vld [vmem:[%s0 + $0x58] sm:$0xf]
    %v242 = vld [vmem:[%s0 + $0x5c] sm:$0xf]
    %v243 = vld [vmem:[%s0 + $0x60] sm:$0xf]
    %v244 = vld [vmem:[%s0 + $0x64] sm:$0xf]
    %v245 = vld [vmem:[%s0 + $0x68] sm:$0xf]
    %v246 = vld [vmem:[%s0 + $0x6c] sm:$0xf]
    %v247 = vld [vmem:[%s0 + $0x70] sm:$0xf]
    %v248 = vld [vmem:[%s0 + $0x74] sm:$0xf]
    %v249 = vld [vmem:[%s0 + $0x78] sm:$0xf]
    %v250 = vld [vmem:[%s0 + $0x7c] sm:$0xf]
    %v251 = vld [vmem:[%s0 + $0x80] sm:$0xf]
    %v252 = vld [vmem:[%s0 + $0x84] sm:$0xf]
    %v253 = vld [vmem:[%s0 + $0x88] sm:$0xf]
    %v254 = vld [vmem:[%s0 + $0x8c] sm:$0xf]
    %v255 = vld [vmem:[%s0 + $0x90] sm:$0xf]
    %v256 = vld [vmem:[%s0 + $0x94] sm:$0xf]
    %v257 = vld [vmem:[%s0 + $0x98] sm:$0xf]
    %v258 = vld [vmem:[%s0 + $0x9c] sm:$0xf]
    %v259 = vld [vmem:[%s0 + $0xa0] sm:$0xf]
    %v260 = vld [vmem:[%s0 + $0xa4] sm:$0xf]
    %v261 = vld [vmem:[%s0 + $0xa8] sm:$0xf]
    %v262 = vld [vmem:[%s0 + $0xac] sm:$0xf]
    %v263 = vld [vmem:[%s0 + $0xb0] sm:$0xf]
    %v264 = vld [vmem:[%s0 + $0xb4] sm:$0xf]
    %v265 = vld [vmem:[%s0 + $0xb8] sm:$0xf]
    %v266 = vld [vmem:[%s0 + $0xbc] sm:$0xf]
    %v267 = vld [vmem:[%s1] sm:$0x1]
    %v269 = vlaneseq
    %v270 = vshrl.u32 %v269, 7
    %v271 = vsub.s32 0, %v270
    %v272 = vrot.slane %v267, %v271
    %v282 = vunpack.c.l.b16 %v211
    %v283 = vunpack.c.h.b16 %v211
    %v284 = vunpack.c.l.b16 %v212
    %v285 = vunpack.c.l.b16 %v213
    %v286 = vunpack.c.h.b16 %v213
    %v287 = vunpack.c.l.b16 %v214
    %v288 = vunpack.c.l.b16 %v215
    %v289 = vunpack.c.h.b16 %v215
    %v290 = vunpack.c.l.b16 %v216
    %v291 = vunpack.c.l.b16 %v217
    %v292 = vunpack.c.h.b16 %v217
    %v293 = vunpack.c.l.b16 %v218
    %v294 = vpack.c.b16 %v285, %v282
    %v295 = vpack.c.b16 %v286, %v283
    %v296 = vpack.c.b16 %v287, %v284
    %v297 = vpack.c.b16 %v291, %v288
    %v298 = vpack.c.b16 %v292, %v289
    %v299 = vpack.c.b16 %v293, %v290
    %v354 = vunpack.c.l.b16 %v219
    %v355 = vunpack.c.l.b16 %v220
    %v356 = vunpack.c.l.b16 %v221
    %v357 = vunpack.c.l.b16 %v222
    %v358 = vunpack.c.l.b16 %v223
    %v359 = vunpack.c.l.b16 %v224
    %v360 = vunpack.c.l.b16 %v225
    %v361 = vunpack.c.l.b16 %v226
    %v362 = vunpack.c.l.b16 %v227
    %v363 = vunpack.c.l.b16 %v228
    %v364 = vunpack.c.l.b16 %v229
    %v365 = vunpack.c.l.b16 %v230
    %v366 = vunpack.c.l.b16 %v231
    %v367 = vunpack.c.l.b16 %v232
    %v368 = vunpack.c.l.b16 %v233
    %v369 = vunpack.c.l.b16 %v234
    %v370 = vunpack.c.l.b16 %v235
    %v371 = vunpack.c.l.b16 %v236
    %v372 = vunpack.c.l.b16 %v237
    %v373 = vunpack.c.l.b16 %v238
    %v374 = vunpack.c.l.b16 %v239
    %v375 = vunpack.c.l.b16 %v240
    %v376 = vunpack.c.l.b16 %v241
    %v377 = vunpack.c.l.b16 %v242
    %v378 = vunpack.c.l.b16 %v243
    %v379 = vunpack.c.l.b16 %v244
    %v380 = vunpack.c.l.b16 %v245
    %v381 = vunpack.c.l.b16 %v246
    %v382 = vunpack.c.l.b16 %v247
    %v383 = vunpack.c.l.b16 %v248
    %v384 = vunpack.c.l.b16 %v249
    %v385 = vunpack.c.l.b16 %v250
    %v386 = vunpack.c.l.b16 %v251
    %v387 = vunpack.c.l.b16 %v252
    %v388 = vunpack.c.l.b16 %v253
    %v389 = vunpack.c.l.b16 %v254
    %v390 = vunpack.c.l.b16 %v255
    %v391 = vunpack.c.l.b16 %v256
    %v392 = vunpack.c.l.b16 %v257
    %v393 = vunpack.c.l.b16 %v258
    %v394 = vunpack.c.l.b16 %v259
    %v395 = vunpack.c.l.b16 %v260
    %v396 = vunpack.c.l.b16 %v261
    %v397 = vunpack.c.l.b16 %v262
    %v398 = vunpack.c.l.b16 %v263
    %v399 = vunpack.c.l.b16 %v264
    %v400 = vunpack.c.l.b16 %v265
    %v401 = vunpack.c.l.b16 %v266
    %v402 = vpack.c.b16 %v355, %v354
    %v403 = vpack.c.b16 %v357, %v356
    %v404 = vpack.c.b16 %v359, %v358
    %v405 = vpack.c.b16 %v361, %v360
    %v406 = vpack.c.b16 %v363, %v362
    %v407 = vpack.c.b16 %v365, %v364
    %v408 = vpack.c.b16 %v367, %v366
    %v409 = vpack.c.b16 %v369, %v368
    %v410 = vpack.c.b16 %v371, %v370
    %v411 = vpack.c.b16 %v373, %v372
    %v412 = vpack.c.b16 %v375, %v374
    %v413 = vpack.c.b16 %v377, %v376
    %v414 = vpack.c.b16 %v379, %v378
    %v415 = vpack.c.b16 %v381, %v380
    %v416 = vpack.c.b16 %v383, %v382
    %v417 = vpack.c.b16 %v385, %v384
    %v418 = vpack.c.b16 %v387, %v386
    %v419 = vpack.c.b16 %v389, %v388
    %v420 = vpack.c.b16 %v391, %v390
    %v421 = vpack.c.b16 %v393, %v392
    %v422 = vpack.c.b16 %v395, %v394
    %v423 = vpack.c.b16 %v397, %v396
    %v424 = vpack.c.b16 %v399, %v398
    %v425 = vpack.c.b16 %v401, %v400
    %450 = vmatprep.subr.bf16.mxu0 0
    %451 = vmatpush1.bf16.msra.mxu0 %v402
    %452 = vmatprep.subr.bf16.mxu0 0
    %453 = vmatpush1.bf16.msra.mxu0 %v403
    %454 = vmatprep.subr.bf16.mxu0 0
    %455 = vmatpush1.bf16.msra.mxu0 %v404
    %456 = vmatprep.subr.bf16.mxu0 0
    %457 = vmatpush1.bf16.msra.mxu0 %v405
    %458 = vmatprep.subr.bf16.mxu0 0
    %459 = vmatpush1.bf16.msra.mxu0 %v406
    %460 = vmatprep.subr.bf16.mxu0 0
    %461 = vmatpush1.bf16.msra.mxu0 %v407
    %462 = vmatprep.subr.bf16.mxu0 0
    %463 = vmatpush1.bf16.msra.mxu0 %v408
    %464 = vmatprep.subr.bf16.mxu0 0
    %465 = vmatpush1.bf16.msra.mxu0 %v409
    %466 = vmatprep.subr.bf16.mxu0 0
    %467 = vmatpush1.bf16.msra.mxu0 %v410
    %468 = vmatprep.subr.bf16.mxu0 0
    %469 = vmatpush1.bf16.msra.mxu0 %v411
    %470 = vmatprep.subr.bf16.mxu0 0
    %471 = vmatpush1.bf16.msra.mxu0 %v412
    %472 = vmatprep.subr.bf16.mxu0 0
    %473 = vmatpush1.bf16.msra.mxu0 %v413
    %474 = vmatprep.subr.bf16.mxu0 0
    %475 = vmatpush1.bf16.msra.mxu0 %v414
    %476 = vmatprep.subr.bf16.mxu0 0
    %477 = vmatpush1.bf16.msra.mxu0 %v415
    %478 = vmatprep.subr.bf16.mxu0 0
    %479 = vmatpush1.bf16.msra.mxu0 %v416
    %480 = vmatprep.subr.bf16.mxu0 0
    %481 = vmatpush1.bf16.msra.mxu0 %v417
    %482 = vmatprep.mubr.bf16.mxu0 %v295
    %483 = vmatmul.mubr.bf16.gmra.mrb[0].mxu0 %v294
    %v484 = vpop.f32.mrb[0].mxu0
    %v485 = vadd.f32 %v272, %v484
    %v486 = vpop.f32.mrb[0].mxu0
    %v487 = vpop.f32.mrb[0].mxu0
    %v488 = vadd.f32 %v272, %v487
    %v489 = vpop.f32.mrb[0].mxu0
    %490 = vmatprep.mubr.bf16.mxu0 %v298
    %491 = vmatmul.mubr.bf16.gmra.mrb[0].mxu0 %v297
    %v492 = vpop.f32.mrb[0].mxu0
    %v493 = vadd.f32 %v272, %v492
    %v494 = vpop.f32.mrb[0].mxu0
    %v495 = vpop.f32.mrb[0].mxu0
    %v496 = vadd.f32 %v272, %v495
    %v497 = vpop.f32.mrb[0].mxu0
    %498 = vdwg.mxu0
    %499 = vmatprep.subr.bf16.mxu0 0
    %500 = vmatpush1.bf16.msra.mxu0 %v418
    %501 = vmatprep.subr.bf16.mxu0 0
    %502 = vmatpush1.bf16.msra.mxu0 %v419
    %503 = vmatprep.subr.bf16.mxu0 0
    %504 = vmatpush1.bf16.msra.mxu0 %v420
    %505 = vmatprep.subr.bf16.mxu0 0
    %506 = vmatpush1.bf16.msra.mxu0 %v421
    %507 = vmatprep.subr.bf16.mxu0 0
    %508 = vmatpush1.bf16.msra.mxu0 %v422
    %509 = vmatprep.subr.bf16.mxu0 0
    %510 = vmatpush1.bf16.msra.mxu0 %v423
    %511 = vmatprep.subr.bf16.mxu0 0
    %512 = vmatpush1.bf16.msra.mxu0 %v424
    %513 = vmatprep.subr.bf16.mxu0 0
    %514 = vmatpush1.bf16.msra.mxu0 %v425
    %515 = vmatprep.subr.bf16.mxu0 0
    %516 = vmatpush1.bf16.msra.mxu0 0
    %517 = vmatprep.subr.bf16.mxu0 0
    %518 = vmatpush1.bf16.msra.mxu0 0
    %519 = vmatprep.subr.bf16.mxu0 0
    %520 = vmatpush1.bf16.msra.mxu0 0
    %521 = vmatprep.subr.bf16.mxu0 0
    %522 = vmatpush1.bf16.msra.mxu0 0
    %523 = vmatprep.subr.bf16.mxu0 0
    %524 = vmatpush1.bf16.msra.mxu0 0
    %525 = vmatprep.subr.bf16.mxu0 0
    %526 = vmatpush1.bf16.msra.mxu0 0
    %527 = vmatprep.subr.bf16.mxu0 0
    %528 = vmatpush1.bf16.msra.mxu0 0
    %529 = vmatprep.subr.bf16.mxu0 0
    %530 = vmatpush1.bf16.msra.mxu0 0
    %531 = vmatprep.mubr.bf16.mxu0 0
    %532 = vmatmul.mubr.bf16.gmra.mrb[0].mxu0 %v296
    %v533 = vpop.f32.mrb[0].mxu0
    %v534 = vadd.f32 %v485, %v533
    %v535 = vpop.f32.mrb[0].mxu0
    %v536 = vpop.f32.mrb[0].mxu0
    %v537 = vadd.f32 %v488, %v536
    %v538 = vpop.f32.mrb[0].mxu0
    %539 = vmatprep.mubr.bf16.mxu0 0
    %540 = vmatmul.mubr.bf16.gmra.mrb[0].mxu0 %v299
    %v541 = vpop.f32.mrb[0].mxu0
    %v542 = vadd.f32 %v493, %v541
    %v543 = vpop.f32.mrb[0].mxu0
    %v544 = vpop.f32.mrb[0].mxu0
    %v545 = vadd.f32 %v496, %v544
    %v546 = vpop.f32.mrb[0].mxu0
    %547 = vdwg.mxu0
    %v548 = vmax.f32 %v534, 0.0
    %v549 = vmax.f32 %v537, 0.0
    %v550 = vmax.f32 %v542, 0.0
    %v551 = vmax.f32 %v545, 0.0
    %v552 = vpack.c.bf16 %v549, %v548
    %v553 = vpack.c.bf16 %v551, %v550
    %v556 = vunpack.c.l.b16 %v552
    %v557 = vunpack.c.h.b16 %v552
    %v558 = vunpack.c.l.b16 %v553
    %v559 = vunpack.c.h.b16 %v553
    %v560 = vpack.c.b16 %v556, %v556
    %v561 = vpack.c.b16 %v557, %v557
    %v562 = vpack.c.b16 %v558, %v558
    %v563 = vpack.c.b16 %v559, %v559
    %568 = vst [vmem:[%s4] sm:$0xf] %v560
    %569 = vst [vmem:[%s4 + $0x4] sm:$0xf] %v561
    %570 = vst [vmem:[%s4 + $0x8] sm:$0xf] %v562
    %571 = vst [vmem:[%s4 + $0xc] sm:$0xf] %v563
    // Predicated region
    $region14: #{vqvae_forward.34} parent=1 // pred_check
      _
    $region15: #{vqvae_forward.34} parent=1 // pred_check_branch
      %573 = sbr.rel (0) target = $region17
    $region16: #{vqvae_forward.34} parent=1 // pred_region
      _
    $region17: #{vqvae_forward.34} parent=1 // pred_fallthru
      _
    // Predicated region
    $region18: #{vqvae_forward.34} parent=1 // pred_check
      _
    $region19: #{vqvae_forward.34} parent=1 // pred_check_branch
      %575 = sbr.rel (0) target = $region21
    $region20: #{vqvae_forward.34} parent=1 // pred_region
      _
    $region21: #{vqvae_forward.34} parent=1 // pred_fallthru
      _

// kernel: tile.19
$region0: #{tile.19}
  %s0 = inlined_call_operand.vmem [shape: f32[4,3], index: 0, kind: input, shape index: {}]
  %s1 = inlined_call_operand.vmem [shape: f32[1,12], index: 1, kind: output, shape index: {}]
  $region1: #{tile.19} parent=0
    #allocation0 [shape = 'u8[4096]{0}', space=vmem, size = 0x1000, scoped, tag = 'scoped mem for output reshape']
    #allocation1 [shape = 'u8[4096]{0}', space=vmem, size = 0x1000, scoped, tag = 'scoped mem for input reshape']
    %s3 = sshllo.u32 0, 4
    %v4 = vld [vmem:[%s0] sm:%s3]
    %5 = vst [vmem:[#allocation1] sm:%s3] %v4
    %v6 = vld [vmem:[#allocation1] sm:$0x1]
    %vm7 = vcmask 23552
    %8 = vst.msk [vmem:[#allocation0] sm:$0x1] %vm7, %v6
    %s9 = scalar_lea.vmem [#allocation1], 3
    %v10 = vld [vmem:[%s9] sm:$0x1]
    %11 = vrot.lane.b32.xlu0 %v10, 9
    %v12 = vpop.permute.xlu0 %11
    %vm13 = vcmask 97352
    %14 = vst.msk [vmem:[#allocation0] sm:$0x1] %vm13, %v12
    %s15 = scalar_lea.vmem [#allocation1], 2
    %v16 = vld [vmem:[%s15] sm:$0x1]
    %17 = vrot.lane.b32.xlu0 %v16, 6
    %v18 = vpop.permute.xlu0 %17
    %vm19 = vcmask 72752
    %20 = vst.msk [vmem:[#allocation0] sm:$0x1] %vm19, %v18
    %s21 = scalar_lea.vmem [#allocation1], 1
    %v22 = vld [vmem:[%s21] sm:$0x1]
    %23 = vrot.lane.b32.xlu0 %v22, 3
    %v24 = vpop.permute.xlu0 %23
    %vm25 = vcmask 48152
    %26 = vst.msk [vmem:[#allocation0] sm:$0x1] %vm25, %v24
    %s28 = sshllo.u32 0, 1
    %v30 = vld [vmem:[#allocation0] sm:%s28]
    %s31 = sshllo.u32 0, 1
    %32 = vst [vmem:[%s1] sm:%s31] %v30

// kernel: tile.18
$region0: #{tile.18}
  #allocation0 [shape = 's32[1]{0}', space=sflag, size = 0x4, scoped, tag = 'scoped memory for tile.18']
  %s0 = inlined_call_operand.vmem [shape: f32[3], index: 0, kind: input, shape index: {}]
  %s1 = inlined_call_operand.vmem [shape: f32[4,3], index: 1, kind: output, shape index: {}]
  // Predicated region
  $region2: #{tile.18} parent=0 // pred_check
    _
  $region3: #{tile.18} parent=0 // pred_check_branch
    %3 = sbr.rel (0) target = $region5
  $region4: #{tile.18} parent=0 // pred_region
    _
  $region5: #{tile.18} parent=0 // pred_fallthru
    _
  %v4 = vld [vmem:[%s0] ss:$0 sm:$0xff]
  %5 = vst [vmem:[%s1] sm:$0xf] %v4

// kernel: vqvae_forward.32
$region0: #{vqvae_forward.32}
  #allocation0 [shape = 'u32[]', space=smem, size = 0x4, offset = 0x4, fixed_abs, tag = 'smem constant byte address 0x4 - core index']
  #allocation1 [shape = 'u32[144,128]{1,0:T(1,128)}', space=vmem, size = 0x12000, scoped, tag = 'internal scratch']
  #allocation2 [shape = 'u32[2048]{0}', space=vmem, size = 0x2000, scoped, tag = 'scoped memory for vqvae_forward.32']
  #allocation3 [shape = 'u32[2048]{0}', space=vmem, size = 0x2000, scoped, tag = 'scoped memory for vqvae_forward.32']
  #allocation4 [shape = 'u32[2048]{0}', space=vmem, size = 0x2000, scoped, tag = 'scoped memory for vqvae_forward.32']
  #allocation5 [shape = 'u32[2048]{0}', space=vmem, size = 0x2000, scoped, tag = 'scoped memory for vqvae_forward.32']
  #allocation6 [shape = 'u32[2048]{0}', space=vmem, size = 0x2000, scoped, tag = 'scoped memory for vqvae_forward.32']
  %s0 = inlined_call_operand.vmem [shape: bf16[256,128], index: 0, kind: input, shape index: {}]
  %s1 = inlined_call_operand.vmem [shape: f32[1,128], index: 1, kind: input, shape index: {}]
  %s2 = inlined_call_operand.vmem [shape: bf16[128,144], index: 2, kind: input, shape index: {}]
  %s3 = inlined_call_operand.<no memory space> [shape: bf16[], index: 3, kind: input, shape index: {}]
  %s4 = inlined_call_operand.vmem [shape: f32[128,128], index: 4, kind: output, shape index: {}]
  %s5 = sld [smem:[#allocation0]]
  $region22: #{vqvae_forward.32} parent=0
    _
  %s7 = ssub.s32 1, %s5
  %s8 = scalar_select 0, %s7, %s5
  %v9 = vstv %s3
  %v10 = vunpack.i.l.bf16 %v9
  %v12 = vunpack.i.h.bf16 %v9
  $region1: #{vqvae_forward.32} parent=0
    #allocation7 [shape = 'u8[65536]{0}', space=vmem, size = 0x10000, dematerialized = true, scoped, tag = 'FusionAdapter Buffer %fusion.2 = bf16[128,256]{1,0:T(8,128)(2,1)} fusion(%param_2.1, %param_3), kind=kLoop, calls=%fused_computation.13.clone, metadata={op_name="jit(vqvae_forward)/jit(_pad)/pad" stack_frame_id=292}']
    // Predicated region
    $region2: #{vqvae_forward.32} parent=1 // pred_check
      _
    $region3: #{vqvae_forward.32} parent=1 // pred_check_branch
      %15 = sbr.rel (0) target = $region5
    $region4: #{vqvae_forward.32} parent=1 // pred_region
      _
    $region5: #{vqvae_forward.32} parent=1 // pred_fallthru
      _
    // Predicated region
    $region6: #{vqvae_forward.32} parent=1 // pred_check
      _
    $region7: #{vqvae_forward.32} parent=1 // pred_check_branch
      %17 = sbr.rel (0) target = $region9
    $region8: #{vqvae_forward.32} parent=1 // pred_region
      _
    $region9: #{vqvae_forward.32} parent=1 // pred_fallthru
      _
    // Predicated region
    $region10: #{vqvae_forward.32} parent=1 // pred_check
      _
    $region11: #{vqvae_forward.32} parent=1 // pred_check_branch
      %19 = sbr.rel (0) target = $region13
    $region12: #{vqvae_forward.32} parent=1 // pred_region
      _
    $region13: #{vqvae_forward.32} parent=1 // pred_fallthru
      _
    %v20 = vld [vmem:[%s2] sm:$0xf]
    %v21 = vunpack.c.l.bf16 %v20
    %v22 = vunpack.c.h.bf16 %v20
    %v23 = vlaneseq
    %v24 = vand.u32 %v23, 127
    %vm26 = vcmp.lt.s32.totalorder %v24, 144
    %v27 = vsel %vm26, %v21, %v10
    %v28 = vpack.c.bf16 0.0, %v27
    %30 = vst [vmem:[#allocation7] sm:$0xf] %v28
    %s31 = scalar_lea.vmem %s2, 4
    %s33 = sor.u32 255, 127
    %s34 = sand.u32 %s33, 85
    %s35 = sshrl.u32 %s34, 1
    %s36 = sor.u32 %s34, %s35
    %s37 = sand.u32 51, %s36
    %s38 = sshrl.u32 %s37, 2
    %s39 = sor.u32 %s37, %s38
    %s40 = sand.u32 15, %s39
    %v41 = vld [vmem:[%s31] sm:%s40]
    %v42 = vunpack.c.l.bf16 %v41
    %v43 = vunpack.c.h.bf16 %v41
    %v44 = vlaneseq
    %v45 = vand.u32 %v44, 127
    %v46 = vadd.s32 %v45, 128
    %vm47 = vcmp.lt.s32.totalorder %v46, 144
    %v48 = vsel %vm47, %v42, %v10
    %s49 = scalar_lea.vmem [#allocation7], 4
    %v50 = vpack.c.bf16 0.0, %v48
    %52 = vst [vmem:[%s49] sm:$0xf] %v50
    %s53 = scalar_lea.vmem %s2, 8
    %v54 = vld [vmem:[%s53] sm:$0xf]
    %v55 = vunpack.c.l.bf16 %v54
    %v56 = vunpack.c.h.bf16 %v54
    %v57 = vlaneseq
    %v58 = vand.u32 %v57, 127
    %vm60 = vcmp.lt.s32.totalorder %v58, 144
    %v61 = vsel %vm60, %v55, %v10
    %s62 = scalar_lea.vmem [#allocation7], 8
    %v63 = vpack.c.bf16 0.0, %v61
    %65 = vst [vmem:[%s62] sm:$0xf] %v63
    %s66 = scalar_lea.vmem %s2, 12
    %s68 = sor.u32 255, 127
    %s69 = sand.u32 %s68, 85
    %s70 = sshrl.u32 %s69, 1
    %s71 = sor.u32 %s69, %s70
    %s72 = sand.u32 51, %s71
    %s73 = sshrl.u32 %s72, 2
    %s74 = sor.u32 %s72, %s73
    %s75 = sand.u32 15, %s74
    %v76 = vld [vmem:[%s66] sm:%s75]
    %v77 = vunpack.c.l.bf16 %v76
    %v78 = vunpack.c.h.bf16 %v76
    %v79 = vlaneseq
    %v80 = vand.u32 %v79, 127
    %v81 = vadd.s32 %v80, 128
    %vm82 = vcmp.lt.s32.totalorder %v81, 144
    %v83 = vsel %vm82, %v77, %v10
    %s84 = scalar_lea.vmem [#allocation7], 12
    %v85 = vpack.c.bf16 0.0, %v83
    %87 = vst [vmem:[%s84] sm:$0xf] %v85
    %s88 = scalar_lea.vmem %s2, 16
    %v89 = vld [vmem:[%s88] sm:$0xf]
    %v90 = vunpack.c.l.bf16 %v89
    %v91 = vunpack.c.h.bf16 %v89
    %v92 = vlaneseq
    %v93 = vand.u32 %v92, 127
    %vm95 = vcmp.lt.s32.totalorder %v93, 144
    %v96 = vsel %vm95, %v90, %v10
    %s97 = scalar_lea.vmem [#allocation7], 16
    %v98 = vpack.c.bf16 0.0, %v96
    %100 = vst [vmem:[%s97] sm:$0xf] %v98
    %s101 = scalar_lea.vmem %s2, 20
    %s103 = sor.u32 255, 127
    %s104 = sand.u32 %s103, 85
    %s105 = sshrl.u32 %s104, 1
    %s106 = sor.u32 %s104, %s105
    %s107 = sand.u32 51, %s106
    %s108 = sshrl.u32 %s107, 2
    %s109 = sor.u32 %s107, %s108
    %s110 = sand.u32 15, %s109
    %v111 = vld [vmem:[%s101] sm:%s110]
    %v112 = vunpack.c.l.bf16 %v111
    %v113 = vunpack.c.h.bf16 %v111
    %v114 = vlaneseq
    %v115 = vand.u32 %v114, 127
    %v116 = vadd.s32 %v115, 128
    %vm117 = vcmp.lt.s32.totalorder %v116, 144
    %v118 = vsel %vm117, %v112, %v10
    %s119 = scalar_lea.vmem [#allocation7], 20
    %v120 = vpack.c.bf16 0.0, %v118
    %122 = vst [vmem:[%s119] sm:$0xf] %v120
    %s123 = scalar_lea.vmem %s2, 24
    %v124 = vld [vmem:[%s123] sm:$0xf]
    %v125 = vunpack.c.l.bf16 %v124
    %v126 = vunpack.c.h.bf16 %v124
    %v127 = vlaneseq
    %v128 = vand.u32 %v127, 127
    %vm130 = vcmp.lt.s32.totalorder %v128, 144
    %v131 = vsel %vm130, %v125, %v10
    %s132 = scalar_lea.vmem [#allocation7], 24
    %v133 = vpack.c.bf16 0.0, %v131
    %135 = vst [vmem:[%s132] sm:$0xf] %v133
    %s136 = scalar_lea.vmem %s2, 28
    %s138 = sor.u32 255, 127
    %s139 = sand.u32 %s138, 85
    %s140 = sshrl.u32 %s139, 1
    %s141 = sor.u32 %s139, %s140
    %s142 = sand.u32 51, %s141
    %s143 = sshrl.u32 %s142, 2
    %s144 = sor.u32 %s142, %s143
    %s145 = sand.u32 15, %s144
    %v146 = vld [vmem:[%s136] sm:%s145]
    %v147 = vunpack.c.l.bf16 %v146
    %v148 = vunpack.c.h.bf16 %v146
    %v149 = vlaneseq
    %v150 = vand.u32 %v149, 127
    %v151 = vadd.s32 %v150, 128
    %vm152 = vcmp.lt.s32.totalorder %v151, 144
    %v153 = vsel %vm152, %v147, %v10
    %s154 = scalar_lea.vmem [#allocation7], 28
    %v155 = vpack.c.bf16 0.0, %v153
    %157 = vst [vmem:[%s154] sm:$0xf] %v155
    %s158 = scalar_lea.vmem %s2, 32
    %v159 = vld [vmem:[%s158] sm:$0xf]
    %v160 = vunpack.c.l.bf16 %v159
    %v161 = vunpack.c.h.bf16 %v159
    %v162 = vlaneseq
    %v163 = vand.u32 %v162, 127
    %vm165 = vcmp.lt.s32.totalorder %v163, 144
    %v166 = vsel %vm165, %v160, %v10
    %s167 = scalar_lea.vmem [#allocation7], 32
    %v168 = vpack.c.bf16 0.0, %v166
    %170 = vst [vmem:[%s167] sm:$0xf] %v168
    %s171 = scalar_lea.vmem %s2, 36
    %s173 = sor.u32 255, 127
    %s174 = sand.u32 %s173, 85
    %s175 = sshrl.u32 %s174, 1
    %s176 = sor.u32 %s174, %s175
    %s177 = sand.u32 51, %s176
    %s178 = sshrl.u32 %s177, 2
    %s179 = sor.u32 %s177, %s178
    %s180 = sand.u32 15, %s179
    %v181 = vld [vmem:[%s171] sm:%s180]
    %v182 = vunpack.c.l.bf16 %v181
    %v183 = vunpack.c.h.bf16 %v181
    %v184 = vlaneseq
    %v185 = vand.u32 %v184, 127
    %v186 = vadd.s32 %v185, 128
    %vm187 = vcmp.lt.s32.totalorder %v186, 144
    %v188 = vsel %vm187, %v182, %v10
    %s189 = scalar_lea.vmem [#allocation7], 36
    %v190 = vpack.c.bf16 0.0, %v188
    %192 = vst [vmem:[%s189] sm:$0xf] %v190
    %s193 = scalar_lea.vmem %s2, 40
    %v194 = vld [vmem:[%s193] sm:$0xf]
    %v195 = vunpack.c.l.bf16 %v194
    %v196 = vunpack.c.h.bf16 %v194
    %v197 = vlaneseq
    %v198 = vand.u32 %v197, 127
    %vm200 = vcmp.lt.s32.totalorder %v198, 144
    %v201 = vsel %vm200, %v195, %v10
    %s202 = scalar_lea.vmem [#allocation7], 40
    %v203 = vpack.c.bf16 0.0, %v201
    %205 = vst [vmem:[%s202] sm:$0xf] %v203
    %s206 = scalar_lea.vmem %s2, 44
    %s208 = sor.u32 255, 127
    %s209 = sand.u32 %s208, 85
    %s210 = sshrl.u32 %s209, 1
    %s211 = sor.u32 %s209, %s210
    %s212 = sand.u32 51, %s211
    %s213 = sshrl.u32 %s212, 2
    %s214 = sor.u32 %s212, %s213
    %s215 = sand.u32 15, %s214
    %v216 = vld [vmem:[%s206] sm:%s215]
    %v217 = vunpack.c.l.bf16 %v216
    %v218 = vunpack.c.h.bf16 %v216
    %v219 = vlaneseq
    %v220 = vand.u32 %v219, 127
    %v221 = vadd.s32 %v220, 128
    %vm222 = vcmp.lt.s32.totalorder %v221, 144
    %v223 = vsel %vm222, %v217, %v10
    %s224 = scalar_lea.vmem [#allocation7], 44
    %v225 = vpack.c.bf16 0.0, %v223
    %227 = vst [vmem:[%s224] sm:$0xf] %v225
    %s228 = scalar_lea.vmem %s2, 48
    %v229 = vld [vmem:[%s228] sm:$0xf]
    %v230 = vunpack.c.l.bf16 %v229
    %v231 = vunpack.c.h.bf16 %v229
    %v232 = vlaneseq
    %v233 = vand.u32 %v232, 127
    %vm235 = vcmp.lt.s32.totalorder %v233, 144
    %v236 = vsel %vm235, %v230, %v10
    %s237 = scalar_lea.vmem [#allocation7], 48
    %v238 = vpack.c.bf16 0.0, %v236
    %240 = vst [vmem:[%s237] sm:$0xf] %v238
    %s241 = scalar_lea.vmem %s2, 52
    %s243 = sor.u32 255, 127
    %s244 = sand.u32 %s243, 85
    %s245 = sshrl.u32 %s244, 1
    %s246 = sor.u32 %s244, %s245
    %s247 = sand.u32 51, %s246
    %s248 = sshrl.u32 %s247, 2
    %s249 = sor.u32 %s247, %s248
    %s250 = sand.u32 15, %s249
    %v251 = vld [vmem:[%s241] sm:%s250]
    %v252 = vunpack.c.l.bf16 %v251
    %v253 = vunpack.c.h.bf16 %v251
    %v254 = vlaneseq
    %v255 = vand.u32 %v254, 127
    %v256 = vadd.s32 %v255, 128
    %vm257 = vcmp.lt.s32.totalorder %v256, 144
    %v258 = vsel %vm257, %v252, %v10
    %s259 = scalar_lea.vmem [#allocation7], 52
    %v260 = vpack.c.bf16 0.0, %v258
    %262 = vst [vmem:[%s259] sm:$0xf] %v260
    %s263 = scalar_lea.vmem %s2, 56
    %v264 = vld [vmem:[%s263] sm:$0xf]
    %v265 = vunpack.c.l.bf16 %v264
    %v266 = vunpack.c.h.bf16 %v264
    %v267 = vlaneseq
    %v268 = vand.u32 %v267, 127
    %vm270 = vcmp.lt.s32.totalorder %v268, 144
    %v271 = vsel %vm270, %v265, %v10
    %s272 = scalar_lea.vmem [#allocation7], 56
    %v273 = vpack.c.bf16 0.0, %v271
    %275 = vst [vmem:[%s272] sm:$0xf] %v273
    %s276 = scalar_lea.vmem %s2, 60
    %s278 = sor.u32 255, 127
    %s279 = sand.u32 %s278, 85
    %s280 = sshrl.u32 %s279, 1
    %s281 = sor.u32 %s279, %s280
    %s282 = sand.u32 51, %s281
    %s283 = sshrl.u32 %s282, 2
    %s284 = sor.u32 %s282, %s283
    %s285 = sand.u32 15, %s284
    %v286 = vld [vmem:[%s276] sm:%s285]
    %v287 = vunpack.c.l.bf16 %v286
    %v288 = vunpack.c.h.bf16 %v286
    %v289 = vlaneseq
    %v290 = vand.u32 %v289, 127
    %v291 = vadd.s32 %v290, 128
    %vm292 = vcmp.lt.s32.totalorder %v291, 144
    %v293 = vsel %vm292, %v287, %v10
    %s294 = scalar_lea.vmem [#allocation7], 60
    %v295 = vpack.c.bf16 0.0, %v293
    %297 = vst [vmem:[%s294] sm:$0xf] %v295
    %s298 = scalar_lea.vmem %s2, 64
    %v299 = vld [vmem:[%s298] sm:$0xf]
    %v300 = vunpack.c.l.bf16 %v299
    %v301 = vunpack.c.h.bf16 %v299
    %v302 = vlaneseq
    %v303 = vand.u32 %v302, 127
    %vm305 = vcmp.lt.s32.totalorder %v303, 144
    %v306 = vsel %vm305, %v300, %v10
    %s307 = scalar_lea.vmem [#allocation7], 64
    %v308 = vpack.c.bf16 0.0, %v306
    %310 = vst [vmem:[%s307] sm:$0xf] %v308
    %s311 = scalar_lea.vmem %s2, 68
    %s313 = sor.u32 255, 127
    %s314 = sand.u32 %s313, 85
    %s315 = sshrl.u32 %s314, 1
    %s316 = sor.u32 %s314, %s315
    %s317 = sand.u32 51, %s316
    %s318 = sshrl.u32 %s317, 2
    %s319 = sor.u32 %s317, %s318
    %s320 = sand.u32 15, %s319
    %v321 = vld [vmem:[%s311] sm:%s320]
    %v322 = vunpack.c.l.bf16 %v321
    %v323 = vunpack.c.h.bf16 %v321
    %v324 = vlaneseq
    %v325 = vand.u32 %v324, 127
    %v326 = vadd.s32 %v325, 128
    %vm327 = vcmp.lt.s32.totalorder %v326, 144
    %v328 = vsel %vm327, %v322, %v10
    %s329 = scalar_lea.vmem [#allocation7], 68
    %v330 = vpack.c.bf16 0.0, %v328
    %332 = vst [vmem:[%s329] sm:$0xf] %v330
    %s333 = scalar_lea.vmem %s2, 72
    %v334 = vld [vmem:[%s333] sm:$0xf]
    %v335 = vunpack.c.l.bf16 %v334
    %v336 = vunpack.c.h.bf16 %v334
    %v337 = vlaneseq
    %v338 = vand.u32 %v337, 127
    %vm340 = vcmp.lt.s32.totalorder %v338, 144
    %v341 = vsel %vm340, %v335, %v10
    %s342 = scalar_lea.vmem [#allocation7], 72
    %v343 = vpack.c.bf16 0.0, %v341
    %345 = vst [vmem:[%s342] sm:$0xf] %v343
    %s346 = scalar_lea.vmem %s2, 76
    %s348 = sor.u32 255, 127
    %s349 = sand.u32 %s348, 85
    %s350 = sshrl.u32 %s349, 1
    %s351 = sor.u32 %s349, %s350
    %s352 = sand.u32 51, %s351
    %s353 = sshrl.u32 %s352, 2
    %s354 = sor.u32 %s352, %s353
    %s355 = sand.u32 15, %s354
    %v356 = vld [vmem:[%s346] sm:%s355]
    %v357 = vunpack.c.l.bf16 %v356
    %v358 = vunpack.c.h.bf16 %v356
    %v359 = vlaneseq
    %v360 = vand.u32 %v359, 127
    %v361 = vadd.s32 %v360, 128
    %vm362 = vcmp.lt.s32.totalorder %v361, 144
    %v363 = vsel %vm362, %v357, %v10
    %s364 = scalar_lea.vmem [#allocation7], 76
    %v365 = vpack.c.bf16 0.0, %v363
    %367 = vst [vmem:[%s364] sm:$0xf] %v365
    %s368 = scalar_lea.vmem %s2, 80
    %v369 = vld [vmem:[%s368] sm:$0xf]
    %v370 = vunpack.c.l.bf16 %v369
    %v371 = vunpack.c.h.bf16 %v369
    %v372 = vlaneseq
    %v373 = vand.u32 %v372, 127
    %vm375 = vcmp.lt.s32.totalorder %v373, 144
    %v376 = vsel %vm375, %v370, %v10
    %s377 = scalar_lea.vmem [#allocation7], 80
    %v378 = vpack.c.bf16 0.0, %v376
    %380 = vst [vmem:[%s377] sm:$0xf] %v378
    %s381 = scalar_lea.vmem %s2, 84
    %s383 = sor.u32 255, 127
    %s384 = sand.u32 %s383, 85
    %s385 = sshrl.u32 %s384, 1
    %s386 = sor.u32 %s384, %s385
    %s387 = sand.u32 51, %s386
    %s388 = sshrl.u32 %s387, 2
    %s389 = sor.u32 %s387, %s388
    %s390 = sand.u32 15, %s389
    %v391 = vld [vmem:[%s381] sm:%s390]
    %v392 = vunpack.c.l.bf16 %v391
    %v393 = vunpack.c.h.bf16 %v391
    %v394 = vlaneseq
    %v395 = vand.u32 %v394, 127
    %v396 = vadd.s32 %v395, 128
    %vm397 = vcmp.lt.s32.totalorder %v396, 144
    %v398 = vsel %vm397, %v392, %v10
    %s399 = scalar_lea.vmem [#allocation7], 84
    %v400 = vpack.c.bf16 0.0, %v398
    %402 = vst [vmem:[%s399] sm:$0xf] %v400
    %s403 = scalar_lea.vmem %s2, 88
    %v404 = vld [vmem:[%s403] sm:$0xf]
    %v405 = vunpack.c.l.bf16 %v404
    %v406 = vunpack.c.h.bf16 %v404
    %v407 = vlaneseq
    %v408 = vand.u32 %v407, 127
    %vm410 = vcmp.lt.s32.totalorder %v408, 144
    %v411 = vsel %vm410, %v405, %v10
    %s412 = scalar_lea.vmem [#allocation7], 88
    %v413 = vpack.c.bf16 0.0, %v411
    %415 = vst [vmem:[%s412] sm:$0xf] %v413
    %s416 = scalar_lea.vmem %s2, 92
    %s418 = sor.u32 255, 127
    %s419 = sand.u32 %s418, 85
    %s420 = sshrl.u32 %s419, 1
    %s421 = sor.u32 %s419, %s420
    %s422 = sand.u32 51, %s421
    %s423 = sshrl.u32 %s422, 2
    %s424 = sor.u32 %s422, %s423
    %s425 = sand.u32 15, %s424
    %v426 = vld [vmem:[%s416] sm:%s425]
    %v427 = vunpack.c.l.bf16 %v426
    %v428 = vunpack.c.h.bf16 %v426
    %v429 = vlaneseq
    %v430 = vand.u32 %v429, 127
    %v431 = vadd.s32 %v430, 128
    %vm432 = vcmp.lt.s32.totalorder %v431, 144
    %v433 = vsel %vm432, %v427, %v10
    %s434 = scalar_lea.vmem [#allocation7], 92
    %v435 = vpack.c.bf16 0.0, %v433
    %437 = vst [vmem:[%s434] sm:$0xf] %v435
    %s438 = scalar_lea.vmem %s2, 96
    %v439 = vld [vmem:[%s438] sm:$0xf]
    %v440 = vunpack.c.l.bf16 %v439
    %v441 = vunpack.c.h.bf16 %v439
    %v442 = vlaneseq
    %v443 = vand.u32 %v442, 127
    %vm445 = vcmp.lt.s32.totalorder %v443, 144
    %v446 = vsel %vm445, %v440, %v10
    %s447 = scalar_lea.vmem [#allocation7], 96
    %v448 = vpack.c.bf16 0.0, %v446
    %450 = vst [vmem:[%s447] sm:$0xf] %v448
    %s451 = scalar_lea.vmem %s2, 100
    %s453 = sor.u32 255, 127
    %s454 = sand.u32 %s453, 85
    %s455 = sshrl.u32 %s454, 1
    %s456 = sor.u32 %s454, %s455
    %s457 = sand.u32 51, %s456
    %s458 = sshrl.u32 %s457, 2
    %s459 = sor.u32 %s457, %s458
    %s460 = sand.u32 15, %s459
    %v461 = vld [vmem:[%s451] sm:%s460]
    %v462 = vunpack.c.l.bf16 %v461
    %v463 = vunpack.c.h.bf16 %v461
    %v464 = vlaneseq
    %v465 = vand.u32 %v464, 127
    %v466 = vadd.s32 %v465, 128
    %vm467 = vcmp.lt.s32.totalorder %v466, 144
    %v468 = vsel %vm467, %v462, %v10
    %s469 = scalar_lea.vmem [#allocation7], 100
    %v470 = vpack.c.bf16 0.0, %v468
    %472 = vst [vmem:[%s469] sm:$0xf] %v470
    %s473 = scalar_lea.vmem %s2, 104
    %v474 = vld [vmem:[%s473] sm:$0xf]
    %v475 = vunpack.c.l.bf16 %v474
    %v476 = vunpack.c.h.bf16 %v474
    %v477 = vlaneseq
    %v478 = vand.u32 %v477, 127
    %vm480 = vcmp.lt.s32.totalorder %v478, 144
    %v481 = vsel %vm480, %v475, %v10
    %s482 = scalar_lea.vmem [#allocation7], 104
    %v483 = vpack.c.bf16 0.0, %v481
    %485 = vst [vmem:[%s482] sm:$0xf] %v483
    %s486 = scalar_lea.vmem %s2, 108
    %s488 = sor.u32 255, 127
    %s489 = sand.u32 %s488, 85
    %s490 = sshrl.u32 %s489, 1
    %s491 = sor.u32 %s489, %s490
    %s492 = sand.u32 51, %s491
    %s493 = sshrl.u32 %s492, 2
    %s494 = sor.u32 %s492, %s493
    %s495 = sand.u32 15, %s494
    %v496 = vld [vmem:[%s486] sm:%s495]
    %v497 = vunpack.c.l.bf16 %v496
    %v498 = vunpack.c.h.bf16 %v496
    %v499 = vlaneseq
    %v500 = vand.u32 %v499, 127
    %v501 = vadd.s32 %v500, 128
    %vm502 = vcmp.lt.s32.totalorder %v501, 144
    %v503 = vsel %vm502, %v497, %v10
    %s504 = scalar_lea.vmem [#allocation7], 108
    %v505 = vpack.c.bf16 0.0, %v503
    %507 = vst [vmem:[%s504] sm:$0xf] %v505
    %s508 = scalar_lea.vmem %s2, 112
    %v509 = vld [vmem:[%s508] sm:$0xf]
    %v510 = vunpack.c.l.bf16 %v509
    %v511 = vunpack.c.h.bf16 %v509
    %v512 = vlaneseq
    %v513 = vand.u32 %v512, 127
    %vm515 = vcmp.lt.s32.totalorder %v513, 144
    %v516 = vsel %vm515, %v510, %v10
    %s517 = scalar_lea.vmem [#allocation7], 112
    %v518 = vpack.c.bf16 0.0, %v516
    %520 = vst [vmem:[%s517] sm:$0xf] %v518
    %s521 = scalar_lea.vmem %s2, 116
    %s523 = sor.u32 255, 127
    %s524 = sand.u32 %s523, 85
    %s525 = sshrl.u32 %s524, 1
    %s526 = sor.u32 %s524, %s525
    %s527 = sand.u32 51, %s526
    %s528 = sshrl.u32 %s527, 2
    %s529 = sor.u32 %s527, %s528
    %s530 = sand.u32 15, %s529
    %v531 = vld [vmem:[%s521] sm:%s530]
    %v532 = vunpack.c.l.bf16 %v531
    %v533 = vunpack.c.h.bf16 %v531
    %v534 = vlaneseq
    %v535 = vand.u32 %v534, 127
    %v536 = vadd.s32 %v535, 128
    %vm537 = vcmp.lt.s32.totalorder %v536, 144
    %v538 = vsel %vm537, %v532, %v10
    %s539 = scalar_lea.vmem [#allocation7], 116
    %v540 = vpack.c.bf16 0.0, %v538
    %542 = vst [vmem:[%s539] sm:$0xf] %v540
    %s543 = scalar_lea.vmem %s2, 120
    %v544 = vld [vmem:[%s543] sm:$0xf]
    %v545 = vunpack.c.l.bf16 %v544
    %v546 = vunpack.c.h.bf16 %v544
    %v547 = vlaneseq
    %v548 = vand.u32 %v547, 127
    %vm550 = vcmp.lt.s32.totalorder %v548, 144
    %v551 = vsel %vm550, %v545, %v10
    %s552 = scalar_lea.vmem [#allocation7], 120
    %v553 = vpack.c.bf16 0.0, %v551
    %555 = vst [vmem:[%s552] sm:$0xf] %v553
    %s556 = scalar_lea.vmem %s2, 124
    %s558 = sor.u32 255, 127
    %s559 = sand.u32 %s558, 85
    %s560 = sshrl.u32 %s559, 1
    %s561 = sor.u32 %s559, %s560
    %s562 = sand.u32 51, %s561
    %s563 = sshrl.u32 %s562, 2
    %s564 = sor.u32 %s562, %s563
    %s565 = sand.u32 15, %s564
    %v566 = vld [vmem:[%s556] sm:%s565]
    %v567 = vunpack.c.l.bf16 %v566
    %v568 = vunpack.c.h.bf16 %v566
    %v569 = vlaneseq
    %v570 = vand.u32 %v569, 127
    %v571 = vadd.s32 %v570, 128
    %vm572 = vcmp.lt.s32.totalorder %v571, 144
    %v573 = vsel %vm572, %v567, %v10
    %s574 = scalar_lea.vmem [#allocation7], 124
    %v575 = vpack.c.bf16 0.0, %v573
    %577 = vst [vmem:[%s574] sm:$0xf] %v575
    %v579 = vld [vmem:[#allocation7] sm:$0xff]
    %v580 = vld [vmem:[#allocation7 + $0x8] sm:$0xff]
    %v581 = vld [vmem:[#allocation7 + $0x10] sm:$0xff]
    %v582 = vld [vmem:[#allocation7 + $0x18] sm:$0xff]
    %v583 = vld [vmem:[#allocation7 + $0x20] sm:$0xff]
    %v584 = vld [vmem:[#allocation7 + $0x28] sm:$0xff]
    %v585 = vld [vmem:[#allocation7 + $0x30] sm:$0xff]
    %v586 = vld [vmem:[#allocation7 + $0x38] sm:$0xff]
    %v587 = vld [vmem:[#allocation7 + $0x40] sm:$0xff]
    %v588 = vld [vmem:[#allocation7 + $0x48] sm:$0xff]
    %v589 = vld [vmem:[#allocation7 + $0x50] sm:$0xff]
    %v590 = vld [vmem:[#allocation7 + $0x58] sm:$0xff]
    %v591 = vld [vmem:[#allocation7 + $0x60] sm:$0xff]
    %v592 = vld [vmem:[#allocation7 + $0x68] sm:$0xff]
    %v593 = vld [vmem:[#allocation7 + $0x70] sm:$0xff]
    %v594 = vld [vmem:[#allocation7 + $0x78] sm:$0xff]
    %v595 = vld [vmem:[%s0] sm:$0xf]
    %v596 = vld [vmem:[%s0 + $0x4] sm:$0xf]
    %v597 = vld [vmem:[%s0 + $0x8] sm:$0xf]
    %v598 = vld [vmem:[%s0 + $0xc] sm:$0xf]
    %v599 = vld [vmem:[%s0 + $0x10] sm:$0xf]
    %v600 = vld [vmem:[%s0 + $0x14] sm:$0xf]
    %v601 = vld [vmem:[%s0 + $0x18] sm:$0xf]
    %v602 = vld [vmem:[%s0 + $0x1c] sm:$0xf]
    %v603 = vld [vmem:[%s0 + $0x20] sm:$0xf]
    %v604 = vld [vmem:[%s0 + $0x24] sm:$0xf]
    %v605 = vld [vmem:[%s0 + $0x28] sm:$0xf]
    %v606 = vld [vmem:[%s0 + $0x2c] sm:$0xf]
    %v607 = vld [vmem:[%s0 + $0x30] sm:$0xf]
    %v608 = vld [vmem:[%s0 + $0x34] sm:$0xf]
    %v609 = vld [vmem:[%s0 + $0x38] sm:$0xf]
    %v610 = vld [vmem:[%s0 + $0x3c] sm:$0xf]
    %v611 = vld [vmem:[%s0 + $0x40] sm:$0xf]
    %v612 = vld [vmem:[%s0 + $0x44] sm:$0xf]
    %v613 = vld [vmem:[%s0 + $0x48] sm:$0xf]
    %v614 = vld [vmem:[%s0 + $0x4c] sm:$0xf]
    %v615 = vld [vmem:[%s0 + $0x50] sm:$0xf]
    %v616 = vld [vmem:[%s0 + $0x54] sm:$0xf]
    %v617 = vld [vmem:[%s0 + $0x58] sm:$0xf]
    %v618 = vld [vmem:[%s0 + $0x5c] sm:$0xf]
    %v619 = vld [vmem:[%s0 + $0x60] sm:$0xf]
    %v620 = vld [vmem:[%s0 + $0x64] sm:$0xf]
    %v621 = vld [vmem:[%s0 + $0x68] sm:$0xf]
    %v622 = vld [vmem:[%s0 + $0x6c] sm:$0xf]
    %v623 = vld [vmem:[%s0 + $0x70] sm:$0xf]
    %v624 = vld [vmem:[%s0 + $0x74] sm:$0xf]
    %v625 = vld [vmem:[%s0 + $0x78] sm:$0xf]
    %v626 = vld [vmem:[%s0 + $0x7c] sm:$0xf]
    %v627 = vld [vmem:[%s1] sm:$0x1]
    %v629 = vlaneseq
    %v630 = vshrl.u32 %v629, 7
    %v631 = vsub.s32 0, %v630
    %v632 = vrot.slane %v627, %v631
    %v650 = vunpack.c.l.b16 %v579
    %v651 = vunpack.c.h.b16 %v579
    %v652 = vunpack.c.l.b16 %v580
    %v653 = vunpack.c.h.b16 %v580
    %v654 = vunpack.c.l.b16 %v581
    %v655 = vunpack.c.h.b16 %v581
    %v656 = vunpack.c.l.b16 %v582
    %v657 = vunpack.c.h.b16 %v582
    %v658 = vunpack.c.l.b16 %v583
    %v659 = vunpack.c.h.b16 %v583
    %v660 = vunpack.c.l.b16 %v584
    %v661 = vunpack.c.h.b16 %v584
    %v662 = vunpack.c.l.b16 %v585
    %v663 = vunpack.c.h.b16 %v585
    %v664 = vunpack.c.l.b16 %v586
    %v665 = vunpack.c.h.b16 %v586
    %v666 = vunpack.c.l.b16 %v587
    %v667 = vunpack.c.h.b16 %v587
    %v668 = vunpack.c.l.b16 %v588
    %v669 = vunpack.c.h.b16 %v588
    %v670 = vunpack.c.l.b16 %v589
    %v671 = vunpack.c.h.b16 %v589
    %v672 = vunpack.c.l.b16 %v590
    %v673 = vunpack.c.h.b16 %v590
    %v674 = vunpack.c.l.b16 %v591
    %v675 = vunpack.c.h.b16 %v591
    %v676 = vunpack.c.l.b16 %v592
    %v677 = vunpack.c.h.b16 %v592
    %v678 = vunpack.c.l.b16 %v593
    %v679 = vunpack.c.h.b16 %v593
    %v680 = vunpack.c.l.b16 %v594
    %v681 = vunpack.c.h.b16 %v594
    %v682 = vpack.c.b16 %v652, %v650
    %v683 = vpack.c.b16 %v653, %v651
    %v684 = vpack.c.b16 %v656, %v654
    %v685 = vpack.c.b16 %v657, %v655
    %v686 = vpack.c.b16 %v660, %v658
    %v687 = vpack.c.b16 %v661, %v659
    %v688 = vpack.c.b16 %v664, %v662
    %v689 = vpack.c.b16 %v665, %v663
    %v690 = vpack.c.b16 %v668, %v666
    %v691 = vpack.c.b16 %v669, %v667
    %v692 = vpack.c.b16 %v672, %v670
    %v693 = vpack.c.b16 %v673, %v671
    %v694 = vpack.c.b16 %v676, %v674
    %v695 = vpack.c.b16 %v677, %v675
    %v696 = vpack.c.b16 %v680, %v678
    %v697 = vpack.c.b16 %v681, %v679
    %v746 = vunpack.c.l.b16 %v595
    %v747 = vunpack.c.l.b16 %v596
    %v748 = vunpack.c.l.b16 %v597
    %v749 = vunpack.c.l.b16 %v598
    %v750 = vunpack.c.l.b16 %v599
    %v751 = vunpack.c.l.b16 %v600
    %v752 = vunpack.c.l.b16 %v601
    %v753 = vunpack.c.l.b16 %v602
    %v754 = vunpack.c.l.b16 %v603
    %v755 = vunpack.c.l.b16 %v604
    %v756 = vunpack.c.l.b16 %v605
    %v757 = vunpack.c.l.b16 %v606
    %v758 = vunpack.c.l.b16 %v607
    %v759 = vunpack.c.l.b16 %v608
    %v760 = vunpack.c.l.b16 %v609
    %v761 = vunpack.c.l.b16 %v610
    %v762 = vunpack.c.l.b16 %v611
    %v763 = vunpack.c.l.b16 %v612
    %v764 = vunpack.c.l.b16 %v613
    %v765 = vunpack.c.l.b16 %v614
    %v766 = vunpack.c.l.b16 %v615
    %v767 = vunpack.c.l.b16 %v616
    %v768 = vunpack.c.l.b16 %v617
    %v769 = vunpack.c.l.b16 %v618
    %v770 = vunpack.c.l.b16 %v619
    %v771 = vunpack.c.l.b16 %v620
    %v772 = vunpack.c.l.b16 %v621
    %v773 = vunpack.c.l.b16 %v622
    %v774 = vunpack.c.l.b16 %v623
    %v775 = vunpack.c.l.b16 %v624
    %v776 = vunpack.c.l.b16 %v625
    %v777 = vunpack.c.l.b16 %v626
    %v778 = vpack.c.b16 %v747, %v746
    %v779 = vpack.c.b16 %v749, %v748
    %v780 = vpack.c.b16 %v751, %v750
    %v781 = vpack.c.b16 %v753, %v752
    %v782 = vpack.c.b16 %v755, %v754
    %v783 = vpack.c.b16 %v757, %v756
    %v784 = vpack.c.b16 %v759, %v758
    %v785 = vpack.c.b16 %v761, %v760
    %v786 = vpack.c.b16 %v763, %v762
    %v787 = vpack.c.b16 %v765, %v764
    %v788 = vpack.c.b16 %v767, %v766
    %v789 = vpack.c.b16 %v769, %v768
    %v790 = vpack.c.b16 %v771, %v770
    %v791 = vpack.c.b16 %v773, %v772
    %v792 = vpack.c.b16 %v775, %v774
    %v793 = vpack.c.b16 %v777, %v776
    %810 = vmatprep.subr.bf16.mxu0 0
    %811 = vmatpush1.bf16.msra.mxu0 %v778
    %812 = vmatprep.subr.bf16.mxu0 0
    %813 = vmatpush1.bf16.msra.mxu0 %v779
    %814 = vmatprep.subr.bf16.mxu0 0
    %815 = vmatpush1.bf16.msra.mxu0 %v780
    %816 = vmatprep.subr.bf16.mxu0 0
    %817 = vmatpush1.bf16.msra.mxu0 %v781
    %818 = vmatprep.subr.bf16.mxu0 0
    %819 = vmatpush1.bf16.msra.mxu0 %v782
    %820 = vmatprep.subr.bf16.mxu0 0
    %821 = vmatpush1.bf16.msra.mxu0 %v783
    %822 = vmatprep.subr.bf16.mxu0 0
    %823 = vmatpush1.bf16.msra.mxu0 %v784
    %824 = vmatprep.subr.bf16.mxu0 0
    %825 = vmatpush1.bf16.msra.mxu0 %v785
    %826 = vmatprep.subr.bf16.mxu0 0
    %827 = vmatpush1.bf16.msra.mxu0 %v786
    %828 = vmatprep.subr.bf16.mxu0 0
    %829 = vmatpush1.bf16.msra.mxu0 %v787
    %830 = vmatprep.subr.bf16.mxu0 0
    %831 = vmatpush1.bf16.msra.mxu0 %v788
    %832 = vmatprep.subr.bf16.mxu0 0
    %833 = vmatpush1.bf16.msra.mxu0 %v789
    %834 = vmatprep.subr.bf16.mxu0 0
    %835 = vmatpush1.bf16.msra.mxu0 %v790
    %836 = vmatprep.subr.bf16.mxu0 0
    %837 = vmatpush1.bf16.msra.mxu0 %v791
    %838 = vmatprep.subr.bf16.mxu0 0
    %839 = vmatpush1.bf16.msra.mxu0 %v792
    %840 = vmatprep.subr.bf16.mxu0 0
    %841 = vmatpush1.bf16.msra.mxu0 %v793
    %842 = vmatprep.mubr.bf16.mxu0 %v683
    %843 = vmatmul.mubr.bf16.gmra.mrb[0].mxu0 %v682
    %v844 = vpop.f32.mrb[0].mxu0
    %v845 = vadd.f32 %v632, %v844
    %v846 = vpop.f32.mrb[0].mxu0
    %v847 = vpop.f32.mrb[0].mxu0
    %v848 = vadd.f32 %v632, %v847
    %v849 = vpop.f32.mrb[0].mxu0
    %850 = vmatprep.mubr.bf16.mxu0 %v685
    %851 = vmatmul.mubr.bf16.gmra.mrb[0].mxu0 %v684
    %v852 = vpop.f32.mrb[0].mxu0
    %v853 = vadd.f32 %v632, %v852
    %v854 = vpop.f32.mrb[0].mxu0
    %v855 = vpop.f32.mrb[0].mxu0
    %v856 = vadd.f32 %v632, %v855
    %v857 = vpop.f32.mrb[0].mxu0
    %858 = vmatprep.mubr.bf16.mxu0 %v687
    %859 = vmatmul.mubr.bf16.gmra.mrb[0].mxu0 %v686
    %v860 = vpop.f32.mrb[0].mxu0
    %v861 = vadd.f32 %v632, %v860
    %v862 = vpop.f32.mrb[0].mxu0
    %v863 = vpop.f32.mrb[0].mxu0
    %v864 = vadd.f32 %v632, %v863
    %v865 = vpop.f32.mrb[0].mxu0
    %866 = vmatprep.mubr.bf16.mxu0 %v689
    %867 = vmatmul.mubr.bf16.gmra.mrb[0].mxu0 %v688
    %v868 = vpop.f32.mrb[0].mxu0
    %v869 = vadd.f32 %v632, %v868
    %v870 = vpop.f32.mrb[0].mxu0
    %v871 = vpop.f32.mrb[0].mxu0
    %v872 = vadd.f32 %v632, %v871
    %v873 = vpop.f32.mrb[0].mxu0
    %874 = vmatprep.mubr.bf16.mxu0 %v691
    %875 = vmatmul.mubr.bf16.gmra.mrb[0].mxu0 %v690
    %v876 = vpop.f32.mrb[0].mxu0
    %v877 = vadd.f32 %v632, %v876
    %v878 = vpop.f32.mrb[0].mxu0
    %v879 = vpop.f32.mrb[0].mxu0
    %v880 = vadd.f32 %v632, %v879
    %v881 = vpop.f32.mrb[0].mxu0
    %882 = vmatprep.mubr.bf16.mxu0 %v693
    %883 = vmatmul.mubr.bf16.gmra.mrb[0].mxu0 %v692
    %v884 = vpop.f32.mrb[0].mxu0
    %v885 = vadd.f32 %v632, %v884
    %v886 = vpop.f32.mrb[0].mxu0
    %v887 = vpop.f32.mrb[0].mxu0
    %v888 = vadd.f32 %v632, %v887
    %v889 = vpop.f32.mrb[0].mxu0
    %890 = vmatprep.mubr.bf16.mxu0 %v695
    %891 = vmatmul.mubr.bf16.gmra.mrb[0].mxu0 %v694
    %v892 = vpop.f32.mrb[0].mxu0
    %v893 = vadd.f32 %v632, %v892
    %v894 = vpop.f32.mrb[0].mxu0
    %v895 = vpop.f32.mrb[0].mxu0
    %v896 = vadd.f32 %v632, %v895
    %v897 = vpop.f32.mrb[0].mxu0
    %898 = vmatprep.mubr.bf16.mxu0 %v697
    %899 = vmatmul.mubr.bf16.gmra.mrb[0].mxu0 %v696
    %v900 = vpop.f32.mrb[0].mxu0
    %v901 = vadd.f32 %v632, %v900
    %v902 = vpop.f32.mrb[0].mxu0
    %v903 = vpop.f32.mrb[0].mxu0
    %v904 = vadd.f32 %v632, %v903
    %v905 = vpop.f32.mrb[0].mxu0
    %906 = vdwg.mxu0
    %907 = vst [vmem:[%s4] sm:$0xff] %v845
    %908 = vst [vmem:[%s4 + $0x8] sm:$0xff] %v848
    %909 = vst [vmem:[%s4 + $0x10] sm:$0xff] %v853
    %910 = vst [vmem:[%s4 + $0x18] sm:$0xff] %v856
    %911 = vst [vmem:[%s4 + $0x20] sm:$0xff] %v861
    %912 = vst [vmem:[%s4 + $0x28] sm:$0xff] %v864
    %913 = vst [vmem:[%s4 + $0x30] sm:$0xff] %v869
    %914 = vst [vmem:[%s4 + $0x38] sm:$0xff] %v872
    %915 = vst [vmem:[%s4 + $0x40] sm:$0xff] %v877
    %916 = vst [vmem:[%s4 + $0x48] sm:$0xff] %v880
    %917 = vst [vmem:[%s4 + $0x50] sm:$0xff] %v885
    %918 = vst [vmem:[%s4 + $0x58] sm:$0xff] %v888
    %919 = vst [vmem:[%s4 + $0x60] sm:$0xff] %v893
    %920 = vst [vmem:[%s4 + $0x68] sm:$0xff] %v896
    %921 = vst [vmem:[%s4 + $0x70] sm:$0xff] %v901
    %922 = vst [vmem:[%s4 + $0x78] sm:$0xff] %v904
    // Predicated region
    $region14: #{vqvae_forward.32} parent=1 // pred_check
      _
    $region15: #{vqvae_forward.32} parent=1 // pred_check_branch
      %924 = sbr.rel (0) target = $region17
    $region16: #{vqvae_forward.32} parent=1 // pred_region
      _
    $region17: #{vqvae_forward.32} parent=1 // pred_fallthru
      _
    // Predicated region
    $region18: #{vqvae_forward.32} parent=1 // pred_check
      _
    $region19: #{vqvae_forward.32} parent=1 // pred_check_branch
      %926 = sbr.rel (0) target = $region21
    $region20: #{vqvae_forward.32} parent=1 // pred_region
      _
    $region21: #{vqvae_forward.32} parent=1 // pred_fallthru
      _

</llo_original>
